<compile_context>
chip_gen: v5e
topology: v5e:2x2
jax: 0.10.0
libtpu: 0.0.40
codegen_flags: <defaults>
</compile_context>

<pallas_src>
import math
import functools

import numpy as np
import jax
import jax.numpy as jnp
from jax.experimental import pallas as pl
from jax.experimental.pallas import tpu as pltpu

NEG_INF = -1e30            # large negative instead of -inf keeps softmax NaN-free
MXU_DT = jnp.bfloat16      # MXU operand dtype (f32 accumulation); VPU math stays f32
LN_EPS = 1e-5              # nn.LayerNorm default
VMEM_LIMIT_BYTES = 48 * 1024 * 1024


def _cparams(*sems):
    return pltpu.CompilerParams(dimension_semantics=tuple(sems),
                                vmem_limit_bytes=VMEM_LIMIT_BYTES)


def _round_up(x, m):
    return (x + m - 1) // m * m


def _row_tiling(n, cap=512):
    """Row tile + grid size for a flattened (N, E) slab. Prefers an exact divisor <= cap;
    otherwise falls back to cdiv tiling (Pallas masks the ragged tail) so we never end up
    with a single huge, un-pipelined block."""
    if n <= cap:
        return n, 1
    for t in (512, 256, 128, 64, 32, 16, 8):
        if n % t == 0:
            return t, n // t
    t = 256
    return t, pl.cdiv(n, t)


def _pick_seq_tile(n, cap=256):
    # TODO(synk): ragged (non power-friendly) sequence lengths fall back to one block per axis.
    if n <= cap:
        return n
    for t in (256, 128, 64, 32, 16, 8):
        if n % t == 0:
            return t
    return n


# ----------------------------- Pallas kernels ------------------------------ #

def _split_linear_kernel(x_ref, w_ref, b_ref, *o_refs, splits):
    # One fused matmul (e.g. QKV / KV projection); column splits stored to separate outputs.
    y = jnp.dot(x_ref[...].astype(MXU_DT), w_ref[...],
                preferred_element_type=jnp.float32) + b_ref[...]
    off = 0
    for o_ref, d in zip(o_refs, splits):
        o_ref[...] = y[:, off:off + d].astype(o_ref.dtype)
        off += d


def _linear_kernel(x_ref, w_ref, b_ref, o_ref):
    o_ref[...] = (jnp.dot(x_ref[...].astype(MXU_DT), w_ref[...],
                          preferred_element_type=jnp.float32) + b_ref[...]).astype(o_ref.dtype)


def _proj_add_ln_kernel(a_ref, w_ref, b_ref, res_ref, g_ref, beta_ref, o_ref, *, eps):
    # out = LayerNorm(res + a @ w + b)    (post-norm residual, fused epilogue)
    y = jnp.dot(a_ref[...].astype(MXU_DT), w_ref[...],
                preferred_element_type=jnp.float32) + b_ref[...]
    y = y + res_ref[...]
    mu = jnp.mean(y, axis=-1, keepdims=True)
    var = jnp.mean(jnp.square(y - mu), axis=-1, keepdims=True)
    o_ref[...] = (y - mu) * jax.lax.rsqrt(var + eps) * g_ref[...] + beta_ref[...]


def _ffn_kernel(x_ref, w1_ref, b1_ref, w2_ref, b2_ref, g_ref, beta_ref, o_ref, acc_ref, *, eps):
    # grid = (row_tiles, ff_chunks); ff chunk (reduction) axis is last / "arbitrary".
    # Hidden activation lives only in registers/VMEM; never written to HBM.
    j = pl.program_id(1)

    @pl.when(j == 0)
    def _():
        acc_ref[...] = jnp.zeros_like(acc_ref)

    x = x_ref[...]
    h = jnp.dot(x.astype(MXU_DT), w1_ref[...],
                preferred_element_type=jnp.float32) + b1_ref[...]
    h = jnp.maximum(h, 0.0)                                   # ReLU (per-chunk is exact)
    acc_ref[...] += jnp.dot(h.astype(MXU_DT), w2_ref[...],
                            preferred_element_type=jnp.float32)

    @pl.when(j == pl.num_programs(1) - 1)
    def _():
        y = x + acc_ref[...] + b2_ref[...]                    # residual + bias
        mu = jnp.mean(y, axis=-1, keepdims=True)
        var = jnp.mean(jnp.square(y - mu), axis=-1, keepdims=True)
        o_ref[...] = (y - mu) * jax.lax.rsqrt(var + eps) * g_ref[...] + beta_ref[...]


def _flash_attn_kernel(q_ref, k_ref, v_ref, kpad_ref, *rest,
                       n_heads, scale, causal, has_bias):
    # grid = (B, Lq_tiles, Lk_tiles); online softmax over the Lk axis (last / "arbitrary").
    # q_ref: (1, tq, E); k_ref/v_ref: (1, tk, E); kpad_ref: (1, 1, tk); optional bias (tq, tk).
    if has_bias:
        bias_ref, o_ref, m_sc, l_sc, acc_sc = rest
    else:
        bias_ref = None
        o_ref, m_sc, l_sc, acc_sc = rest

    _, tq, E = q_ref.shape
    tk = k_ref.shape[1]
    dh = E // n_heads            # TODO(synk): MXU contraction width == dh; dh >= 128 recommended.
    qi = pl.program_id(1)
    kj = pl.program_id(2)

    @pl.when(kj == 0)
    def _():
        m_sc[...] = jnp.full(m_sc.shape, NEG_INF, m_sc.dtype)
        l_sc[...] = jnp.zeros(l_sc.shape, l_sc.dtype)
        acc_sc[...] = jnp.zeros(acc_sc.shape, acc_sc.dtype)

    def _compute():
        q = q_ref[0]                                           # (tq, E) bf16
        k = k_ref[0]                                           # (tk, E) bf16
        v = v_ref[0]                                           # (tk, E) bf16

        # combined additive bias, built ONCE for all heads
        bias = jnp.broadcast_to(kpad_ref[0], (tq, tk))         # key-padding term (f32)
        if causal:
            row = qi * tq + jax.lax.broadcasted_iota(jnp.int32, (tq, tk), 0)
            col = kj * tk + jax.lax.broadcasted_iota(jnp.int32, (tq, tk), 1)
            bias = jnp.where(col > row, NEG_INF, bias)
        if has_bias:
            bias = bias + bias_ref[...]

        for h in range(n_heads):                               # heads = static lane slices
            sl = slice(h * dh, (h + 1) * dh)
            s = jax.lax.dot_general(
                q[:, sl], k[:, sl], (((1,), (1,)), ((), ())),  # contract head dim, no transpose
                preferred_element_type=jnp.float32) * scale + bias
            m_prev = m_sc[h]                                   # (tq, 1)
            m_new = jnp.maximum(m_prev, jnp.max(s, axis=-1, keepdims=True))
            alpha = jnp.exp(m_prev - m_new)
            p = jnp.exp(s - m_new)
            l_sc[h] = alpha * l_sc[h] + jnp.sum(p, axis=-1, keepdims=True)
            acc_sc[:, sl] = alpha * acc_sc[:, sl] + jnp.dot(
                p.astype(MXU_DT), v[:, sl], preferred_element_type=jnp.float32)
            m_sc[h] = m_new

    if causal:
        # skip key blocks entirely in the future of this q tile
        pl.when(kj * tk <= qi * tq + tq - 1)(_compute)
    else:
        _compute()

    @pl.when(kj == pl.num_programs(2) - 1)
    def _():
        for h in range(n_heads):
            sl = slice(h * dh, (h + 1) * dh)
            acc_sc[:, sl] = acc_sc[:, sl] * pl.reciprocal(l_sc[h], approx=True)
        o_ref[0] = acc_sc[...].astype(o_ref.dtype)             # single lane-dense store


# ----------------------------- kernel wrappers ------------------------------ #

def split_linear(x, w, b, splits, out_dtype=MXU_DT):
    """Fused projection: one matmul, column-split into len(splits) output arrays."""
    N, din = x.shape
    dout = w.shape[1]
    assert sum(splits) == dout
    tile_n, rows = _row_tiling(N)
    out_shape = tuple(jax.ShapeDtypeStruct((N, d), out_dtype) for d in splits)
    out_specs = tuple(pl.BlockSpec((tile_n, d), lambda i: (i, 0)) for d in splits)
    return pl.pallas_call(
        functools.partial(_split_linear_kernel, splits=tuple(splits)),
        out_shape=out_shape,
        grid=(rows,),
        in_specs=[
            pl.BlockSpec((tile_n, din), lambda i: (i, 0)),
            pl.BlockSpec((din, dout), lambda i: (0, 0)),
            pl.BlockSpec((1, dout), lambda i: (0, 0)),
        ],
        out_specs=out_specs,
        compiler_params=_cparams("parallel"),
    )(x, w, b)


def linear(x, w, b, out_dtype=jnp.float32, col_cap=512):
    """Row- and column-tiled linear (used for the lane-dense padded vocab head)."""
    N, din = x.shape
    dout = w.shape[1]
    tile_n, rows = _row_tiling(N)
    tile_d = dout
    if dout > col_cap:
        for t in (512, 256, 128):
            if dout % t == 0:
                tile_d = t
                break
    grid = (rows, dout // tile_d)
    return pl.pallas_call(
        _linear_kernel,
        out_shape=jax.ShapeDtypeStruct((N, dout), out_dtype),
        grid=grid,
        in_specs=[
            pl.BlockSpec((tile_n, din), lambda i, j: (i, 0)),
            pl.BlockSpec((din, tile_d), lambda i, j: (0, j)),
            pl.BlockSpec((1, tile_d), lambda i, j: (0, j)),
        ],
        out_specs=pl.BlockSpec((tile_n, tile_d), lambda i, j: (i, j)),
        compiler_params=_cparams("parallel", "parallel"),
    )(x, w, b)


def proj_add_ln(a, w, b, res, g, beta, eps=LN_EPS):
    # LayerNorm(res + a @ w + b)
    N, E = res.shape
    tile_n, rows = _row_tiling(N)
    return pl.pallas_call(
        functools.partial(_proj_add_ln_kernel, eps=eps),
        out_shape=jax.ShapeDtypeStruct((N, E), jnp.float32),
        grid=(rows,),
        in_specs=[
            pl.BlockSpec((tile_n, E), lambda i: (i, 0)),
            pl.BlockSpec((E, E), lambda i: (0, 0)),
            pl.BlockSpec((1, E), lambda i: (0, 0)),
            pl.BlockSpec((tile_n, E), lambda i: (i, 0)),
            pl.BlockSpec((1, E), lambda i: (0, 0)),
            pl.BlockSpec((1, E), lambda i: (0, 0)),
        ],
        out_specs=pl.BlockSpec((tile_n, E), lambda i: (i, 0)),
        compiler_params=_cparams("parallel"),
    )(a, w, b, res, g, beta)


def ffn_add_ln(x, w1, b1, w2, b2, g, beta, eps=LN_EPS, tile_ff=512):
    # LayerNorm(x + relu(x @ w1 + b1) @ w2 + b2), hidden chunked over dim_ff
    N, E = x.shape
    dim_ff = w1.shape[1]
    tile_n, rows = _row_tiling(N)
    tile_ff = min(tile_ff, dim_ff)
    while dim_ff % tile_ff:
        tile_ff //= 2
    grid = (rows, dim_ff // tile_ff)
    return pl.pallas_call(
        functools.partial(_ffn_kernel, eps=eps),
        out_shape=jax.ShapeDtypeStruct((N, E), jnp.float32),
        grid=grid,
        in_specs=[
            pl.BlockSpec((tile_n, E), lambda i, j: (i, 0)),
            pl.BlockSpec((E, tile_ff), lambda i, j: (0, j)),
            pl.BlockSpec((1, tile_ff), lambda i, j: (0, j)),
            pl.BlockSpec((tile_ff, E), lambda i, j: (j, 0)),
            pl.BlockSpec((1, E), lambda i, j: (0, 0)),
            pl.BlockSpec((1, E), lambda i, j: (0, 0)),
            pl.BlockSpec((1, E), lambda i, j: (0, 0)),
        ],
        out_specs=pl.BlockSpec((tile_n, E), lambda i, j: (i, 0)),
        scratch_shapes=[pltpu.VMEM((tile_n, E), jnp.float32)],
        compiler_params=_cparams("parallel", "arbitrary"),
    )(x, w1, b1, w2, b2, g, beta)


def flash_attention(q, k, v, kpad_bias, n_heads, *, causal, attn_bias=None):
    """q: (B, Lq, E); k, v: (B, Lk, E) (bf16); kpad_bias: (B, 1, Lk) additive f32.
    Optional attn_bias: (Lq, Lk) additive f32 for arbitrary masks (not needed for causal)."""
    # TODO(synk): the QKV projection could be fused into this kernel (weights resident) to
    #             remove the remaining bf16 activation round-trip through HBM.
    B, Lq, E = q.shape
    Lk = k.shape[1]
    tq = _pick_seq_tile(Lq)
    tk = _pick_seq_tile(Lk)
    scale = 1.0 / math.sqrt(E // n_heads)
    grid = (B, Lq // tq, Lk // tk)

    in_specs = [
        pl.BlockSpec((1, tq, E), lambda b, i, j: (b, i, 0)),
        pl.BlockSpec((1, tk, E), lambda b, i, j: (b, j, 0)),
        pl.BlockSpec((1, tk, E), lambda b, i, j: (b, j, 0)),
        pl.BlockSpec((1, 1, tk), lambda b, i, j: (b, 0, j)),
    ]
    args = [q, k, v, kpad_bias]
    if attn_bias is not None:
        in_specs.append(pl.BlockSpec((tq, tk), lambda b, i, j: (i, j)))
        args.append(attn_bias)

    return pl.pallas_call(
        functools.partial(_flash_attn_kernel, n_heads=n_heads, scale=scale,
                          causal=causal, has_bias=attn_bias is not None),
        out_shape=jax.ShapeDtypeStruct((B, Lq, E), MXU_DT),
        grid=grid,
        in_specs=in_specs,
        out_specs=pl.BlockSpec((1, tq, E), lambda b, i, j: (b, i, 0)),
        scratch_shapes=[
            pltpu.VMEM((n_heads, tq, 1), jnp.float32),   # running max per head
            pltpu.VMEM((n_heads, tq, 1), jnp.float32),   # running denom per head
            pltpu.VMEM((tq, E), jnp.float32),            # output accumulator
        ],
        compiler_params=_cparams("parallel", "parallel", "arbitrary"),
    )(*args)


# ----------------------------- model glue ---------------------------------- #

def encoder_layer(x, p, n_heads, kpad_bias, attn_bias):
    # x: (B, S, E) — post-norm nn.TransformerEncoderLayer, dropout = 0
    B, S, E = x.shape
    xf = x.reshape(B * S, E)
    q, k, v = split_linear(xf, p["att"]["w_qkv"], p["att"]["b_qkv"], (E, E, E))
    sa = flash_attention(q.reshape(B, S, E), k.reshape(B, S, E), v.reshape(B, S, E),
                         kpad_bias, n_heads, causal=False, attn_bias=attn_bias)
    x1 = proj_add_ln(sa.reshape(B * S, E), p["att"]["wo"], p["att"]["bo"], xf,
                     p["ln1_g"], p["ln1_b"])
    x2 = ffn_add_ln(x1, p["w1"], p["b1"], p["w2"], p["b2"], p["ln2_g"], p["ln2_b"])
    return x2.reshape(B, S, E)


def decoder_layer(x, memory, p, n_heads, tgt_kpad, mem_kpad, tgt_causal, tgt_bias):
    # x: (B, T, E), memory: (B, S, E) — post-norm nn.TransformerDecoderLayer, dropout = 0
    B, T, E = x.shape
    S = memory.shape[1]
    xf = x.reshape(B * T, E)

    q, k, v = split_linear(xf, p["self"]["w_qkv"], p["self"]["b_qkv"], (E, E, E))
    sa = flash_attention(q.reshape(B, T, E), k.reshape(B, T, E), v.reshape(B, T, E),
                         tgt_kpad, n_heads, causal=tgt_causal, attn_bias=tgt_bias)
    x1 = proj_add_ln(sa.reshape(B * T, E), p["self"]["wo"], p["self"]["bo"], xf,
                     p["ln1_g"], p["ln1_b"])

    (q2,) = split_linear(x1, p["cross"]["wq"], p["cross"]["bq"], (E,))
    mk, mv = split_linear(memory.reshape(B * S, E), p["cross"]["w_kv"], p["cross"]["b_kv"], (E, E))
    ca = flash_attention(q2.reshape(B, T, E), mk.reshape(B, S, E), mv.reshape(B, S, E),
                         mem_kpad, n_heads, causal=False)
    x2 = proj_add_ln(ca.reshape(B * T, E), p["cross"]["wo"], p["cross"]["bo"], x1,
                     p["ln2_g"], p["ln2_b"])

    x3 = ffn_add_ln(x2, p["w1"], p["b1"], p["w2"], p["b2"], p["ln3_g"], p["ln3_b"])
    return x3.reshape(B, T, E)


def make_pe_table(max_len, d_model):
    position = jnp.arange(max_len, dtype=jnp.float32)[:, None]
    div_term = jnp.exp(jnp.arange(0, d_model, 2, dtype=jnp.float32)
                       * (-math.log(10000.0) / d_model))
    pe = jnp.zeros((max_len, d_model), dtype=jnp.float32)
    pe = pe.at[:, 0::2].set(jnp.sin(position * div_term))
    pe = pe.at[:, 1::2].set(jnp.cos(position * div_term))
    return pe  # (max_len, d_model)


def init_params(key, src_v, label_v, d_model, n_layers, n_heads, dim_ff):
    E = d_model
    v_pad = _round_up(label_v, 128)

    def uni(k, shape, scale=0.1, dtype=MXU_DT):
        return jax.random.uniform(k, shape, jnp.float32, -scale, scale).astype(dtype)

    def mha_self(k):
        k1, k2 = jax.random.split(k)
        return {"w_qkv": uni(k1, (E, 3 * E)), "b_qkv": jnp.zeros((1, 3 * E), jnp.float32),
                "wo": uni(k2, (E, E)), "bo": jnp.zeros((1, E), jnp.float32)}

    def mha_cross(k):
        k1, k2, k3 = jax.random.split(k, 3)
        return {"wq": uni(k1, (E, E)), "bq": jnp.zeros((1, E), jnp.float32),
                "w_kv": uni(k2, (E, 2 * E)), "b_kv": jnp.zeros((1, 2 * E), jnp.float32),
                "wo": uni(k3, (E, E)), "bo": jnp.zeros((1, E), jnp.float32)}

    def ffn(k):
        k1, k2 = jax.random.split(k)
        return {"w1": uni(k1, (E, dim_ff)), "b1": jnp.zeros((1, dim_ff), jnp.float32),
                "w2": uni(k2, (dim_ff, E)), "b2": jnp.zeros((1, E), jnp.float32)}

    def ln():
        return jnp.ones((1, E), jnp.float32), jnp.zeros((1, E), jnp.float32)

    k_enc_emb, k_dec_emb, k_out, k_layers = jax.random.split(key, 4)
    lkeys = jax.random.split(k_layers, 2 * n_layers)

    enc_layers = []
    for i in range(n_layers):
        ka, kb = jax.random.split(lkeys[i], 2)
        g1, b1 = ln(); g2, b2 = ln()
        enc_layers.append({"att": mha_self(ka), **ffn(kb),
                           "ln1_g": g1, "ln1_b": b1, "ln2_g": g2, "ln2_b": b2})

    dec_layers = []
    for i in range(n_layers):
        ka, kb, kc = jax.random.split(lkeys[n_layers + i], 3)
        g1, b1 = ln(); g2, b2 = ln(); g3, b3 = ln()
        dec_layers.append({"self": mha_self(ka), "cross": mha_cross(kb), **ffn(kc),
                           "ln1_g": g1, "ln1_b": b1, "ln2_g": g2, "ln2_b": b2,
                           "ln3_g": g3, "ln3_b": b3})

    # vocab head padded to a lane-dense multiple of 128; padded columns are zero, sliced off later
    w_out = jnp.zeros((E, v_pad), MXU_DT).at[:, :label_v].set(uni(k_out, (E, label_v)))
    b_out = jnp.zeros((1, v_pad), jnp.float32)

    return {
        "enc": {"embedding": uni(k_enc_emb, (src_v, E), dtype=jnp.float32), "layers": enc_layers},
        "dec": {"embedding": uni(k_dec_emb, (label_v, E), dtype=jnp.float32), "layers": dec_layers},
        "pe": make_pe_table(2000, E),
        "w_out": w_out,
        "b_out": b_out,
    }


def transformer_forward(params, src_ids, tgt_ids, src_mask, tgt_mask,
                        src_key_padding_mask, tgt_key_padding_mask,
                        memory_key_padding_mask, *, d_model, n_heads, label_v,
                        assume_src_unmasked=True, assume_tgt_causal=True):
    """src_ids: (S, B) int; tgt_ids: (T, B) int (PyTorch seq-major interface).
    src_mask: (S, S); tgt_mask: (T, T) — nonzero/True = masked.
    *_key_padding_mask: (B, L) bool — True = padded key position.
    assume_src_unmasked / assume_tgt_causal are static flags (checked against the concrete masks
    outside jit) that let the kernels skip the (L, L) bias DMA and build causality in-kernel.
    Returns logits (T, B, label_v)."""
    S, B = src_ids.shape
    T = tgt_ids.shape[0]
    E = d_model
    sqrt_e = math.sqrt(E)

    src_kpad = jnp.where(src_key_padding_mask, NEG_INF, 0.0).astype(jnp.float32)[:, None, :]
    tgt_kpad = jnp.where(tgt_key_padding_mask, NEG_INF, 0.0).astype(jnp.float32)[:, None, :]
    mem_kpad = jnp.where(memory_key_padding_mask, NEG_INF, 0.0).astype(jnp.float32)[:, None, :]

    src_bias = None if assume_src_unmasked else \
        jnp.where(src_mask.astype(bool), NEG_INF, 0.0).astype(jnp.float32)
    if assume_tgt_causal:
        tgt_bias, tgt_causal = None, True
    else:
        tgt_bias = jnp.where(tgt_mask.astype(bool), NEG_INF, 0.0).astype(jnp.float32)
        tgt_causal = False

    # TODO(synk): embedding gather + scale + positional add left in plain JAX
    #             (it fuses with the gather; dropout p=0 is the identity).
    x = jnp.take(params["enc"]["embedding"], src_ids.T, axis=0) * sqrt_e \
        + params["pe"][:S][None, :, :]                                                # (B, S, E)
    for lp in params["enc"]["layers"]:
        x = encoder_layer(x, lp, n_heads, src_kpad, src_bias)
    memory = x                                                                        # (B, S, E)

    y = jnp.take(params["dec"]["embedding"], tgt_ids.T, axis=0) * sqrt_e \
        + params["pe"][:T][None, :, :]                                                # (B, T, E)
    for lp in params["dec"]["layers"]:
        y = decoder_layer(y, memory, lp, n_heads, tgt_kpad, mem_kpad, tgt_causal, tgt_bias)

    logits = linear(y.reshape(B * T, E), params["w_out"], params["b_out"],
                    out_dtype=jnp.float32)
    logits = logits[:, :label_v]                                                      # un-pad vocab
    return logits.reshape(B, T, label_v).transpose(1, 0, 2)                           # (T, B, V)


# ----------------------------- main ----------------------------------------- #

if __name__ == "__main__":
    SRC_V, LABEL_V = 50, 60
    D_MODEL, N_LAYERS, N_HEADS = 32, 2, 4
    DIM_FF = 2048                       # PyTorch TransformerEncoder/DecoderLayer default
    S, T, B = 8, 8, 2

    root = jax.random.PRNGKey(0)
    k_param, k_src, k_tgt = jax.random.split(root, 3)

    params = init_params(k_param, SRC_V, LABEL_V, D_MODEL, N_LAYERS, N_HEADS, DIM_FF)

    src_ids = jax.random.randint(k_src, (S, B), 0, SRC_V, dtype=jnp.int32)
    tgt_ids = jax.random.randint(k_tgt, (T, B), 0, LABEL_V, dtype=jnp.int32)

    src_mask = jnp.zeros((S, S), dtype=bool)                     # no encoder attention mask
    tgt_mask = jnp.triu(jnp.ones((T, T), dtype=bool), k=1)       # causal: True above diagonal
    src_key_padding_mask = jnp.zeros((B, S), dtype=bool).at[1, -1].set(True)
    tgt_key_padding_mask = jnp.zeros((B, T), dtype=bool).at[1, -1].set(True)
    memory_key_padding_mask = src_key_padding_mask

    # Decide (outside jit, on the concrete masks) whether the (L, L) masks can be handled
    # entirely in-kernel: all-zero src mask and a standard causal tgt mask. Otherwise the
    # general explicit-bias path is used and semantics are unchanged.
    src_unmasked = not bool(np.asarray(src_mask).any())
    tgt_causal = bool(np.array_equal(np.asarray(tgt_mask).astype(bool),
                                     np.triu(np.ones((T, T), dtype=bool), k=1)))

    fwd = jax.jit(functools.partial(transformer_forward,
                                    d_model=D_MODEL, n_heads=N_HEADS, label_v=LABEL_V,
                                    assume_src_unmasked=src_unmasked,
                                    assume_tgt_causal=tgt_causal))
    out = fwd(params, src_ids, tgt_ids, src_mask, tgt_mask,
              src_key_padding_mask, tgt_key_padding_mask, memory_key_padding_mask)
    out = jax.block_until_ready(out)

    assert out.shape == (T, B, LABEL_V), out.shape
    assert bool(jnp.all(jnp.isfinite(out)))
    print("KERNEL_OK")
</pallas_src>

<mosaic_0001>
module attributes {stable_mosaic.version = 11 : i64} {
  func.func @_split_linear_kernel(%arg0: i32, %arg1: memref<16x32xf32, #tpu.memory_space<vmem>>, %arg2: memref<32x96xbf16, #tpu.memory_space<vmem>>, %arg3: memref<1x96xf32, #tpu.memory_space<vmem>>, %arg4: memref<16x32xbf16, #tpu.memory_space<vmem>>, %arg5: memref<16x32xbf16, #tpu.memory_space<vmem>>, %arg6: memref<16x32xbf16, #tpu.memory_space<vmem>>) attributes {dimension_semantics = [#tpu.dimension_semantics<parallel>], iteration_bounds = array<i64: 1>, scalar_prefetch = 0 : i64, scratch_operands = 0 : i64, tpu.core_type = #tpu.core_type<tc>, window_params = [{transform_indices = @transform_0, window_bounds = array<i64: 16, 32>}, {pipeline_mode = #tpu.pipeline_mode<synchronous>, transform_indices = @transform_1, window_bounds = array<i64: 32, 96>}, {pipeline_mode = #tpu.pipeline_mode<synchronous>, transform_indices = @transform_2, window_bounds = array<i64: 1, 96>}, {transform_indices = @transform_3, window_bounds = array<i64: 16, 32>}, {transform_indices = @transform_4, window_bounds = array<i64: 16, 32>}, {transform_indices = @transform_5, window_bounds = array<i64: 16, 32>}]} {
    %c0 = arith.constant 0 : index
    %c0_0 = arith.constant 0 : index
    %0 = vector.load %arg1[%c0, %c0_0] : memref<16x32xf32, #tpu.memory_space<vmem>>, vector<16x32xf32>
    %1 = arith.truncf %0 : vector<16x32xf32> to vector<16x32xbf16>
    %c0_1 = arith.constant 0 : index
    %c0_2 = arith.constant 0 : index
    %2 = vector.load %arg2[%c0_1, %c0_2] : memref<32x96xbf16, #tpu.memory_space<vmem>>, vector<32x96xbf16>
    %cst = arith.constant dense<0.000000e+00> : vector<16x96xf32>
    %3 = tpu.matmul %1, %2, %cst {dimension_numbers = #tpu.dot_dimension_numbers<[1], [0], [0], [1], [0, 0, 1, 1], [], []>} : vector<16x32xbf16>, vector<32x96xbf16>, vector<16x96xf32> -> vector<16x96xf32>
    %c0_3 = arith.constant 0 : index
    %c0_4 = arith.constant 0 : index
    %4 = vector.load %arg3[%c0_3, %c0_4] : memref<1x96xf32, #tpu.memory_space<vmem>>, vector<1x96xf32>
    %5 = vector.broadcast %4 : vector<1x96xf32> to vector<16x96xf32>
    %6 = arith.addf %3, %5 : vector<16x96xf32>
    %7 = vector.extract_strided_slice %6 {offsets = [0, 0], sizes = [16, 32], strides = [1, 1]} : vector<16x96xf32> to vector<16x32xf32>
    %8 = arith.truncf %7 : vector<16x32xf32> to vector<16x32xbf16>
    %c0_5 = arith.constant 0 : index
    %c0_6 = arith.constant 0 : index
    %9 = vector.load %arg4[%c0_5, %c0_6] : memref<16x32xbf16, #tpu.memory_space<vmem>>, vector<16x32xbf16>
    tpu.vector_store %arg4[%c0_5, %c0_6], %8 {strides = array<i32>} : memref<16x32xbf16, #tpu.memory_space<vmem>>, vector<16x32xbf16>,
    %10 = vector.extract_strided_slice %6 {offsets = [0, 32], sizes = [16, 32], strides = [1, 1]} : vector<16x96xf32> to vector<16x32xf32>
    %11 = arith.truncf %10 : vector<16x32xf32> to vector<16x32xbf16>
    %c0_7 = arith.constant 0 : index
    %c0_8 = arith.constant 0 : index
    %12 = vector.load %arg5[%c0_7, %c0_8] : memref<16x32xbf16, #tpu.memory_space<vmem>>, vector<16x32xbf16>
    tpu.vector_store %arg5[%c0_7, %c0_8], %11 {strides = array<i32>} : memref<16x32xbf16, #tpu.memory_space<vmem>>, vector<16x32xbf16>,
    %13 = vector.extract_strided_slice %6 {offsets = [0, 64], sizes = [16, 32], strides = [1, 1]} : vector<16x96xf32> to vector<16x32xf32>
    %14 = arith.truncf %13 : vector<16x32xf32> to vector<16x32xbf16>
    %c0_9 = arith.constant 0 : index
    %c0_10 = arith.constant 0 : index
    %15 = vector.load %arg6[%c0_9, %c0_10] : memref<16x32xbf16, #tpu.memory_space<vmem>>, vector<16x32xbf16>
    tpu.vector_store %arg6[%c0_9, %c0_10], %14 {strides = array<i32>} : memref<16x32xbf16, #tpu.memory_space<vmem>>, vector<16x32xbf16>,
    return
  }
  func.func @transform_0(%arg0: i32) -> (i32, i32) {
    %c0_i32 = arith.constant 0 : i32
    %c0_i32_0 = arith.constant 0 : i32
    return %arg0, %c0_i32 : i32, i32
  }
  func.func @transform_1(%arg0: i32) -> (i32, i32) {
    %c0_i32 = arith.constant 0 : i32
    %c0_i32_0 = arith.constant 0 : i32
    %c0_i32_1 = arith.constant 0 : i32
    return %c0_i32, %c0_i32_0 : i32, i32
  }
  func.func @transform_2(%arg0: i32) -> (i32, i32) {
    %c0_i32 = arith.constant 0 : i32
    %c0_i32_0 = arith.constant 0 : i32
    %c0_i32_1 = arith.constant 0 : i32
    return %c0_i32, %c0_i32_0 : i32, i32
  }
  func.func @transform_3(%arg0: i32) -> (i32, i32) {
    %c0_i32 = arith.constant 0 : i32
    %c0_i32_0 = arith.constant 0 : i32
    return %arg0, %c0_i32 : i32, i32
  }
  func.func @transform_4(%arg0: i32) -> (i32, i32) {
    %c0_i32 = arith.constant 0 : i32
    %c0_i32_0 = arith.constant 0 : i32
    return %arg0, %c0_i32 : i32, i32
  }
  func.func @transform_5(%arg0: i32) -> (i32, i32) {
    %c0_i32 = arith.constant 0 : i32
    %c0_i32_0 = arith.constant 0 : i32
    return %arg0, %c0_i32 : i32, i32
  }
}

module attributes {stable_mosaic.version = 11 : i64} {
  func.func @_proj_add_ln_kernel(%arg0: i32, %arg1: memref<16x32xbf16, #tpu.memory_space<vmem>>, %arg2: memref<32x32xbf16, #tpu.memory_space<vmem>>, %arg3: memref<1x32xf32, #tpu.memory_space<vmem>>, %arg4: memref<16x32xf32, #tpu.memory_space<vmem>>, %arg5: memref<1x32xf32, #tpu.memory_space<vmem>>, %arg6: memref<1x32xf32, #tpu.memory_space<vmem>>, %arg7: memref<16x32xf32, #tpu.memory_space<vmem>>) attributes {dimension_semantics = [#tpu.dimension_semantics<parallel>], iteration_bounds = array<i64: 1>, scalar_prefetch = 0 : i64, scratch_operands = 0 : i64, tpu.core_type = #tpu.core_type<tc>, window_params = [{transform_indices = @transform_0, window_bounds = array<i64: 16, 32>}, {pipeline_mode = #tpu.pipeline_mode<synchronous>, transform_indices = @transform_1, window_bounds = array<i64: 32, 32>}, {pipeline_mode = #tpu.pipeline_mode<synchronous>, transform_indices = @transform_2, window_bounds = array<i64: 1, 32>}, {transform_indices = @transform_3, window_bounds = array<i64: 16, 32>}, {pipeline_mode = #tpu.pipeline_mode<synchronous>, transform_indices = @transform_4, window_bounds = array<i64: 1, 32>}, {pipeline_mode = #tpu.pipeline_mode<synchronous>, transform_indices = @transform_5, window_bounds = array<i64: 1, 32>}, {transform_indices = @transform_6, window_bounds = array<i64: 16, 32>}]} {
    %c0 = arith.constant 0 : index
    %c0_0 = arith.constant 0 : index
    %0 = vector.load %arg1[%c0, %c0_0] : memref<16x32xbf16, #tpu.memory_space<vmem>>, vector<16x32xbf16>
    %c0_1 = arith.constant 0 : index
    %c0_2 = arith.constant 0 : index
    %1 = vector.load %arg2[%c0_1, %c0_2] : memref<32x32xbf16, #tpu.memory_space<vmem>>, vector<32x32xbf16>
    %cst = arith.constant dense<0.000000e+00> : vector<16x32xf32>
    %2 = tpu.matmul %0, %1, %cst {dimension_numbers = #tpu.dot_dimension_numbers<[1], [0], [0], [1], [0, 0, 1, 1], [], []>} : vector<16x32xbf16>, vector<32x32xbf16>, vector<16x32xf32> -> vector<16x32xf32>
    %c0_3 = arith.constant 0 : index
    %c0_4 = arith.constant 0 : index
    %3 = vector.load %arg3[%c0_3, %c0_4] : memref<1x32xf32, #tpu.memory_space<vmem>>, vector<1x32xf32>
    %4 = vector.broadcast %3 : vector<1x32xf32> to vector<16x32xf32>
    %5 = arith.addf %2, %4 : vector<16x32xf32>
    %c0_5 = arith.constant 0 : index
    %c0_6 = arith.constant 0 : index
    %6 = vector.load %arg4[%c0_5, %c0_6] : memref<16x32xf32, #tpu.memory_space<vmem>>, vector<16x32xf32>
    %7 = arith.addf %5, %6 : vector<16x32xf32>
    %cst_7 = arith.constant dense<0.000000e+00> : vector<16xf32>
    %8 = vector.multi_reduction <add>, %7, %cst_7 [1] : vector<16x32xf32> to vector<16xf32>
    %9 = vector.shape_cast %8 : vector<16xf32> to vector<16x1xf32>
    %cst_8 = arith.constant 3.200000e+01 : f32
    %10 = vector.broadcast %cst_8 : f32 to vector<16x1xf32>
    %11 = arith.divf %9, %10 : vector<16x1xf32>
    %12 = vector.broadcast %11 : vector<16x1xf32> to vector<16x32xf32>
    %13 = arith.subf %7, %12 : vector<16x32xf32>
    %14 = arith.mulf %13, %13 : vector<16x32xf32>
    %cst_9 = arith.constant dense<0.000000e+00> : vector<16xf32>
    %15 = vector.multi_reduction <add>, %14, %cst_9 [1] : vector<16x32xf32> to vector<16xf32>
    %16 = vector.shape_cast %15 : vector<16xf32> to vector<16x1xf32>
    %cst_10 = arith.constant 3.200000e+01 : f32
    %17 = vector.broadcast %cst_10 : f32 to vector<16x1xf32>
    %18 = arith.divf %16, %17 : vector<16x1xf32>
    %19 = vector.broadcast %11 : vector<16x1xf32> to vector<16x32xf32>
    %20 = arith.subf %7, %19 : vector<16x32xf32>
    %cst_11 = arith.constant 9.99999974E-6 : f32
    %21 = vector.broadcast %cst_11 : f32 to vector<16x1xf32>
    %22 = arith.addf %18, %21 : vector<16x1xf32>
    %23 = math.rsqrt %22 : vector<16x1xf32>
    %24 = vector.broadcast %23 : vector<16x1xf32> to vector<16x32xf32>
    %25 = arith.mulf %20, %24 : vector<16x32xf32>
    %c0_12 = arith.constant 0 : index
    %c0_13 = arith.constant 0 : index
    %26 = vector.load %arg5[%c0_12, %c0_13] : memref<1x32xf32, #tpu.memory_space<vmem>>, vector<1x32xf32>
    %27 = vector.broadcast %26 : vector<1x32xf32> to vector<16x32xf32>
    %28 = arith.mulf %25, %27 : vector<16x32xf32>
    %c0_14 = arith.constant 0 : index
    %c0_15 = arith.constant 0 : index
    %29 = vector.load %arg6[%c0_14, %c0_15] : memref<1x32xf32, #tpu.memory_space<vmem>>, vector<1x32xf32>
    %30 = vector.broadcast %29 : vector<1x32xf32> to vector<16x32xf32>
    %31 = arith.addf %28, %30 : vector<16x32xf32>
    %c0_16 = arith.constant 0 : index
    %c0_17 = arith.constant 0 : index
    %32 = vector.load %arg7[%c0_16, %c0_17] : memref<16x32xf32, #tpu.memory_space<vmem>>, vector<16x32xf32>
    tpu.vector_store %arg7[%c0_16, %c0_17], %31 {strides = array<i32>} : memref<16x32xf32, #tpu.memory_space<vmem>>, vector<16x32xf32>,
    return
  }
  func.func @transform_0(%arg0: i32) -> (i32, i32) {
    %c0_i32 = arith.constant 0 : i32
    %c0_i32_0 = arith.constant 0 : i32
    return %arg0, %c0_i32 : i32, i32
  }
  func.func @transform_1(%arg0: i32) -> (i32, i32) {
    %c0_i32 = arith.constant 0 : i32
    %c0_i32_0 = arith.constant 0 : i32
    %c0_i32_1 = arith.constant 0 : i32
    return %c0_i32, %c0_i32_0 : i32, i32
  }
  func.func @transform_2(%arg0: i32) -> (i32, i32) {
    %c0_i32 = arith.constant 0 : i32
    %c0_i32_0 = arith.constant 0 : i32
    %c0_i32_1 = arith.constant 0 : i32
    return %c0_i32, %c0_i32_0 : i32, i32
  }
  func.func @transform_3(%arg0: i32) -> (i32, i32) {
    %c0_i32 = arith.constant 0 : i32
    %c0_i32_0 = arith.constant 0 : i32
    return %arg0, %c0_i32 : i32, i32
  }
  func.func @transform_4(%arg0: i32) -> (i32, i32) {
    %c0_i32 = arith.constant 0 : i32
    %c0_i32_0 = arith.constant 0 : i32
    %c0_i32_1 = arith.constant 0 : i32
    return %c0_i32, %c0_i32_0 : i32, i32
  }
  func.func @transform_5(%arg0: i32) -> (i32, i32) {
    %c0_i32 = arith.constant 0 : i32
    %c0_i32_0 = arith.constant 0 : i32
    %c0_i32_1 = arith.constant 0 : i32
    return %c0_i32, %c0_i32_0 : i32, i32
  }
  func.func @transform_6(%arg0: i32) -> (i32, i32) {
    %c0_i32 = arith.constant 0 : i32
    %c0_i32_0 = arith.constant 0 : i32
    return %arg0, %c0_i32 : i32, i32
  }
}

module attributes {stable_mosaic.version = 11 : i64} {
  func.func @_flash_attn_kernel(%arg0: i32, %arg1: i32, %arg2: i32, %arg3: memref<1x8x32xbf16, #tpu.memory_space<vmem>>, %arg4: memref<1x8x32xbf16, #tpu.memory_space<vmem>>, %arg5: memref<1x8x32xbf16, #tpu.memory_space<vmem>>, %arg6: memref<1x1x8xf32, #tpu.memory_space<vmem>>, %arg7: memref<1x8x32xbf16, #tpu.memory_space<vmem>>, %arg8: memref<4x8x1xf32, #tpu.memory_space<vmem>>, %arg9: memref<4x8x1xf32, #tpu.memory_space<vmem>>, %arg10: memref<8x32xf32, #tpu.memory_space<vmem>>) attributes {dimension_semantics = [#tpu.dimension_semantics<parallel>, #tpu.dimension_semantics<parallel>, #tpu.dimension_semantics<arbitrary>], iteration_bounds = array<i64: 2, 1, 1>, scalar_prefetch = 0 : i64, scratch_operands = 3 : i64, tpu.core_type = #tpu.core_type<tc>, window_params = [{transform_indices = @transform_0, window_bounds = array<i64: 1, 8, 32>}, {transform_indices = @transform_1, window_bounds = array<i64: 1, 8, 32>}, {transform_indices = @transform_2, window_bounds = array<i64: 1, 8, 32>}, {transform_indices = @transform_3, window_bounds = array<i64: 1, 1, 8>}, {transform_indices = @transform_4, window_bounds = array<i64: 1, 8, 32>}]} {
    %c0_i32 = arith.constant 0 : i32
    %0 = arith.cmpi eq, %arg2, %c0_i32 : i32
    %1 = arith.extui %0 : i1 to i32
    %c0_i32_0 = arith.constant 0 : i32
    %2 = arith.cmpi ne, %1, %c0_i32_0 : i32
    scf.if %2 {
      %cst_91 = arith.constant -1.000000e+30 : f32
      %160 = vector.broadcast %cst_91 : f32 to vector<4x8x1xf32>
      %c0_92 = arith.constant 0 : index
      %c0_93 = arith.constant 0 : index
      %c0_94 = arith.constant 0 : index
      %161 = vector.load %arg8[%c0_92, %c0_93, %c0_94] : memref<4x8x1xf32, #tpu.memory_space<vmem>>, vector<4x8x1xf32>
      tpu.vector_store %arg8[%c0_92, %c0_93, %c0_94], %160 {strides = array<i32>} : memref<4x8x1xf32, #tpu.memory_space<vmem>>, vector<4x8x1xf32>,
      %cst_95 = arith.constant 0.000000e+00 : f32
      %162 = vector.broadcast %cst_95 : f32 to vector<4x8x1xf32>
      %c0_96 = arith.constant 0 : index
      %c0_97 = arith.constant 0 : index
      %c0_98 = arith.constant 0 : index
      %163 = vector.load %arg9[%c0_96, %c0_97, %c0_98] : memref<4x8x1xf32, #tpu.memory_space<vmem>>, vector<4x8x1xf32>
      tpu.vector_store %arg9[%c0_96, %c0_97, %c0_98], %162 {strides = array<i32>} : memref<4x8x1xf32, #tpu.memory_space<vmem>>, vector<4x8x1xf32>,
      %cst_99 = arith.constant 0.000000e+00 : f32
      %164 = vector.broadcast %cst_99 : f32 to vector<8x32xf32>
      %c0_100 = arith.constant 0 : index
      %c0_101 = arith.constant 0 : index
      %165 = vector.load %arg10[%c0_100, %c0_101] : memref<8x32xf32, #tpu.memory_space<vmem>>, vector<8x32xf32>
      tpu.vector_store %arg10[%c0_100, %c0_101], %164 {strides = array<i32>} : memref<8x32xf32, #tpu.memory_space<vmem>>, vector<8x32xf32>,
    } else {
    }
    %c0 = arith.constant 0 : index
    %c0_1 = arith.constant 0 : index
    %c0_2 = arith.constant 0 : index
    %3 = vector.load %arg3[%c0, %c0_1, %c0_2] : memref<1x8x32xbf16, #tpu.memory_space<vmem>>, vector<1x8x32xbf16>
    %4 = vector.shape_cast %3 : vector<1x8x32xbf16> to vector<8x32xbf16>
    %c0_3 = arith.constant 0 : index
    %c0_4 = arith.constant 0 : index
    %c0_5 = arith.constant 0 : index
    %5 = vector.load %arg4[%c0_3, %c0_4, %c0_5] : memref<1x8x32xbf16, #tpu.memory_space<vmem>>, vector<1x8x32xbf16>
    %6 = vector.shape_cast %5 : vector<1x8x32xbf16> to vector<8x32xbf16>
    %c0_6 = arith.constant 0 : index
    %c0_7 = arith.constant 0 : index
    %c0_8 = arith.constant 0 : index
    %7 = vector.load %arg5[%c0_6, %c0_7, %c0_8] : memref<1x8x32xbf16, #tpu.memory_space<vmem>>, vector<1x8x32xbf16>
    %8 = vector.shape_cast %7 : vector<1x8x32xbf16> to vector<8x32xbf16>
    %c0_9 = arith.constant 0 : index
    %c0_10 = arith.constant 0 : index
    %c0_11 = arith.constant 0 : index
    %9 = vector.load %arg6[%c0_9, %c0_10, %c0_11] : memref<1x1x8xf32, #tpu.memory_space<vmem>>, vector<1x1x8xf32>
    %10 = vector.shape_cast %9 : vector<1x1x8xf32> to vector<1x8xf32>
    %11 = vector.shape_cast %10 : vector<1x8xf32> to vector<1x8xf32>
    %12 = vector.broadcast %11 : vector<1x8xf32> to vector<8x8xf32>
    %13 = vector.extract_strided_slice %4 {offsets = [0, 0], sizes = [8, 8], strides = [1, 1]} : vector<8x32xbf16> to vector<8x8xbf16>
    %14 = vector.extract_strided_slice %6 {offsets = [0, 0], sizes = [8, 8], strides = [1, 1]} : vector<8x32xbf16> to vector<8x8xbf16>
    %cst = arith.constant dense<0.000000e+00> : vector<8x8xf32>
    %15 = tpu.matmul %13, %14, %cst {dimension_numbers = #tpu.dot_dimension_numbers<[1], [1], [0], [0], [0, 0, 1, 0], [], []>} : vector<8x8xbf16>, vector<8x8xbf16>, vector<8x8xf32> -> vector<8x8xf32>
    %cst_12 = arith.constant 0.353553385 : f32
    %16 = vector.broadcast %cst_12 : f32 to vector<8x8xf32>
    %17 = arith.mulf %15, %16 : vector<8x8xf32>
    %18 = arith.addf %17, %12 : vector<8x8xf32>
    %c0_13 = arith.constant 0 : index
    %c0_14 = arith.constant 0 : index
    %c0_15 = arith.constant 0 : index
    %19 = vector.load %arg8[%c0_13, %c0_14, %c0_15] : memref<4x8x1xf32, #tpu.memory_space<vmem>>, vector<1x8x1xf32>
    %20 = vector.shape_cast %19 : vector<1x8x1xf32> to vector<8x1xf32>
    %cst_16 = arith.constant dense<0xFF800000> : vector<8xf32>
    %21 = vector.multi_reduction <maximumf>, %18, %cst_16 [1] : vector<8x8xf32> to vector<8xf32>
    %22 = vector.shape_cast %21 : vector<8xf32> to vector<8x1xf32>
    %23 = arith.maximumf %20, %22 : vector<8x1xf32>
    %24 = arith.subf %20, %23 : vector<8x1xf32>
    %25 = math.exp %24 : vector<8x1xf32>
    %26 = vector.broadcast %23 : vector<8x1xf32> to vector<8x8xf32>
    %27 = arith.subf %18, %26 : vector<8x8xf32>
    %28 = math.exp %27 : vector<8x8xf32>
    %c0_17 = arith.constant 0 : index
    %c0_18 = arith.constant 0 : index
    %c0_19 = arith.constant 0 : index
    %29 = vector.load %arg9[%c0_17, %c0_18, %c0_19] : memref<4x8x1xf32, #tpu.memory_space<vmem>>, vector<1x8x1xf32>
    %30 = vector.shape_cast %29 : vector<1x8x1xf32> to vector<8x1xf32>
    %31 = arith.mulf %25, %30 : vector<8x1xf32>
    %cst_20 = arith.constant dense<0.000000e+00> : vector<8xf32>
    %32 = vector.multi_reduction <add>, %28, %cst_20 [1] : vector<8x8xf32> to vector<8xf32>
    %33 = vector.shape_cast %32 : vector<8xf32> to vector<8x1xf32>
    %34 = arith.addf %31, %33 : vector<8x1xf32>
    %c0_21 = arith.constant 0 : index
    %c0_22 = arith.constant 0 : index
    %c0_23 = arith.constant 0 : index
    %35 = vector.load %arg9[%c0_21, %c0_22, %c0_23] : memref<4x8x1xf32, #tpu.memory_space<vmem>>, vector<1x8x1xf32>
    %36 = vector.shape_cast %35 : vector<1x8x1xf32> to vector<8x1xf32>
    %37 = vector.shape_cast %34 : vector<8x1xf32> to vector<1x8x1xf32>
    tpu.vector_store %arg9[%c0_21, %c0_22, %c0_23], %37 {strides = array<i32>} : memref<4x8x1xf32, #tpu.memory_space<vmem>>, vector<1x8x1xf32>,
    %c0_24 = arith.constant 0 : index
    %c0_25 = arith.constant 0 : index
    %38 = vector.load %arg10[%c0_24, %c0_25] : memref<8x32xf32, #tpu.memory_space<vmem>>, vector<8x8xf32>
    %39 = vector.broadcast %25 : vector<8x1xf32> to vector<8x8xf32>
    %40 = arith.mulf %39, %38 : vector<8x8xf32>
    %41 = arith.truncf %28 : vector<8x8xf32> to vector<8x8xbf16>
    %42 = vector.extract_strided_slice %8 {offsets = [0, 0], sizes = [8, 8], strides = [1, 1]} : vector<8x32xbf16> to vector<8x8xbf16>
    %cst_26 = arith.constant dense<0.000000e+00> : vector<8x8xf32>
    %43 = tpu.matmul %41, %42, %cst_26 {dimension_numbers = #tpu.dot_dimension_numbers<[1], [0], [0], [1], [0, 0, 1, 1], [], []>} : vector<8x8xbf16>, vector<8x8xbf16>, vector<8x8xf32> -> vector<8x8xf32>
    %44 = arith.addf %40, %43 : vector<8x8xf32>
    %c0_27 = arith.constant 0 : index
    %c0_28 = arith.constant 0 : index
    %45 = vector.load %arg10[%c0_27, %c0_28] : memref<8x32xf32, #tpu.memory_space<vmem>>, vector<8x8xf32>
    tpu.vector_store %arg10[%c0_27, %c0_28], %44 {strides = array<i32>} : memref<8x32xf32, #tpu.memory_space<vmem>>, vector<8x8xf32>,
    %c0_29 = arith.constant 0 : index
    %c0_30 = arith.constant 0 : index
    %c0_31 = arith.constant 0 : index
    %46 = vector.load %arg8[%c0_29, %c0_30, %c0_31] : memref<4x8x1xf32, #tpu.memory_space<vmem>>, vector<1x8x1xf32>
    %47 = vector.shape_cast %46 : vector<1x8x1xf32> to vector<8x1xf32>
    %48 = vector.shape_cast %23 : vector<8x1xf32> to vector<1x8x1xf32>
    tpu.vector_store %arg8[%c0_29, %c0_30, %c0_31], %48 {strides = array<i32>} : memref<4x8x1xf32, #tpu.memory_space<vmem>>, vector<1x8x1xf32>,
    %49 = vector.extract_strided_slice %4 {offsets = [0, 8], sizes = [8, 8], strides = [1, 1]} : vector<8x32xbf16> to vector<8x8xbf16>
    %50 = vector.extract_strided_slice %6 {offsets = [0, 8], sizes = [8, 8], strides = [1, 1]} : vector<8x32xbf16> to vector<8x8xbf16>
    %cst_32 = arith.constant dense<0.000000e+00> : vector<8x8xf32>
    %51 = tpu.matmul %49, %50, %cst_32 {dimension_numbers = #tpu.dot_dimension_numbers<[1], [1], [0], [0], [0, 0, 1, 0], [], []>} : vector<8x8xbf16>, vector<8x8xbf16>, vector<8x8xf32> -> vector<8x8xf32>
    %cst_33 = arith.constant 0.353553385 : f32
    %52 = vector.broadcast %cst_33 : f32 to vector<8x8xf32>
    %53 = arith.mulf %51, %52 : vector<8x8xf32>
    %54 = arith.addf %53, %12 : vector<8x8xf32>
    %c1 = arith.constant 1 : index
    %c0_34 = arith.constant 0 : index
    %c0_35 = arith.constant 0 : index
    %55 = vector.load %arg8[%c1, %c0_34, %c0_35] : memref<4x8x1xf32, #tpu.memory_space<vmem>>, vector<1x8x1xf32>
    %56 = vector.shape_cast %55 : vector<1x8x1xf32> to vector<8x1xf32>
    %cst_36 = arith.constant dense<0xFF800000> : vector<8xf32>
    %57 = vector.multi_reduction <maximumf>, %54, %cst_36 [1] : vector<8x8xf32> to vector<8xf32>
    %58 = vector.shape_cast %57 : vector<8xf32> to vector<8x1xf32>
    %59 = arith.maximumf %56, %58 : vector<8x1xf32>
    %60 = arith.subf %56, %59 : vector<8x1xf32>
    %61 = math.exp %60 : vector<8x1xf32>
    %62 = vector.broadcast %59 : vector<8x1xf32> to vector<8x8xf32>
    %63 = arith.subf %54, %62 : vector<8x8xf32>
    %64 = math.exp %63 : vector<8x8xf32>
    %c1_37 = arith.constant 1 : index
    %c0_38 = arith.constant 0 : index
    %c0_39 = arith.constant 0 : index
    %65 = vector.load %arg9[%c1_37, %c0_38, %c0_39] : memref<4x8x1xf32, #tpu.memory_space<vmem>>, vector<1x8x1xf32>
    %66 = vector.shape_cast %65 : vector<1x8x1xf32> to vector<8x1xf32>
    %67 = arith.mulf %61, %66 : vector<8x1xf32>
    %cst_40 = arith.constant dense<0.000000e+00> : vector<8xf32>
    %68 = vector.multi_reduction <add>, %64, %cst_40 [1] : vector<8x8xf32> to vector<8xf32>
    %69 = vector.shape_cast %68 : vector<8xf32> to vector<8x1xf32>
    %70 = arith.addf %67, %69 : vector<8x1xf32>
    %c1_41 = arith.constant 1 : index
    %c0_42 = arith.constant 0 : index
    %c0_43 = arith.constant 0 : index
    %71 = vector.load %arg9[%c1_41, %c0_42, %c0_43] : memref<4x8x1xf32, #tpu.memory_space<vmem>>, vector<1x8x1xf32>
    %72 = vector.shape_cast %71 : vector<1x8x1xf32> to vector<8x1xf32>
    %73 = vector.shape_cast %70 : vector<8x1xf32> to vector<1x8x1xf32>
    tpu.vector_store %arg9[%c1_41, %c0_42, %c0_43], %73 {strides = array<i32>} : memref<4x8x1xf32, #tpu.memory_space<vmem>>, vector<1x8x1xf32>,
    %c0_44 = arith.constant 0 : index
    %c8 = arith.constant 8 : index
    %74 = vector.load %arg10[%c0_44, %c8] : memref<8x32xf32, #tpu.memory_space<vmem>>, vector<8x8xf32>
    %75 = vector.broadcast %61 : vector<8x1xf32> to vector<8x8xf32>
    %76 = arith.mulf %75, %74 : vector<8x8xf32>
    %77 = arith.truncf %64 : vector<8x8xf32> to vector<8x8xbf16>
    %78 = vector.extract_strided_slice %8 {offsets = [0, 8], sizes = [8, 8], strides = [1, 1]} : vector<8x32xbf16> to vector<8x8xbf16>
    %cst_45 = arith.constant dense<0.000000e+00> : vector<8x8xf32>
    %79 = tpu.matmul %77, %78, %cst_45 {dimension_numbers = #tpu.dot_dimension_numbers<[1], [0], [0], [1], [0, 0, 1, 1], [], []>} : vector<8x8xbf16>, vector<8x8xbf16>, vector<8x8xf32> -> vector<8x8xf32>
    %80 = arith.addf %76, %79 : vector<8x8xf32>
    %c0_46 = arith.constant 0 : index
    %c8_47 = arith.constant 8 : index
    %81 = vector.load %arg10[%c0_46, %c8_47] : memref<8x32xf32, #tpu.memory_space<vmem>>, vector<8x8xf32>
    tpu.vector_store %arg10[%c0_46, %c8_47], %80 {strides = array<i32>} : memref<8x32xf32, #tpu.memory_space<vmem>>, vector<8x8xf32>,
    %c1_48 = arith.constant 1 : index
    %c0_49 = arith.constant 0 : index
    %c0_50 = arith.constant 0 : index
    %82 = vector.load %arg8[%c1_48, %c0_49, %c0_50] : memref<4x8x1xf32, #tpu.memory_space<vmem>>, vector<1x8x1xf32>
    %83 = vector.shape_cast %82 : vector<1x8x1xf32> to vector<8x1xf32>
    %84 = vector.shape_cast %59 : vector<8x1xf32> to vector<1x8x1xf32>
    tpu.vector_store %arg8[%c1_48, %c0_49, %c0_50], %84 {strides = array<i32>} : memref<4x8x1xf32, #tpu.memory_space<vmem>>, vector<1x8x1xf32>,
    %85 = vector.extract_strided_slice %4 {offsets = [0, 16], sizes = [8, 8], strides = [1, 1]} : vector<8x32xbf16> to vector<8x8xbf16>
    %86 = vector.extract_strided_slice %6 {offsets = [0, 16], sizes = [8, 8], strides = [1, 1]} : vector<8x32xbf16> to vector<8x8xbf16>
    %cst_51 = arith.constant dense<0.000000e+00> : vector<8x8xf32>
    %87 = tpu.matmul %85, %86, %cst_51 {dimension_numbers = #tpu.dot_dimension_numbers<[1], [1], [0], [0], [0, 0, 1, 0], [], []>} : vector<8x8xbf16>, vector<8x8xbf16>, vector<8x8xf32> -> vector<8x8xf32>
    %cst_52 = arith.constant 0.353553385 : f32
    %88 = vector.broadcast %cst_52 : f32 to vector<8x8xf32>
    %89 = arith.mulf %87, %88 : vector<8x8xf32>
    %90 = arith.addf %89, %12 : vector<8x8xf32>
    %c2 = arith.constant 2 : index
    %c0_53 = arith.constant 0 : index
    %c0_54 = arith.constant 0 : index
    %91 = vector.load %arg8[%c2, %c0_53, %c0_54] : memref<4x8x1xf32, #tpu.memory_space<vmem>>, vector<1x8x1xf32>
    %92 = vector.shape_cast %91 : vector<1x8x1xf32> to vector<8x1xf32>
    %cst_55 = arith.constant dense<0xFF800000> : vector<8xf32>
    %93 = vector.multi_reduction <maximumf>, %90, %cst_55 [1] : vector<8x8xf32> to vector<8xf32>
    %94 = vector.shape_cast %93 : vector<8xf32> to vector<8x1xf32>
    %95 = arith.maximumf %92, %94 : vector<8x1xf32>
    %96 = arith.subf %92, %95 : vector<8x1xf32>
    %97 = math.exp %96 : vector<8x1xf32>
    %98 = vector.broadcast %95 : vector<8x1xf32> to vector<8x8xf32>
    %99 = arith.subf %90, %98 : vector<8x8xf32>
    %100 = math.exp %99 : vector<8x8xf32>
    %c2_56 = arith.constant 2 : index
    %c0_57 = arith.constant 0 : index
    %c0_58 = arith.constant 0 : index
    %101 = vector.load %arg9[%c2_56, %c0_57, %c0_58] : memref<4x8x1xf32, #tpu.memory_space<vmem>>, vector<1x8x1xf32>
    %102 = vector.shape_cast %101 : vector<1x8x1xf32> to vector<8x1xf32>
    %103 = arith.mulf %97, %102 : vector<8x1xf32>
    %cst_59 = arith.constant dense<0.000000e+00> : vector<8xf32>
    %104 = vector.multi_reduction <add>, %100, %cst_59 [1] : vector<8x8xf32> to vector<8xf32>
    %105 = vector.shape_cast %104 : vector<8xf32> to vector<8x1xf32>
    %106 = arith.addf %103, %105 : vector<8x1xf32>
    %c2_60 = arith.constant 2 : index
    %c0_61 = arith.constant 0 : index
    %c0_62 = arith.constant 0 : index
    %107 = vector.load %arg9[%c2_60, %c0_61, %c0_62] : memref<4x8x1xf32, #tpu.memory_space<vmem>>, vector<1x8x1xf32>
    %108 = vector.shape_cast %107 : vector<1x8x1xf32> to vector<8x1xf32>
    %109 = vector.shape_cast %106 : vector<8x1xf32> to vector<1x8x1xf32>
    tpu.vector_store %arg9[%c2_60, %c0_61, %c0_62], %109 {strides = array<i32>} : memref<4x8x1xf32, #tpu.memory_space<vmem>>, vector<1x8x1xf32>,
    %c0_63 = arith.constant 0 : index
    %c16 = arith.constant 16 : index
    %110 = vector.load %arg10[%c0_63, %c16] : memref<8x32xf32, #tpu.memory_space<vmem>>, vector<8x8xf32>
    %111 = vector.broadcast %97 : vector<8x1xf32> to vector<8x8xf32>
    %112 = arith.mulf %111, %110 : vector<8x8xf32>
    %113 = arith.truncf %100 : vector<8x8xf32> to vector<8x8xbf16>
    %114 = vector.extract_strided_slice %8 {offsets = [0, 16], sizes = [8, 8], strides = [1, 1]} : vector<8x32xbf16> to vector<8x8xbf16>
    %cst_64 = arith.constant dense<0.000000e+00> : vector<8x8xf32>
    %115 = tpu.matmul %113, %114, %cst_64 {dimension_numbers = #tpu.dot_dimension_numbers<[1], [0], [0], [1], [0, 0, 1, 1], [], []>} : vector<8x8xbf16>, vector<8x8xbf16>, vector<8x8xf32> -> vector<8x8xf32>
    %116 = arith.addf %112, %115 : vector<8x8xf32>
    %c0_65 = arith.constant 0 : index
    %c16_66 = arith.constant 16 : index
    %117 = vector.load %arg10[%c0_65, %c16_66] : memref<8x32xf32, #tpu.memory_space<vmem>>, vector<8x8xf32>
    tpu.vector_store %arg10[%c0_65, %c16_66], %116 {strides = array<i32>} : memref<8x32xf32, #tpu.memory_space<vmem>>, vector<8x8xf32>,
    %c2_67 = arith.constant 2 : index
    %c0_68 = arith.constant 0 : index
    %c0_69 = arith.constant 0 : index
    %118 = vector.load %arg8[%c2_67, %c0_68, %c0_69] : memref<4x8x1xf32, #tpu.memory_space<vmem>>, vector<1x8x1xf32>
    %119 = vector.shape_cast %118 : vector<1x8x1xf32> to vector<8x1xf32>
    %120 = vector.shape_cast %95 : vector<8x1xf32> to vector<1x8x1xf32>
    tpu.vector_store %arg8[%c2_67, %c0_68, %c0_69], %120 {strides = array<i32>} : memref<4x8x1xf32, #tpu.memory_space<vmem>>, vector<1x8x1xf32>,
    %121 = vector.extract_strided_slice %4 {offsets = [0, 24], sizes = [8, 8], strides = [1, 1]} : vector<8x32xbf16> to vector<8x8xbf16>
    %122 = vector.extract_strided_slice %6 {offsets = [0, 24], sizes = [8, 8], strides = [1, 1]} : vector<8x32xbf16> to vector<8x8xbf16>
    %cst_70 = arith.constant dense<0.000000e+00> : vector<8x8xf32>
    %123 = tpu.matmul %121, %122, %cst_70 {dimension_numbers = #tpu.dot_dimension_numbers<[1], [1], [0], [0], [0, 0, 1, 0], [], []>} : vector<8x8xbf16>, vector<8x8xbf16>, vector<8x8xf32> -> vector<8x8xf32>
    %cst_71 = arith.constant 0.353553385 : f32
    %124 = vector.broadcast %cst_71 : f32 to vector<8x8xf32>
    %125 = arith.mulf %123, %124 : vector<8x8xf32>
    %126 = arith.addf %125, %12 : vector<8x8xf32>
    %c3 = arith.constant 3 : index
    %c0_72 = arith.constant 0 : index
    %c0_73 = arith.constant 0 : index
    %127 = vector.load %arg8[%c3, %c0_72, %c0_73] : memref<4x8x1xf32, #tpu.memory_space<vmem>>, vector<1x8x1xf32>
    %128 = vector.shape_cast %127 : vector<1x8x1xf32> to vector<8x1xf32>
    %cst_74 = arith.constant dense<0xFF800000> : vector<8xf32>
    %129 = vector.multi_reduction <maximumf>, %126, %cst_74 [1] : vector<8x8xf32> to vector<8xf32>
    %130 = vector.shape_cast %129 : vector<8xf32> to vector<8x1xf32>
    %131 = arith.maximumf %128, %130 : vector<8x1xf32>
    %132 = arith.subf %128, %131 : vector<8x1xf32>
    %133 = math.exp %132 : vector<8x1xf32>
    %134 = vector.broadcast %131 : vector<8x1xf32> to vector<8x8xf32>
    %135 = arith.subf %126, %134 : vector<8x8xf32>
    %136 = math.exp %135 : vector<8x8xf32>
    %c3_75 = arith.constant 3 : index
    %c0_76 = arith.constant 0 : index
    %c0_77 = arith.constant 0 : index
    %137 = vector.load %arg9[%c3_75, %c0_76, %c0_77] : memref<4x8x1xf32, #tpu.memory_space<vmem>>, vector<1x8x1xf32>
    %138 = vector.shape_cast %137 : vector<1x8x1xf32> to vector<8x1xf32>
    %139 = arith.mulf %133, %138 : vector<8x1xf32>
    %cst_78 = arith.constant dense<0.000000e+00> : vector<8xf32>
    %140 = vector.multi_reduction <add>, %136, %cst_78 [1] : vector<8x8xf32> to vector<8xf32>
    %141 = vector.shape_cast %140 : vector<8xf32> to vector<8x1xf32>
    %142 = arith.addf %139, %141 : vector<8x1xf32>
    %c3_79 = arith.constant 3 : index
    %c0_80 = arith.constant 0 : index
    %c0_81 = arith.constant 0 : index
    %143 = vector.load %arg9[%c3_79, %c0_80, %c0_81] : memref<4x8x1xf32, #tpu.memory_space<vmem>>, vector<1x8x1xf32>
    %144 = vector.shape_cast %143 : vector<1x8x1xf32> to vector<8x1xf32>
    %145 = vector.shape_cast %142 : vector<8x1xf32> to vector<1x8x1xf32>
    tpu.vector_store %arg9[%c3_79, %c0_80, %c0_81], %145 {strides = array<i32>} : memref<4x8x1xf32, #tpu.memory_space<vmem>>, vector<1x8x1xf32>,
    %c0_82 = arith.constant 0 : index
    %c24 = arith.constant 24 : index
    %146 = vector.load %arg10[%c0_82, %c24] : memref<8x32xf32, #tpu.memory_space<vmem>>, vector<8x8xf32>
    %147 = vector.broadcast %133 : vector<8x1xf32> to vector<8x8xf32>
    %148 = arith.mulf %147, %146 : vector<8x8xf32>
    %149 = arith.truncf %136 : vector<8x8xf32> to vector<8x8xbf16>
    %150 = vector.extract_strided_slice %8 {offsets = [0, 24], sizes = [8, 8], strides = [1, 1]} : vector<8x32xbf16> to vector<8x8xbf16>
    %cst_83 = arith.constant dense<0.000000e+00> : vector<8x8xf32>
    %151 = tpu.matmul %149, %150, %cst_83 {dimension_numbers = #tpu.dot_dimension_numbers<[1], [0], [0], [1], [0, 0, 1, 1], [], []>} : vector<8x8xbf16>, vector<8x8xbf16>, vector<8x8xf32> -> vector<8x8xf32>
    %152 = arith.addf %148, %151 : vector<8x8xf32>
    %c0_84 = arith.constant 0 : index
    %c24_85 = arith.constant 24 : index
    %153 = vector.load %arg10[%c0_84, %c24_85] : memref<8x32xf32, #tpu.memory_space<vmem>>, vector<8x8xf32>
    tpu.vector_store %arg10[%c0_84, %c24_85], %152 {strides = array<i32>} : memref<8x32xf32, #tpu.memory_space<vmem>>, vector<8x8xf32>,
    %c3_86 = arith.constant 3 : index
    %c0_87 = arith.constant 0 : index
    %c0_88 = arith.constant 0 : index
    %154 = vector.load %arg8[%c3_86, %c0_87, %c0_88] : memref<4x8x1xf32, #tpu.memory_space<vmem>>, vector<1x8x1xf32>
    %155 = vector.shape_cast %154 : vector<1x8x1xf32> to vector<8x1xf32>
    %156 = vector.shape_cast %131 : vector<8x1xf32> to vector<1x8x1xf32>
    tpu.vector_store %arg8[%c3_86, %c0_87, %c0_88], %156 {strides = array<i32>} : memref<4x8x1xf32, #tpu.memory_space<vmem>>, vector<1x8x1xf32>,
    %c0_i32_89 = arith.constant 0 : i32
    %157 = arith.cmpi eq, %arg2, %c0_i32_89 : i32
    %158 = arith.extui %157 : i1 to i32
    %c0_i32_90 = arith.constant 0 : i32
    %159 = arith.cmpi ne, %158, %c0_i32_90 : i32
    scf.if %159 {
      %c0_91 = arith.constant 0 : index
      %c0_92 = arith.constant 0 : index
      %160 = vector.load %arg10[%c0_91, %c0_92] : memref<8x32xf32, #tpu.memory_space<vmem>>, vector<8x8xf32>
      %c0_93 = arith.constant 0 : index
      %c0_94 = arith.constant 0 : index
      %c0_95 = arith.constant 0 : index
      %161 = vector.load %arg9[%c0_93, %c0_94, %c0_95] : memref<4x8x1xf32, #tpu.memory_space<vmem>>, vector<1x8x1xf32>
      %162 = vector.shape_cast %161 : vector<1x8x1xf32> to vector<8x1xf32>
      %163 = tpu.reciprocal %162 {approx = true} : vector<8x1xf32> -> vector<8x1xf32>
      %164 = vector.broadcast %163 : vector<8x1xf32> to vector<8x8xf32>
      %165 = arith.mulf %160, %164 : vector<8x8xf32>
      %c0_96 = arith.constant 0 : index
      %c0_97 = arith.constant 0 : index
      %166 = vector.load %arg10[%c0_96, %c0_97] : memref<8x32xf32, #tpu.memory_space<vmem>>, vector<8x8xf32>
      tpu.vector_store %arg10[%c0_96, %c0_97], %165 {strides = array<i32>} : memref<8x32xf32, #tpu.memory_space<vmem>>, vector<8x8xf32>,
      %c0_98 = arith.constant 0 : index
      %c8_99 = arith.constant 8 : index
      %167 = vector.load %arg10[%c0_98, %c8_99] : memref<8x32xf32, #tpu.memory_space<vmem>>, vector<8x8xf32>
      %c1_100 = arith.constant 1 : index
      %c0_101 = arith.constant 0 : index
      %c0_102 = arith.constant 0 : index
      %168 = vector.load %arg9[%c1_100, %c0_101, %c0_102] : memref<4x8x1xf32, #tpu.memory_space<vmem>>, vector<1x8x1xf32>
      %169 = vector.shape_cast %168 : vector<1x8x1xf32> to vector<8x1xf32>
      %170 = tpu.reciprocal %169 {approx = true} : vector<8x1xf32> -> vector<8x1xf32>
      %171 = vector.broadcast %170 : vector<8x1xf32> to vector<8x8xf32>
      %172 = arith.mulf %167, %171 : vector<8x8xf32>
      %c0_103 = arith.constant 0 : index
      %c8_104 = arith.constant 8 : index
      %173 = vector.load %arg10[%c0_103, %c8_104] : memref<8x32xf32, #tpu.memory_space<vmem>>, vector<8x8xf32>
      tpu.vector_store %arg10[%c0_103, %c8_104], %172 {strides = array<i32>} : memref<8x32xf32, #tpu.memory_space<vmem>>, vector<8x8xf32>,
      %c0_105 = arith.constant 0 : index
      %c16_106 = arith.constant 16 : index
      %174 = vector.load %arg10[%c0_105, %c16_106] : memref<8x32xf32, #tpu.memory_space<vmem>>, vector<8x8xf32>
      %c2_107 = arith.constant 2 : index
      %c0_108 = arith.constant 0 : index
      %c0_109 = arith.constant 0 : index
      %175 = vector.load %arg9[%c2_107, %c0_108, %c0_109] : memref<4x8x1xf32, #tpu.memory_space<vmem>>, vector<1x8x1xf32>
      %176 = vector.shape_cast %175 : vector<1x8x1xf32> to vector<8x1xf32>
      %177 = tpu.reciprocal %176 {approx = true} : vector<8x1xf32> -> vector<8x1xf32>
      %178 = vector.broadcast %177 : vector<8x1xf32> to vector<8x8xf32>
      %179 = arith.mulf %174, %178 : vector<8x8xf32>
      %c0_110 = arith.constant 0 : index
      %c16_111 = arith.constant 16 : index
      %180 = vector.load %arg10[%c0_110, %c16_111] : memref<8x32xf32, #tpu.memory_space<vmem>>, vector<8x8xf32>
      tpu.vector_store %arg10[%c0_110, %c16_111], %179 {strides = array<i32>} : memref<8x32xf32, #tpu.memory_space<vmem>>, vector<8x8xf32>,
      %c0_112 = arith.constant 0 : index
      %c24_113 = arith.constant 24 : index
      %181 = vector.load %arg10[%c0_112, %c24_113] : memref<8x32xf32, #tpu.memory_space<vmem>>, vector<8x8xf32>
      %c3_114 = arith.constant 3 : index
      %c0_115 = arith.constant 0 : index
      %c0_116 = arith.constant 0 : index
      %182 = vector.load %arg9[%c3_114, %c0_115, %c0_116] : memref<4x8x1xf32, #tpu.memory_space<vmem>>, vector<1x8x1xf32>
      %183 = vector.shape_cast %182 : vector<1x8x1xf32> to vector<8x1xf32>
      %184 = tpu.reciprocal %183 {approx = true} : vector<8x1xf32> -> vector<8x1xf32>
      %185 = vector.broadcast %184 : vector<8x1xf32> to vector<8x8xf32>
      %186 = arith.mulf %181, %185 : vector<8x8xf32>
      %c0_117 = arith.constant 0 : index
      %c24_118 = arith.constant 24 : index
      %187 = vector.load %arg10[%c0_117, %c24_118] : memref<8x32xf32, #tpu.memory_space<vmem>>, vector<8x8xf32>
      tpu.vector_store %arg10[%c0_117, %c24_118], %186 {strides = array<i32>} : memref<8x32xf32, #tpu.memory_space<vmem>>, vector<8x8xf32>,
      %c0_119 = arith.constant 0 : index
      %c0_120 = arith.constant 0 : index
      %188 = vector.load %arg10[%c0_119, %c0_120] : memref<8x32xf32, #tpu.memory_space<vmem>>, vector<8x32xf32>
      %189 = arith.truncf %188 : vector<8x32xf32> to vector<8x32xbf16>
      %c0_121 = arith.constant 0 : index
      %c0_122 = arith.constant 0 : index
      %c0_123 = arith.constant 0 : index
      %190 = vector.load %arg7[%c0_121, %c0_122, %c0_123] : memref<1x8x32xbf16, #tpu.memory_space<vmem>>, vector<1x8x32xbf16>
      %191 = vector.shape_cast %190 : vector<1x8x32xbf16> to vector<8x32xbf16>
      %192 = vector.shape_cast %189 : vector<8x32xbf16> to vector<1x8x32xbf16>
      tpu.vector_store %arg7[%c0_121, %c0_122, %c0_123], %192 {strides = array<i32>} : memref<1x8x32xbf16, #tpu.memory_space<vmem>>, vector<1x8x32xbf16>,
    } else {
    }
    return
  }
  func.func @transform_0(%arg0: i32, %arg1: i32, %arg2: i32) -> (i32, i32, i32) {
    %c0_i32 = arith.constant 0 : i32
    %c0_i32_0 = arith.constant 0 : i32
    return %arg0, %arg1, %c0_i32 : i32, i32, i32
  }
  func.func @transform_1(%arg0: i32, %arg1: i32, %arg2: i32) -> (i32, i32, i32) {
    %c0_i32 = arith.constant 0 : i32
    %c0_i32_0 = arith.constant 0 : i32
    return %arg0, %arg2, %c0_i32 : i32, i32, i32
  }
  func.func @transform_2(%arg0: i32, %arg1: i32, %arg2: i32) -> (i32, i32, i32) {
    %c0_i32 = arith.constant 0 : i32
    %c0_i32_0 = arith.constant 0 : i32
    return %arg0, %arg2, %c0_i32 : i32, i32, i32
  }
  func.func @transform_3(%arg0: i32, %arg1: i32, %arg2: i32) -> (i32, i32, i32) {
    %c0_i32 = arith.constant 0 : i32
    %c0_i32_0 = arith.constant 0 : i32
    return %arg0, %c0_i32, %arg2 : i32, i32, i32
  }
  func.func @transform_4(%arg0: i32, %arg1: i32, %arg2: i32) -> (i32, i32, i32) {
    %c0_i32 = arith.constant 0 : i32
    %c0_i32_0 = arith.constant 0 : i32
    return %arg0, %arg1, %c0_i32 : i32, i32, i32
  }
}

module attributes {stable_mosaic.version = 11 : i64} {
  func.func @_split_linear_kernel(%arg0: i32, %arg1: memref<16x32xf32, #tpu.memory_space<vmem>>, %arg2: memref<32x64xbf16, #tpu.memory_space<vmem>>, %arg3: memref<1x64xf32, #tpu.memory_space<vmem>>, %arg4: memref<16x32xbf16, #tpu.memory_space<vmem>>, %arg5: memref<16x32xbf16, #tpu.memory_space<vmem>>) attributes {dimension_semantics = [#tpu.dimension_semantics<parallel>], iteration_bounds = array<i64: 1>, scalar_prefetch = 0 : i64, scratch_operands = 0 : i64, tpu.core_type = #tpu.core_type<tc>, window_params = [{transform_indices = @transform_0, window_bounds = array<i64: 16, 32>}, {pipeline_mode = #tpu.pipeline_mode<synchronous>, transform_indices = @transform_1, window_bounds = array<i64: 32, 64>}, {pipeline_mode = #tpu.pipeline_mode<synchronous>, transform_indices = @transform_2, window_bounds = array<i64: 1, 64>}, {transform_indices = @transform_3, window_bounds = array<i64: 16, 32>}, {transform_indices = @transform_4, window_bounds = array<i64: 16, 32>}]} {
    %c0 = arith.constant 0 : index
    %c0_0 = arith.constant 0 : index
    %0 = vector.load %arg1[%c0, %c0_0] : memref<16x32xf32, #tpu.memory_space<vmem>>, vector<16x32xf32>
    %1 = arith.truncf %0 : vector<16x32xf32> to vector<16x32xbf16>
    %c0_1 = arith.constant 0 : index
    %c0_2 = arith.constant 0 : index
    %2 = vector.load %arg2[%c0_1, %c0_2] : memref<32x64xbf16, #tpu.memory_space<vmem>>, vector<32x64xbf16>
    %cst = arith.constant dense<0.000000e+00> : vector<16x64xf32>
    %3 = tpu.matmul %1, %2, %cst {dimension_numbers = #tpu.dot_dimension_numbers<[1], [0], [0], [1], [0, 0, 1, 1], [], []>} : vector<16x32xbf16>, vector<32x64xbf16>, vector<16x64xf32> -> vector<16x64xf32>
    %c0_3 = arith.constant 0 : index
    %c0_4 = arith.constant 0 : index
    %4 = vector.load %arg3[%c0_3, %c0_4] : memref<1x64xf32, #tpu.memory_space<vmem>>, vector<1x64xf32>
    %5 = vector.broadcast %4 : vector<1x64xf32> to vector<16x64xf32>
    %6 = arith.addf %3, %5 : vector<16x64xf32>
    %7 = vector.extract_strided_slice %6 {offsets = [0, 0], sizes = [16, 32], strides = [1, 1]} : vector<16x64xf32> to vector<16x32xf32>
    %8 = arith.truncf %7 : vector<16x32xf32> to vector<16x32xbf16>
    %c0_5 = arith.constant 0 : index
    %c0_6 = arith.constant 0 : index
    %9 = vector.load %arg4[%c0_5, %c0_6] : memref<16x32xbf16, #tpu.memory_space<vmem>>, vector<16x32xbf16>
    tpu.vector_store %arg4[%c0_5, %c0_6], %8 {strides = array<i32>} : memref<16x32xbf16, #tpu.memory_space<vmem>>, vector<16x32xbf16>,
    %10 = vector.extract_strided_slice %6 {offsets = [0, 32], sizes = [16, 32], strides = [1, 1]} : vector<16x64xf32> to vector<16x32xf32>
    %11 = arith.truncf %10 : vector<16x32xf32> to vector<16x32xbf16>
    %c0_7 = arith.constant 0 : index
    %c0_8 = arith.constant 0 : index
    %12 = vector.load %arg5[%c0_7, %c0_8] : memref<16x32xbf16, #tpu.memory_space<vmem>>, vector<16x32xbf16>
    tpu.vector_store %arg5[%c0_7, %c0_8], %11 {strides = array<i32>} : memref<16x32xbf16, #tpu.memory_space<vmem>>, vector<16x32xbf16>,
    return
  }
  func.func @transform_0(%arg0: i32) -> (i32, i32) {
    %c0_i32 = arith.constant 0 : i32
    %c0_i32_0 = arith.constant 0 : i32
    return %arg0, %c0_i32 : i32, i32
  }
  func.func @transform_1(%arg0: i32) -> (i32, i32) {
    %c0_i32 = arith.constant 0 : i32
    %c0_i32_0 = arith.constant 0 : i32
    %c0_i32_1 = arith.constant 0 : i32
    return %c0_i32, %c0_i32_0 : i32, i32
  }
  func.func @transform_2(%arg0: i32) -> (i32, i32) {
    %c0_i32 = arith.constant 0 : i32
    %c0_i32_0 = arith.constant 0 : i32
    %c0_i32_1 = arith.constant 0 : i32
    return %c0_i32, %c0_i32_0 : i32, i32
  }
  func.func @transform_3(%arg0: i32) -> (i32, i32) {
    %c0_i32 = arith.constant 0 : i32
    %c0_i32_0 = arith.constant 0 : i32
    return %arg0, %c0_i32 : i32, i32
  }
  func.func @transform_4(%arg0: i32) -> (i32, i32) {
    %c0_i32 = arith.constant 0 : i32
    %c0_i32_0 = arith.constant 0 : i32
    return %arg0, %c0_i32 : i32, i32
  }
}

module attributes {stable_mosaic.version = 11 : i64} {
  func.func @_ffn_kernel(%arg0: i32, %arg1: i32, %arg2: memref<16x32xf32, #tpu.memory_space<vmem>>, %arg3: memref<32x512xbf16, #tpu.memory_space<vmem>>, %arg4: memref<1x512xf32, #tpu.memory_space<vmem>>, %arg5: memref<512x32xbf16, #tpu.memory_space<vmem>>, %arg6: memref<1x32xf32, #tpu.memory_space<vmem>>, %arg7: memref<1x32xf32, #tpu.memory_space<vmem>>, %arg8: memref<1x32xf32, #tpu.memory_space<vmem>>, %arg9: memref<16x32xf32, #tpu.memory_space<vmem>>, %arg10: memref<16x32xf32, #tpu.memory_space<vmem>>) attributes {dimension_semantics = [#tpu.dimension_semantics<parallel>, #tpu.dimension_semantics<arbitrary>], iteration_bounds = array<i64: 1, 4>, scalar_prefetch = 0 : i64, scratch_operands = 1 : i64, tpu.core_type = #tpu.core_type<tc>, window_params = [{transform_indices = @transform_0, window_bounds = array<i64: 16, 32>}, {transform_indices = @transform_1, window_bounds = array<i64: 32, 512>}, {transform_indices = @transform_2, window_bounds = array<i64: 1, 512>}, {transform_indices = @transform_3, window_bounds = array<i64: 512, 32>}, {pipeline_mode = #tpu.pipeline_mode<synchronous>, transform_indices = @transform_4, window_bounds = array<i64: 1, 32>}, {pipeline_mode = #tpu.pipeline_mode<synchronous>, transform_indices = @transform_5, window_bounds = array<i64: 1, 32>}, {pipeline_mode = #tpu.pipeline_mode<synchronous>, transform_indices = @transform_6, window_bounds = array<i64: 1, 32>}, {transform_indices = @transform_7, window_bounds = array<i64: 16, 32>}]} {
    %c0_i32 = arith.constant 0 : i32
    %0 = arith.cmpi eq, %arg1, %c0_i32 : i32
    %1 = arith.extui %0 : i1 to i32
    %c0_i32_0 = arith.constant 0 : i32
    %2 = arith.cmpi ne, %1, %c0_i32_0 : i32
    scf.if %2 {
      %cst_15 = arith.constant 0.000000e+00 : f32
      %21 = vector.broadcast %cst_15 : f32 to vector<16x32xf32>
      %c0_16 = arith.constant 0 : index
      %c0_17 = arith.constant 0 : index
      %22 = vector.load %arg10[%c0_16, %c0_17] : memref<16x32xf32, #tpu.memory_space<vmem>>, vector<16x32xf32>
      tpu.vector_store %arg10[%c0_16, %c0_17], %21 {strides = array<i32>} : memref<16x32xf32, #tpu.memory_space<vmem>>, vector<16x32xf32>,
    } else {
    }
    %c0 = arith.constant 0 : index
    %c0_1 = arith.constant 0 : index
    %3 = vector.load %arg2[%c0, %c0_1] : memref<16x32xf32, #tpu.memory_space<vmem>>, vector<16x32xf32>
    %4 = arith.truncf %3 : vector<16x32xf32> to vector<16x32xbf16>
    %c0_2 = arith.constant 0 : index
    %c0_3 = arith.constant 0 : index
    %5 = vector.load %arg3[%c0_2, %c0_3] : memref<32x512xbf16, #tpu.memory_space<vmem>>, vector<32x512xbf16>
    %cst = arith.constant dense<0.000000e+00> : vector<16x512xf32>
    %6 = tpu.matmul %4, %5, %cst {dimension_numbers = #tpu.dot_dimension_numbers<[1], [0], [0], [1], [0, 0, 1, 1], [], []>} : vector<16x32xbf16>, vector<32x512xbf16>, vector<16x512xf32> -> vector<16x512xf32>
    %c0_4 = arith.constant 0 : index
    %c0_5 = arith.constant 0 : index
    %7 = vector.load %arg4[%c0_4, %c0_5] : memref<1x512xf32, #tpu.memory_space<vmem>>, vector<1x512xf32>
    %8 = vector.broadcast %7 : vector<1x512xf32> to vector<16x512xf32>
    %9 = arith.addf %6, %8 : vector<16x512xf32>
    %cst_6 = arith.constant 0.000000e+00 : f32
    %10 = vector.broadcast %cst_6 : f32 to vector<16x512xf32>
    %11 = arith.maximumf %9, %10 : vector<16x512xf32>
    %c0_7 = arith.constant 0 : index
    %c0_8 = arith.constant 0 : index
    %12 = vector.load %arg10[%c0_7, %c0_8] : memref<16x32xf32, #tpu.memory_space<vmem>>, vector<16x32xf32>
    %13 = arith.truncf %11 : vector<16x512xf32> to vector<16x512xbf16>
    %c0_9 = arith.constant 0 : index
    %c0_10 = arith.constant 0 : index
    %14 = vector.load %arg5[%c0_9, %c0_10] : memref<512x32xbf16, #tpu.memory_space<vmem>>, vector<512x32xbf16>
    %cst_11 = arith.constant dense<0.000000e+00> : vector<16x32xf32>
    %15 = tpu.matmul %13, %14, %cst_11 {dimension_numbers = #tpu.dot_dimension_numbers<[1], [0], [0], [1], [0, 0, 1, 1], [], []>} : vector<16x512xbf16>, vector<512x32xbf16>, vector<16x32xf32> -> vector<16x32xf32>
    %16 = arith.addf %12, %15 : vector<16x32xf32>
    %c0_12 = arith.constant 0 : index
    %c0_13 = arith.constant 0 : index
    %17 = vector.load %arg10[%c0_12, %c0_13] : memref<16x32xf32, #tpu.memory_space<vmem>>, vector<16x32xf32>
    tpu.vector_store %arg10[%c0_12, %c0_13], %16 {strides = array<i32>} : memref<16x32xf32, #tpu.memory_space<vmem>>, vector<16x32xf32>,
    %c3_i32 = arith.constant 3 : i32
    %18 = arith.cmpi eq, %arg1, %c3_i32 : i32
    %19 = arith.extui %18 : i1 to i32
    %c0_i32_14 = arith.constant 0 : i32
    %20 = arith.cmpi ne, %19, %c0_i32_14 : i32
    scf.if %20 {
      %c0_15 = arith.constant 0 : index
      %c0_16 = arith.constant 0 : index
      %21 = vector.load %arg10[%c0_15, %c0_16] : memref<16x32xf32, #tpu.memory_space<vmem>>, vector<16x32xf32>
      %22 = arith.addf %3, %21 : vector<16x32xf32>
      %c0_17 = arith.constant 0 : index
      %c0_18 = arith.constant 0 : index
      %23 = vector.load %arg6[%c0_17, %c0_18] : memref<1x32xf32, #tpu.memory_space<vmem>>, vector<1x32xf32>
      %24 = vector.broadcast %23 : vector<1x32xf32> to vector<16x32xf32>
      %25 = arith.addf %22, %24 : vector<16x32xf32>
      %cst_19 = arith.constant dense<0.000000e+00> : vector<16xf32>
      %26 = vector.multi_reduction <add>, %25, %cst_19 [1] : vector<16x32xf32> to vector<16xf32>
      %27 = vector.shape_cast %26 : vector<16xf32> to vector<16x1xf32>
      %cst_20 = arith.constant 3.200000e+01 : f32
      %28 = vector.broadcast %cst_20 : f32 to vector<16x1xf32>
      %29 = arith.divf %27, %28 : vector<16x1xf32>
      %30 = vector.broadcast %29 : vector<16x1xf32> to vector<16x32xf32>
      %31 = arith.subf %25, %30 : vector<16x32xf32>
      %32 = arith.mulf %31, %31 : vector<16x32xf32>
      %cst_21 = arith.constant dense<0.000000e+00> : vector<16xf32>
      %33 = vector.multi_reduction <add>, %32, %cst_21 [1] : vector<16x32xf32> to vector<16xf32>
      %34 = vector.shape_cast %33 : vector<16xf32> to vector<16x1xf32>
      %cst_22 = arith.constant 3.200000e+01 : f32
      %35 = vector.broadcast %cst_22 : f32 to vector<16x1xf32>
      %36 = arith.divf %34, %35 : vector<16x1xf32>
      %37 = vector.broadcast %29 : vector<16x1xf32> to vector<16x32xf32>
      %38 = arith.subf %25, %37 : vector<16x32xf32>
      %cst_23 = arith.constant 9.99999974E-6 : f32
      %39 = vector.broadcast %cst_23 : f32 to vector<16x1xf32>
      %40 = arith.addf %36, %39 : vector<16x1xf32>
      %41 = math.rsqrt %40 : vector<16x1xf32>
      %42 = vector.broadcast %41 : vector<16x1xf32> to vector<16x32xf32>
      %43 = arith.mulf %38, %42 : vector<16x32xf32>
      %c0_24 = arith.constant 0 : index
      %c0_25 = arith.constant 0 : index
      %44 = vector.load %arg7[%c0_24, %c0_25] : memref<1x32xf32, #tpu.memory_space<vmem>>, vector<1x32xf32>
      %45 = vector.broadcast %44 : vector<1x32xf32> to vector<16x32xf32>
      %46 = arith.mulf %43, %45 : vector<16x32xf32>
      %c0_26 = arith.constant 0 : index
      %c0_27 = arith.constant 0 : index
      %47 = vector.load %arg8[%c0_26, %c0_27] : memref<1x32xf32, #tpu.memory_space<vmem>>, vector<1x32xf32>
      %48 = vector.broadcast %47 : vector<1x32xf32> to vector<16x32xf32>
      %49 = arith.addf %46, %48 : vector<16x32xf32>
      %c0_28 = arith.constant 0 : index
      %c0_29 = arith.constant 0 : index
      %50 = vector.load %arg9[%c0_28, %c0_29] : memref<16x32xf32, #tpu.memory_space<vmem>>, vector<16x32xf32>
      tpu.vector_store %arg9[%c0_28, %c0_29], %49 {strides = array<i32>} : memref<16x32xf32, #tpu.memory_space<vmem>>, vector<16x32xf32>,
    } else {
    }
    return
  }
  func.func @transform_0(%arg0: i32, %arg1: i32) -> (i32, i32) {
    %c0_i32 = arith.constant 0 : i32
    %c0_i32_0 = arith.constant 0 : i32
    return %arg0, %c0_i32 : i32, i32
  }
  func.func @transform_1(%arg0: i32, %arg1: i32) -> (i32, i32) {
    %c0_i32 = arith.constant 0 : i32
    %c0_i32_0 = arith.constant 0 : i32
    return %c0_i32, %arg1 : i32, i32
  }
  func.func @transform_2(%arg0: i32, %arg1: i32) -> (i32, i32) {
    %c0_i32 = arith.constant 0 : i32
    %c0_i32_0 = arith.constant 0 : i32
    return %c0_i32, %arg1 : i32, i32
  }
  func.func @transform_3(%arg0: i32, %arg1: i32) -> (i32, i32) {
    %c0_i32 = arith.constant 0 : i32
    %c0_i32_0 = arith.constant 0 : i32
    return %arg1, %c0_i32 : i32, i32
  }
  func.func @transform_4(%arg0: i32, %arg1: i32) -> (i32, i32) {
    %c0_i32 = arith.constant 0 : i32
    %c0_i32_0 = arith.constant 0 : i32
    %c0_i32_1 = arith.constant 0 : i32
    return %c0_i32, %c0_i32_0 : i32, i32
  }
  func.func @transform_5(%arg0: i32, %arg1: i32) -> (i32, i32) {
    %c0_i32 = arith.constant 0 : i32
    %c0_i32_0 = arith.constant 0 : i32
    %c0_i32_1 = arith.constant 0 : i32
    return %c0_i32, %c0_i32_0 : i32, i32
  }
  func.func @transform_6(%arg0: i32, %arg1: i32) -> (i32, i32) {
    %c0_i32 = arith.constant 0 : i32
    %c0_i32_0 = arith.constant 0 : i32
    %c0_i32_1 = arith.constant 0 : i32
    return %c0_i32, %c0_i32_0 : i32, i32
  }
  func.func @transform_7(%arg0: i32, %arg1: i32) -> (i32, i32) {
    %c0_i32 = arith.constant 0 : i32
    %c0_i32_0 = arith.constant 0 : i32
    return %arg0, %c0_i32 : i32, i32
  }
}

module attributes {stable_mosaic.version = 11 : i64} {
  func.func @_split_linear_kernel(%arg0: i32, %arg1: memref<16x32xf32, #tpu.memory_space<vmem>>, %arg2: memref<32x32xbf16, #tpu.memory_space<vmem>>, %arg3: memref<1x32xf32, #tpu.memory_space<vmem>>, %arg4: memref<16x32xbf16, #tpu.memory_space<vmem>>) attributes {dimension_semantics = [#tpu.dimension_semantics<parallel>], iteration_bounds = array<i64: 1>, scalar_prefetch = 0 : i64, scratch_operands = 0 : i64, tpu.core_type = #tpu.core_type<tc>, window_params = [{transform_indices = @transform_0, window_bounds = array<i64: 16, 32>}, {pipeline_mode = #tpu.pipeline_mode<synchronous>, transform_indices = @transform_1, window_bounds = array<i64: 32, 32>}, {pipeline_mode = #tpu.pipeline_mode<synchronous>, transform_indices = @transform_2, window_bounds = array<i64: 1, 32>}, {transform_indices = @transform_3, window_bounds = array<i64: 16, 32>}]} {
    %c0 = arith.constant 0 : index
    %c0_0 = arith.constant 0 : index
    %0 = vector.load %arg1[%c0, %c0_0] : memref<16x32xf32, #tpu.memory_space<vmem>>, vector<16x32xf32>
    %1 = arith.truncf %0 : vector<16x32xf32> to vector<16x32xbf16>
    %c0_1 = arith.constant 0 : index
    %c0_2 = arith.constant 0 : index
    %2 = vector.load %arg2[%c0_1, %c0_2] : memref<32x32xbf16, #tpu.memory_space<vmem>>, vector<32x32xbf16>
    %cst = arith.constant dense<0.000000e+00> : vector<16x32xf32>
    %3 = tpu.matmul %1, %2, %cst {dimension_numbers = #tpu.dot_dimension_numbers<[1], [0], [0], [1], [0, 0, 1, 1], [], []>} : vector<16x32xbf16>, vector<32x32xbf16>, vector<16x32xf32> -> vector<16x32xf32>
    %c0_3 = arith.constant 0 : index
    %c0_4 = arith.constant 0 : index
    %4 = vector.load %arg3[%c0_3, %c0_4] : memref<1x32xf32, #tpu.memory_space<vmem>>, vector<1x32xf32>
    %5 = vector.broadcast %4 : vector<1x32xf32> to vector<16x32xf32>
    %6 = arith.addf %3, %5 : vector<16x32xf32>
    %7 = arith.truncf %6 : vector<16x32xf32> to vector<16x32xbf16>
    %c0_5 = arith.constant 0 : index
    %c0_6 = arith.constant 0 : index
    %8 = vector.load %arg4[%c0_5, %c0_6] : memref<16x32xbf16, #tpu.memory_space<vmem>>, vector<16x32xbf16>
    tpu.vector_store %arg4[%c0_5, %c0_6], %7 {strides = array<i32>} : memref<16x32xbf16, #tpu.memory_space<vmem>>, vector<16x32xbf16>,
    return
  }
  func.func @transform_0(%arg0: i32) -> (i32, i32) {
    %c0_i32 = arith.constant 0 : i32
    %c0_i32_0 = arith.constant 0 : i32
    return %arg0, %c0_i32 : i32, i32
  }
  func.func @transform_1(%arg0: i32) -> (i32, i32) {
    %c0_i32 = arith.constant 0 : i32
    %c0_i32_0 = arith.constant 0 : i32
    %c0_i32_1 = arith.constant 0 : i32
    return %c0_i32, %c0_i32_0 : i32, i32
  }
  func.func @transform_2(%arg0: i32) -> (i32, i32) {
    %c0_i32 = arith.constant 0 : i32
    %c0_i32_0 = arith.constant 0 : i32
    %c0_i32_1 = arith.constant 0 : i32
    return %c0_i32, %c0_i32_0 : i32, i32
  }
  func.func @transform_3(%arg0: i32) -> (i32, i32) {
    %c0_i32 = arith.constant 0 : i32
    %c0_i32_0 = arith.constant 0 : i32
    return %arg0, %c0_i32 : i32, i32
  }
}

module attributes {stable_mosaic.version = 11 : i64} {
  func.func @_flash_attn_kernel(%arg0: i32, %arg1: i32, %arg2: i32, %arg3: memref<1x8x32xbf16, #tpu.memory_space<vmem>>, %arg4: memref<1x8x32xbf16, #tpu.memory_space<vmem>>, %arg5: memref<1x8x32xbf16, #tpu.memory_space<vmem>>, %arg6: memref<1x1x8xf32, #tpu.memory_space<vmem>>, %arg7: memref<1x8x32xbf16, #tpu.memory_space<vmem>>, %arg8: memref<4x8x1xf32, #tpu.memory_space<vmem>>, %arg9: memref<4x8x1xf32, #tpu.memory_space<vmem>>, %arg10: memref<8x32xf32, #tpu.memory_space<vmem>>) attributes {dimension_semantics = [#tpu.dimension_semantics<parallel>, #tpu.dimension_semantics<parallel>, #tpu.dimension_semantics<arbitrary>], iteration_bounds = array<i64: 2, 1, 1>, scalar_prefetch = 0 : i64, scratch_operands = 3 : i64, tpu.core_type = #tpu.core_type<tc>, window_params = [{transform_indices = @transform_0, window_bounds = array<i64: 1, 8, 32>}, {transform_indices = @transform_1, window_bounds = array<i64: 1, 8, 32>}, {transform_indices = @transform_2, window_bounds = array<i64: 1, 8, 32>}, {transform_indices = @transform_3, window_bounds = array<i64: 1, 1, 8>}, {transform_indices = @transform_4, window_bounds = array<i64: 1, 8, 32>}]} {
    %c0_i32 = arith.constant 0 : i32
    %0 = arith.cmpi eq, %arg2, %c0_i32 : i32
    %1 = arith.extui %0 : i1 to i32
    %c0_i32_0 = arith.constant 0 : i32
    %2 = arith.cmpi ne, %1, %c0_i32_0 : i32
    scf.if %2 {
      %cst = arith.constant -1.000000e+30 : f32
      %13 = vector.broadcast %cst : f32 to vector<4x8x1xf32>
      %c0 = arith.constant 0 : index
      %c0_6 = arith.constant 0 : index
      %c0_7 = arith.constant 0 : index
      %14 = vector.load %arg8[%c0, %c0_6, %c0_7] : memref<4x8x1xf32, #tpu.memory_space<vmem>>, vector<4x8x1xf32>
      tpu.vector_store %arg8[%c0, %c0_6, %c0_7], %13 {strides = array<i32>} : memref<4x8x1xf32, #tpu.memory_space<vmem>>, vector<4x8x1xf32>,
      %cst_8 = arith.constant 0.000000e+00 : f32
      %15 = vector.broadcast %cst_8 : f32 to vector<4x8x1xf32>
      %c0_9 = arith.constant 0 : index
      %c0_10 = arith.constant 0 : index
      %c0_11 = arith.constant 0 : index
      %16 = vector.load %arg9[%c0_9, %c0_10, %c0_11] : memref<4x8x1xf32, #tpu.memory_space<vmem>>, vector<4x8x1xf32>
      tpu.vector_store %arg9[%c0_9, %c0_10, %c0_11], %15 {strides = array<i32>} : memref<4x8x1xf32, #tpu.memory_space<vmem>>, vector<4x8x1xf32>,
      %cst_12 = arith.constant 0.000000e+00 : f32
      %17 = vector.broadcast %cst_12 : f32 to vector<8x32xf32>
      %c0_13 = arith.constant 0 : index
      %c0_14 = arith.constant 0 : index
      %18 = vector.load %arg10[%c0_13, %c0_14] : memref<8x32xf32, #tpu.memory_space<vmem>>, vector<8x32xf32>
      tpu.vector_store %arg10[%c0_13, %c0_14], %17 {strides = array<i32>} : memref<8x32xf32, #tpu.memory_space<vmem>>, vector<8x32xf32>,
    } else {
    }
    %c8_i32 = arith.constant 8 : i32
    %3 = arith.muli %arg2, %c8_i32 : i32
    %c8_i32_1 = arith.constant 8 : i32
    %4 = arith.muli %arg1, %c8_i32_1 : i32
    %c8_i32_2 = arith.constant 8 : i32
    %5 = arith.addi %4, %c8_i32_2 : i32
    %c1_i32 = arith.constant 1 : i32
    %6 = arith.subi %5, %c1_i32 : i32
    %7 = arith.cmpi sle, %3, %6 : i32
    %8 = arith.extui %7 : i1 to i32
    %c0_i32_3 = arith.constant 0 : i32
    %9 = arith.cmpi ne, %8, %c0_i32_3 : i32
    scf.if %9 {
      %c0 = arith.constant 0 : index
      %c0_6 = arith.constant 0 : index
      %c0_7 = arith.constant 0 : index
      %13 = vector.load %arg3[%c0, %c0_6, %c0_7] : memref<1x8x32xbf16, #tpu.memory_space<vmem>>, vector<1x8x32xbf16>
      %14 = vector.shape_cast %13 : vector<1x8x32xbf16> to vector<8x32xbf16>
      %c0_8 = arith.constant 0 : index
      %c0_9 = arith.constant 0 : index
      %c0_10 = arith.constant 0 : index
      %15 = vector.load %arg4[%c0_8, %c0_9, %c0_10] : memref<1x8x32xbf16, #tpu.memory_space<vmem>>, vector<1x8x32xbf16>
      %16 = vector.shape_cast %15 : vector<1x8x32xbf16> to vector<8x32xbf16>
      %c0_11 = arith.constant 0 : index
      %c0_12 = arith.constant 0 : index
      %c0_13 = arith.constant 0 : index
      %17 = vector.load %arg5[%c0_11, %c0_12, %c0_13] : memref<1x8x32xbf16, #tpu.memory_space<vmem>>, vector<1x8x32xbf16>
      %18 = vector.shape_cast %17 : vector<1x8x32xbf16> to vector<8x32xbf16>
      %c0_14 = arith.constant 0 : index
      %c0_15 = arith.constant 0 : index
      %c0_16 = arith.constant 0 : index
      %19 = vector.load %arg6[%c0_14, %c0_15, %c0_16] : memref<1x1x8xf32, #tpu.memory_space<vmem>>, vector<1x1x8xf32>
      %20 = vector.shape_cast %19 : vector<1x1x8xf32> to vector<1x8xf32>
      %21 = vector.shape_cast %20 : vector<1x8xf32> to vector<1x8xf32>
      %22 = vector.broadcast %21 : vector<1x8xf32> to vector<8x8xf32>
      %c8_i32_17 = arith.constant 8 : i32
      %23 = arith.muli %arg1, %c8_i32_17 : i32
      %24 = tpu.iota {dimensions = array<i32: 0>} : vector<8x8xi32>
      %25 = vector.broadcast %23 : i32 to vector<8x8xi32>
      %26 = arith.addi %25, %24 : vector<8x8xi32>
      %c8_i32_18 = arith.constant 8 : i32
      %27 = arith.muli %arg2, %c8_i32_18 : i32
      %28 = tpu.iota {dimensions = array<i32: 1>} : vector<8x8xi32>
      %29 = vector.broadcast %27 : i32 to vector<8x8xi32>
      %30 = arith.addi %29, %28 : vector<8x8xi32>
      %31 = arith.cmpi sgt, %30, %26 : vector<8x8xi32>
      %cst = arith.constant -1.000000e+30 : f32
      %32 = vector.broadcast %cst : f32 to vector<8x8xf32>
      %33 = arith.select %31, %32, %22 : vector<8x8xi1>, vector<8x8xf32>
      %34 = vector.extract_strided_slice %14 {offsets = [0, 0], sizes = [8, 8], strides = [1, 1]} : vector<8x32xbf16> to vector<8x8xbf16>
      %35 = vector.extract_strided_slice %16 {offsets = [0, 0], sizes = [8, 8], strides = [1, 1]} : vector<8x32xbf16> to vector<8x8xbf16>
      %cst_19 = arith.constant dense<0.000000e+00> : vector<8x8xf32>
      %36 = tpu.matmul %34, %35, %cst_19 {dimension_numbers = #tpu.dot_dimension_numbers<[1], [1], [0], [0], [0, 0, 1, 0], [], []>} : vector<8x8xbf16>, vector<8x8xbf16>, vector<8x8xf32> -> vector<8x8xf32>
      %cst_20 = arith.constant 0.353553385 : f32
      %37 = vector.broadcast %cst_20 : f32 to vector<8x8xf32>
      %38 = arith.mulf %36, %37 : vector<8x8xf32>
      %39 = arith.addf %38, %33 : vector<8x8xf32>
      %c0_21 = arith.constant 0 : index
      %c0_22 = arith.constant 0 : index
      %c0_23 = arith.constant 0 : index
      %40 = vector.load %arg8[%c0_21, %c0_22, %c0_23] : memref<4x8x1xf32, #tpu.memory_space<vmem>>, vector<1x8x1xf32>
      %41 = vector.shape_cast %40 : vector<1x8x1xf32> to vector<8x1xf32>
      %cst_24 = arith.constant dense<0xFF800000> : vector<8xf32>
      %42 = vector.multi_reduction <maximumf>, %39, %cst_24 [1] : vector<8x8xf32> to vector<8xf32>
      %43 = vector.shape_cast %42 : vector<8xf32> to vector<8x1xf32>
      %44 = arith.maximumf %41, %43 : vector<8x1xf32>
      %45 = arith.subf %41, %44 : vector<8x1xf32>
      %46 = math.exp %45 : vector<8x1xf32>
      %47 = vector.broadcast %44 : vector<8x1xf32> to vector<8x8xf32>
      %48 = arith.subf %39, %47 : vector<8x8xf32>
      %49 = math.exp %48 : vector<8x8xf32>
      %c0_25 = arith.constant 0 : index
      %c0_26 = arith.constant 0 : index
      %c0_27 = arith.constant 0 : index
      %50 = vector.load %arg9[%c0_25, %c0_26, %c0_27] : memref<4x8x1xf32, #tpu.memory_space<vmem>>, vector<1x8x1xf32>
      %51 = vector.shape_cast %50 : vector<1x8x1xf32> to vector<8x1xf32>
      %52 = arith.mulf %46, %51 : vector<8x1xf32>
      %cst_28 = arith.constant dense<0.000000e+00> : vector<8xf32>
      %53 = vector.multi_reduction <add>, %49, %cst_28 [1] : vector<8x8xf32> to vector<8xf32>
      %54 = vector.shape_cast %53 : vector<8xf32> to vector<8x1xf32>
      %55 = arith.addf %52, %54 : vector<8x1xf32>
      %c0_29 = arith.constant 0 : index
      %c0_30 = arith.constant 0 : index
      %c0_31 = arith.constant 0 : index
      %56 = vector.load %arg9[%c0_29, %c0_30, %c0_31] : memref<4x8x1xf32, #tpu.memory_space<vmem>>, vector<1x8x1xf32>
      %57 = vector.shape_cast %56 : vector<1x8x1xf32> to vector<8x1xf32>
      %58 = vector.shape_cast %55 : vector<8x1xf32> to vector<1x8x1xf32>
      tpu.vector_store %arg9[%c0_29, %c0_30, %c0_31], %58 {strides = array<i32>} : memref<4x8x1xf32, #tpu.memory_space<vmem>>, vector<1x8x1xf32>,
      %c0_32 = arith.constant 0 : index
      %c0_33 = arith.constant 0 : index
      %59 = vector.load %arg10[%c0_32, %c0_33] : memref<8x32xf32, #tpu.memory_space<vmem>>, vector<8x8xf32>
      %60 = vector.broadcast %46 : vector<8x1xf32> to vector<8x8xf32>
      %61 = arith.mulf %60, %59 : vector<8x8xf32>
      %62 = arith.truncf %49 : vector<8x8xf32> to vector<8x8xbf16>
      %63 = vector.extract_strided_slice %18 {offsets = [0, 0], sizes = [8, 8], strides = [1, 1]} : vector<8x32xbf16> to vector<8x8xbf16>
      %cst_34 = arith.constant dense<0.000000e+00> : vector<8x8xf32>
      %64 = tpu.matmul %62, %63, %cst_34 {dimension_numbers = #tpu.dot_dimension_numbers<[1], [0], [0], [1], [0, 0, 1, 1], [], []>} : vector<8x8xbf16>, vector<8x8xbf16>, vector<8x8xf32> -> vector<8x8xf32>
      %65 = arith.addf %61, %64 : vector<8x8xf32>
      %c0_35 = arith.constant 0 : index
      %c0_36 = arith.constant 0 : index
      %66 = vector.load %arg10[%c0_35, %c0_36] : memref<8x32xf32, #tpu.memory_space<vmem>>, vector<8x8xf32>
      tpu.vector_store %arg10[%c0_35, %c0_36], %65 {strides = array<i32>} : memref<8x32xf32, #tpu.memory_space<vmem>>, vector<8x8xf32>,
      %c0_37 = arith.constant 0 : index
      %c0_38 = arith.constant 0 : index
      %c0_39 = arith.constant 0 : index
      %67 = vector.load %arg8[%c0_37, %c0_38, %c0_39] : memref<4x8x1xf32, #tpu.memory_space<vmem>>, vector<1x8x1xf32>
      %68 = vector.shape_cast %67 : vector<1x8x1xf32> to vector<8x1xf32>
      %69 = vector.shape_cast %44 : vector<8x1xf32> to vector<1x8x1xf32>
      tpu.vector_store %arg8[%c0_37, %c0_38, %c0_39], %69 {strides = array<i32>} : memref<4x8x1xf32, #tpu.memory_space<vmem>>, vector<1x8x1xf32>,
      %70 = vector.extract_strided_slice %14 {offsets = [0, 8], sizes = [8, 8], strides = [1, 1]} : vector<8x32xbf16> to vector<8x8xbf16>
      %71 = vector.extract_strided_slice %16 {offsets = [0, 8], sizes = [8, 8], strides = [1, 1]} : vector<8x32xbf16> to vector<8x8xbf16>
      %cst_40 = arith.constant dense<0.000000e+00> : vector<8x8xf32>
      %72 = tpu.matmul %70, %71, %cst_40 {dimension_numbers = #tpu.dot_dimension_numbers<[1], [1], [0], [0], [0, 0, 1, 0], [], []>} : vector<8x8xbf16>, vector<8x8xbf16>, vector<8x8xf32> -> vector<8x8xf32>
      %cst_41 = arith.constant 0.353553385 : f32
      %73 = vector.broadcast %cst_41 : f32 to vector<8x8xf32>
      %74 = arith.mulf %72, %73 : vector<8x8xf32>
      %75 = arith.addf %74, %33 : vector<8x8xf32>
      %c1 = arith.constant 1 : index
      %c0_42 = arith.constant 0 : index
      %c0_43 = arith.constant 0 : index
      %76 = vector.load %arg8[%c1, %c0_42, %c0_43] : memref<4x8x1xf32, #tpu.memory_space<vmem>>, vector<1x8x1xf32>
      %77 = vector.shape_cast %76 : vector<1x8x1xf32> to vector<8x1xf32>
      %cst_44 = arith.constant dense<0xFF800000> : vector<8xf32>
      %78 = vector.multi_reduction <maximumf>, %75, %cst_44 [1] : vector<8x8xf32> to vector<8xf32>
      %79 = vector.shape_cast %78 : vector<8xf32> to vector<8x1xf32>
      %80 = arith.maximumf %77, %79 : vector<8x1xf32>
      %81 = arith.subf %77, %80 : vector<8x1xf32>
      %82 = math.exp %81 : vector<8x1xf32>
      %83 = vector.broadcast %80 : vector<8x1xf32> to vector<8x8xf32>
      %84 = arith.subf %75, %83 : vector<8x8xf32>
      %85 = math.exp %84 : vector<8x8xf32>
      %c1_45 = arith.constant 1 : index
      %c0_46 = arith.constant 0 : index
      %c0_47 = arith.constant 0 : index
      %86 = vector.load %arg9[%c1_45, %c0_46, %c0_47] : memref<4x8x1xf32, #tpu.memory_space<vmem>>, vector<1x8x1xf32>
      %87 = vector.shape_cast %86 : vector<1x8x1xf32> to vector<8x1xf32>
      %88 = arith.mulf %82, %87 : vector<8x1xf32>
      %cst_48 = arith.constant dense<0.000000e+00> : vector<8xf32>
      %89 = vector.multi_reduction <add>, %85, %cst_48 [1] : vector<8x8xf32> to vector<8xf32>
      %90 = vector.shape_cast %89 : vector<8xf32> to vector<8x1xf32>
      %91 = arith.addf %88, %90 : vector<8x1xf32>
      %c1_49 = arith.constant 1 : index
      %c0_50 = arith.constant 0 : index
      %c0_51 = arith.constant 0 : index
      %92 = vector.load %arg9[%c1_49, %c0_50, %c0_51] : memref<4x8x1xf32, #tpu.memory_space<vmem>>, vector<1x8x1xf32>
      %93 = vector.shape_cast %92 : vector<1x8x1xf32> to vector<8x1xf32>
      %94 = vector.shape_cast %91 : vector<8x1xf32> to vector<1x8x1xf32>
      tpu.vector_store %arg9[%c1_49, %c0_50, %c0_51], %94 {strides = array<i32>} : memref<4x8x1xf32, #tpu.memory_space<vmem>>, vector<1x8x1xf32>,
      %c0_52 = arith.constant 0 : index
      %c8 = arith.constant 8 : index
      %95 = vector.load %arg10[%c0_52, %c8] : memref<8x32xf32, #tpu.memory_space<vmem>>, vector<8x8xf32>
      %96 = vector.broadcast %82 : vector<8x1xf32> to vector<8x8xf32>
      %97 = arith.mulf %96, %95 : vector<8x8xf32>
      %98 = arith.truncf %85 : vector<8x8xf32> to vector<8x8xbf16>
      %99 = vector.extract_strided_slice %18 {offsets = [0, 8], sizes = [8, 8], strides = [1, 1]} : vector<8x32xbf16> to vector<8x8xbf16>
      %cst_53 = arith.constant dense<0.000000e+00> : vector<8x8xf32>
      %100 = tpu.matmul %98, %99, %cst_53 {dimension_numbers = #tpu.dot_dimension_numbers<[1], [0], [0], [1], [0, 0, 1, 1], [], []>} : vector<8x8xbf16>, vector<8x8xbf16>, vector<8x8xf32> -> vector<8x8xf32>
      %101 = arith.addf %97, %100 : vector<8x8xf32>
      %c0_54 = arith.constant 0 : index
      %c8_55 = arith.constant 8 : index
      %102 = vector.load %arg10[%c0_54, %c8_55] : memref<8x32xf32, #tpu.memory_space<vmem>>, vector<8x8xf32>
      tpu.vector_store %arg10[%c0_54, %c8_55], %101 {strides = array<i32>} : memref<8x32xf32, #tpu.memory_space<vmem>>, vector<8x8xf32>,
      %c1_56 = arith.constant 1 : index
      %c0_57 = arith.constant 0 : index
      %c0_58 = arith.constant 0 : index
      %103 = vector.load %arg8[%c1_56, %c0_57, %c0_58] : memref<4x8x1xf32, #tpu.memory_space<vmem>>, vector<1x8x1xf32>
      %104 = vector.shape_cast %103 : vector<1x8x1xf32> to vector<8x1xf32>
      %105 = vector.shape_cast %80 : vector<8x1xf32> to vector<1x8x1xf32>
      tpu.vector_store %arg8[%c1_56, %c0_57, %c0_58], %105 {strides = array<i32>} : memref<4x8x1xf32, #tpu.memory_space<vmem>>, vector<1x8x1xf32>,
      %106 = vector.extract_strided_slice %14 {offsets = [0, 16], sizes = [8, 8], strides = [1, 1]} : vector<8x32xbf16> to vector<8x8xbf16>
      %107 = vector.extract_strided_slice %16 {offsets = [0, 16], sizes = [8, 8], strides = [1, 1]} : vector<8x32xbf16> to vector<8x8xbf16>
      %cst_59 = arith.constant dense<0.000000e+00> : vector<8x8xf32>
      %108 = tpu.matmul %106, %107, %cst_59 {dimension_numbers = #tpu.dot_dimension_numbers<[1], [1], [0], [0], [0, 0, 1, 0], [], []>} : vector<8x8xbf16>, vector<8x8xbf16>, vector<8x8xf32> -> vector<8x8xf32>
      %cst_60 = arith.constant 0.353553385 : f32
      %109 = vector.broadcast %cst_60 : f32 to vector<8x8xf32>
      %110 = arith.mulf %108, %109 : vector<8x8xf32>
      %111 = arith.addf %110, %33 : vector<8x8xf32>
      %c2 = arith.constant 2 : index
      %c0_61 = arith.constant 0 : index
      %c0_62 = arith.constant 0 : index
      %112 = vector.load %arg8[%c2, %c0_61, %c0_62] : memref<4x8x1xf32, #tpu.memory_space<vmem>>, vector<1x8x1xf32>
      %113 = vector.shape_cast %112 : vector<1x8x1xf32> to vector<8x1xf32>
      %cst_63 = arith.constant dense<0xFF800000> : vector<8xf32>
      %114 = vector.multi_reduction <maximumf>, %111, %cst_63 [1] : vector<8x8xf32> to vector<8xf32>
      %115 = vector.shape_cast %114 : vector<8xf32> to vector<8x1xf32>
      %116 = arith.maximumf %113, %115 : vector<8x1xf32>
      %117 = arith.subf %113, %116 : vector<8x1xf32>
      %118 = math.exp %117 : vector<8x1xf32>
      %119 = vector.broadcast %116 : vector<8x1xf32> to vector<8x8xf32>
      %120 = arith.subf %111, %119 : vector<8x8xf32>
      %121 = math.exp %120 : vector<8x8xf32>
      %c2_64 = arith.constant 2 : index
      %c0_65 = arith.constant 0 : index
      %c0_66 = arith.constant 0 : index
      %122 = vector.load %arg9[%c2_64, %c0_65, %c0_66] : memref<4x8x1xf32, #tpu.memory_space<vmem>>, vector<1x8x1xf32>
      %123 = vector.shape_cast %122 : vector<1x8x1xf32> to vector<8x1xf32>
      %124 = arith.mulf %118, %123 : vector<8x1xf32>
      %cst_67 = arith.constant dense<0.000000e+00> : vector<8xf32>
      %125 = vector.multi_reduction <add>, %121, %cst_67 [1] : vector<8x8xf32> to vector<8xf32>
      %126 = vector.shape_cast %125 : vector<8xf32> to vector<8x1xf32>
      %127 = arith.addf %124, %126 : vector<8x1xf32>
      %c2_68 = arith.constant 2 : index
      %c0_69 = arith.constant 0 : index
      %c0_70 = arith.constant 0 : index
      %128 = vector.load %arg9[%c2_68, %c0_69, %c0_70] : memref<4x8x1xf32, #tpu.memory_space<vmem>>, vector<1x8x1xf32>
      %129 = vector.shape_cast %128 : vector<1x8x1xf32> to vector<8x1xf32>
      %130 = vector.shape_cast %127 : vector<8x1xf32> to vector<1x8x1xf32>
      tpu.vector_store %arg9[%c2_68, %c0_69, %c0_70], %130 {strides = array<i32>} : memref<4x8x1xf32, #tpu.memory_space<vmem>>, vector<1x8x1xf32>,
      %c0_71 = arith.constant 0 : index
      %c16 = arith.constant 16 : index
      %131 = vector.load %arg10[%c0_71, %c16] : memref<8x32xf32, #tpu.memory_space<vmem>>, vector<8x8xf32>
      %132 = vector.broadcast %118 : vector<8x1xf32> to vector<8x8xf32>
      %133 = arith.mulf %132, %131 : vector<8x8xf32>
      %134 = arith.truncf %121 : vector<8x8xf32> to vector<8x8xbf16>
      %135 = vector.extract_strided_slice %18 {offsets = [0, 16], sizes = [8, 8], strides = [1, 1]} : vector<8x32xbf16> to vector<8x8xbf16>
      %cst_72 = arith.constant dense<0.000000e+00> : vector<8x8xf32>
      %136 = tpu.matmul %134, %135, %cst_72 {dimension_numbers = #tpu.dot_dimension_numbers<[1], [0], [0], [1], [0, 0, 1, 1], [], []>} : vector<8x8xbf16>, vector<8x8xbf16>, vector<8x8xf32> -> vector<8x8xf32>
      %137 = arith.addf %133, %136 : vector<8x8xf32>
      %c0_73 = arith.constant 0 : index
      %c16_74 = arith.constant 16 : index
      %138 = vector.load %arg10[%c0_73, %c16_74] : memref<8x32xf32, #tpu.memory_space<vmem>>, vector<8x8xf32>
      tpu.vector_store %arg10[%c0_73, %c16_74], %137 {strides = array<i32>} : memref<8x32xf32, #tpu.memory_space<vmem>>, vector<8x8xf32>,
      %c2_75 = arith.constant 2 : index
      %c0_76 = arith.constant 0 : index
      %c0_77 = arith.constant 0 : index
      %139 = vector.load %arg8[%c2_75, %c0_76, %c0_77] : memref<4x8x1xf32, #tpu.memory_space<vmem>>, vector<1x8x1xf32>
      %140 = vector.shape_cast %139 : vector<1x8x1xf32> to vector<8x1xf32>
      %141 = vector.shape_cast %116 : vector<8x1xf32> to vector<1x8x1xf32>
      tpu.vector_store %arg8[%c2_75, %c0_76, %c0_77], %141 {strides = array<i32>} : memref<4x8x1xf32, #tpu.memory_space<vmem>>, vector<1x8x1xf32>,
      %142 = vector.extract_strided_slice %14 {offsets = [0, 24], sizes = [8, 8], strides = [1, 1]} : vector<8x32xbf16> to vector<8x8xbf16>
      %143 = vector.extract_strided_slice %16 {offsets = [0, 24], sizes = [8, 8], strides = [1, 1]} : vector<8x32xbf16> to vector<8x8xbf16>
      %cst_78 = arith.constant dense<0.000000e+00> : vector<8x8xf32>
      %144 = tpu.matmul %142, %143, %cst_78 {dimension_numbers = #tpu.dot_dimension_numbers<[1], [1], [0], [0], [0, 0, 1, 0], [], []>} : vector<8x8xbf16>, vector<8x8xbf16>, vector<8x8xf32> -> vector<8x8xf32>
      %cst_79 = arith.constant 0.353553385 : f32
      %145 = vector.broadcast %cst_79 : f32 to vector<8x8xf32>
      %146 = arith.mulf %144, %145 : vector<8x8xf32>
      %147 = arith.addf %146, %33 : vector<8x8xf32>
      %c3 = arith.constant 3 : index
      %c0_80 = arith.constant 0 : index
      %c0_81 = arith.constant 0 : index
      %148 = vector.load %arg8[%c3, %c0_80, %c0_81] : memref<4x8x1xf32, #tpu.memory_space<vmem>>, vector<1x8x1xf32>
      %149 = vector.shape_cast %148 : vector<1x8x1xf32> to vector<8x1xf32>
      %cst_82 = arith.constant dense<0xFF800000> : vector<8xf32>
      %150 = vector.multi_reduction <maximumf>, %147, %cst_82 [1] : vector<8x8xf32> to vector<8xf32>
      %151 = vector.shape_cast %150 : vector<8xf32> to vector<8x1xf32>
      %152 = arith.maximumf %149, %151 : vector<8x1xf32>
      %153 = arith.subf %149, %152 : vector<8x1xf32>
      %154 = math.exp %153 : vector<8x1xf32>
      %155 = vector.broadcast %152 : vector<8x1xf32> to vector<8x8xf32>
      %156 = arith.subf %147, %155 : vector<8x8xf32>
      %157 = math.exp %156 : vector<8x8xf32>
      %c3_83 = arith.constant 3 : index
      %c0_84 = arith.constant 0 : index
      %c0_85 = arith.constant 0 : index
      %158 = vector.load %arg9[%c3_83, %c0_84, %c0_85] : memref<4x8x1xf32, #tpu.memory_space<vmem>>, vector<1x8x1xf32>
      %159 = vector.shape_cast %158 : vector<1x8x1xf32> to vector<8x1xf32>
      %160 = arith.mulf %154, %159 : vector<8x1xf32>
      %cst_86 = arith.constant dense<0.000000e+00> : vector<8xf32>
      %161 = vector.multi_reduction <add>, %157, %cst_86 [1] : vector<8x8xf32> to vector<8xf32>
      %162 = vector.shape_cast %161 : vector<8xf32> to vector<8x1xf32>
      %163 = arith.addf %160, %162 : vector<8x1xf32>
      %c3_87 = arith.constant 3 : index
      %c0_88 = arith.constant 0 : index
      %c0_89 = arith.constant 0 : index
      %164 = vector.load %arg9[%c3_87, %c0_88, %c0_89] : memref<4x8x1xf32, #tpu.memory_space<vmem>>, vector<1x8x1xf32>
      %165 = vector.shape_cast %164 : vector<1x8x1xf32> to vector<8x1xf32>
      %166 = vector.shape_cast %163 : vector<8x1xf32> to vector<1x8x1xf32>
      tpu.vector_store %arg9[%c3_87, %c0_88, %c0_89], %166 {strides = array<i32>} : memref<4x8x1xf32, #tpu.memory_space<vmem>>, vector<1x8x1xf32>,
      %c0_90 = arith.constant 0 : index
      %c24 = arith.constant 24 : index
      %167 = vector.load %arg10[%c0_90, %c24] : memref<8x32xf32, #tpu.memory_space<vmem>>, vector<8x8xf32>
      %168 = vector.broadcast %154 : vector<8x1xf32> to vector<8x8xf32>
      %169 = arith.mulf %168, %167 : vector<8x8xf32>
      %170 = arith.truncf %157 : vector<8x8xf32> to vector<8x8xbf16>
      %171 = vector.extract_strided_slice %18 {offsets = [0, 24], sizes = [8, 8], strides = [1, 1]} : vector<8x32xbf16> to vector<8x8xbf16>
      %cst_91 = arith.constant dense<0.000000e+00> : vector<8x8xf32>
      %172 = tpu.matmul %170, %171, %cst_91 {dimension_numbers = #tpu.dot_dimension_numbers<[1], [0], [0], [1], [0, 0, 1, 1], [], []>} : vector<8x8xbf16>, vector<8x8xbf16>, vector<8x8xf32> -> vector<8x8xf32>
      %173 = arith.addf %169, %172 : vector<8x8xf32>
      %c0_92 = arith.constant 0 : index
      %c24_93 = arith.constant 24 : index
      %174 = vector.load %arg10[%c0_92, %c24_93] : memref<8x32xf32, #tpu.memory_space<vmem>>, vector<8x8xf32>
      tpu.vector_store %arg10[%c0_92, %c24_93], %173 {strides = array<i32>} : memref<8x32xf32, #tpu.memory_space<vmem>>, vector<8x8xf32>,
      %c3_94 = arith.constant 3 : index
      %c0_95 = arith.constant 0 : index
      %c0_96 = arith.constant 0 : index
      %175 = vector.load %arg8[%c3_94, %c0_95, %c0_96] : memref<4x8x1xf32, #tpu.memory_space<vmem>>, vector<1x8x1xf32>
      %176 = vector.shape_cast %175 : vector<1x8x1xf32> to vector<8x1xf32>
      %177 = vector.shape_cast %152 : vector<8x1xf32> to vector<1x8x1xf32>
      tpu.vector_store %arg8[%c3_94, %c0_95, %c0_96], %177 {strides = array<i32>} : memref<4x8x1xf32, #tpu.memory_space<vmem>>, vector<1x8x1xf32>,
    } else {
    }
    %c0_i32_4 = arith.constant 0 : i32
    %10 = arith.cmpi eq, %arg2, %c0_i32_4 : i32
    %11 = arith.extui %10 : i1 to i32
    %c0_i32_5 = arith.constant 0 : i32
    %12 = arith.cmpi ne, %11, %c0_i32_5 : i32
    scf.if %12 {
      %c0 = arith.constant 0 : index
      %c0_6 = arith.constant 0 : index
      %13 = vector.load %arg10[%c0, %c0_6] : memref<8x32xf32, #tpu.memory_space<vmem>>, vector<8x8xf32>
      %c0_7 = arith.constant 0 : index
      %c0_8 = arith.constant 0 : index
      %c0_9 = arith.constant 0 : index
      %14 = vector.load %arg9[%c0_7, %c0_8, %c0_9] : memref<4x8x1xf32, #tpu.memory_space<vmem>>, vector<1x8x1xf32>
      %15 = vector.shape_cast %14 : vector<1x8x1xf32> to vector<8x1xf32>
      %16 = tpu.reciprocal %15 {approx = true} : vector<8x1xf32> -> vector<8x1xf32>
      %17 = vector.broadcast %16 : vector<8x1xf32> to vector<8x8xf32>
      %18 = arith.mulf %13, %17 : vector<8x8xf32>
      %c0_10 = arith.constant 0 : index
      %c0_11 = arith.constant 0 : index
      %19 = vector.load %arg10[%c0_10, %c0_11] : memref<8x32xf32, #tpu.memory_space<vmem>>, vector<8x8xf32>
      tpu.vector_store %arg10[%c0_10, %c0_11], %18 {strides = array<i32>} : memref<8x32xf32, #tpu.memory_space<vmem>>, vector<8x8xf32>,
      %c0_12 = arith.constant 0 : index
      %c8 = arith.constant 8 : index
      %20 = vector.load %arg10[%c0_12, %c8] : memref<8x32xf32, #tpu.memory_space<vmem>>, vector<8x8xf32>
      %c1 = arith.constant 1 : index
      %c0_13 = arith.constant 0 : index
      %c0_14 = arith.constant 0 : index
      %21 = vector.load %arg9[%c1, %c0_13, %c0_14] : memref<4x8x1xf32, #tpu.memory_space<vmem>>, vector<1x8x1xf32>
      %22 = vector.shape_cast %21 : vector<1x8x1xf32> to vector<8x1xf32>
      %23 = tpu.reciprocal %22 {approx = true} : vector<8x1xf32> -> vector<8x1xf32>
      %24 = vector.broadcast %23 : vector<8x1xf32> to vector<8x8xf32>
      %25 = arith.mulf %20, %24 : vector<8x8xf32>
      %c0_15 = arith.constant 0 : index
      %c8_16 = arith.constant 8 : index
      %26 = vector.load %arg10[%c0_15, %c8_16] : memref<8x32xf32, #tpu.memory_space<vmem>>, vector<8x8xf32>
      tpu.vector_store %arg10[%c0_15, %c8_16], %25 {strides = array<i32>} : memref<8x32xf32, #tpu.memory_space<vmem>>, vector<8x8xf32>,
      %c0_17 = arith.constant 0 : index
      %c16 = arith.constant 16 : index
      %27 = vector.load %arg10[%c0_17, %c16] : memref<8x32xf32, #tpu.memory_space<vmem>>, vector<8x8xf32>
      %c2 = arith.constant 2 : index
      %c0_18 = arith.constant 0 : index
      %c0_19 = arith.constant 0 : index
      %28 = vector.load %arg9[%c2, %c0_18, %c0_19] : memref<4x8x1xf32, #tpu.memory_space<vmem>>, vector<1x8x1xf32>
      %29 = vector.shape_cast %28 : vector<1x8x1xf32> to vector<8x1xf32>
      %30 = tpu.reciprocal %29 {approx = true} : vector<8x1xf32> -> vector<8x1xf32>
      %31 = vector.broadcast %30 : vector<8x1xf32> to vector<8x8xf32>
      %32 = arith.mulf %27, %31 : vector<8x8xf32>
      %c0_20 = arith.constant 0 : index
      %c16_21 = arith.constant 16 : index
      %33 = vector.load %arg10[%c0_20, %c16_21] : memref<8x32xf32, #tpu.memory_space<vmem>>, vector<8x8xf32>
      tpu.vector_store %arg10[%c0_20, %c16_21], %32 {strides = array<i32>} : memref<8x32xf32, #tpu.memory_space<vmem>>, vector<8x8xf32>,
      %c0_22 = arith.constant 0 : index
      %c24 = arith.constant 24 : index
      %34 = vector.load %arg10[%c0_22, %c24] : memref<8x32xf32, #tpu.memory_space<vmem>>, vector<8x8xf32>
      %c3 = arith.constant 3 : index
      %c0_23 = arith.constant 0 : index
      %c0_24 = arith.constant 0 : index
      %35 = vector.load %arg9[%c3, %c0_23, %c0_24] : memref<4x8x1xf32, #tpu.memory_space<vmem>>, vector<1x8x1xf32>
      %36 = vector.shape_cast %35 : vector<1x8x1xf32> to vector<8x1xf32>
      %37 = tpu.reciprocal %36 {approx = true} : vector<8x1xf32> -> vector<8x1xf32>
      %38 = vector.broadcast %37 : vector<8x1xf32> to vector<8x8xf32>
      %39 = arith.mulf %34, %38 : vector<8x8xf32>
      %c0_25 = arith.constant 0 : index
      %c24_26 = arith.constant 24 : index
      %40 = vector.load %arg10[%c0_25, %c24_26] : memref<8x32xf32, #tpu.memory_space<vmem>>, vector<8x8xf32>
      tpu.vector_store %arg10[%c0_25, %c24_26], %39 {strides = array<i32>} : memref<8x32xf32, #tpu.memory_space<vmem>>, vector<8x8xf32>,
      %c0_27 = arith.constant 0 : index
      %c0_28 = arith.constant 0 : index
      %41 = vector.load %arg10[%c0_27, %c0_28] : memref<8x32xf32, #tpu.memory_space<vmem>>, vector<8x32xf32>
      %42 = arith.truncf %41 : vector<8x32xf32> to vector<8x32xbf16>
      %c0_29 = arith.constant 0 : index
      %c0_30 = arith.constant 0 : index
      %c0_31 = arith.constant 0 : index
      %43 = vector.load %arg7[%c0_29, %c0_30, %c0_31] : memref<1x8x32xbf16, #tpu.memory_space<vmem>>, vector<1x8x32xbf16>
      %44 = vector.shape_cast %43 : vector<1x8x32xbf16> to vector<8x32xbf16>
      %45 = vector.shape_cast %42 : vector<8x32xbf16> to vector<1x8x32xbf16>
      tpu.vector_store %arg7[%c0_29, %c0_30, %c0_31], %45 {strides = array<i32>} : memref<1x8x32xbf16, #tpu.memory_space<vmem>>, vector<1x8x32xbf16>,
    } else {
    }
    return
  }
  func.func @transform_0(%arg0: i32, %arg1: i32, %arg2: i32) -> (i32, i32, i32) {
    %c0_i32 = arith.constant 0 : i32
    %c0_i32_0 = arith.constant 0 : i32
    return %arg0, %arg1, %c0_i32 : i32, i32, i32
  }
  func.func @transform_1(%arg0: i32, %arg1: i32, %arg2: i32) -> (i32, i32, i32) {
    %c0_i32 = arith.constant 0 : i32
    %c0_i32_0 = arith.constant 0 : i32
    return %arg0, %arg2, %c0_i32 : i32, i32, i32
  }
  func.func @transform_2(%arg0: i32, %arg1: i32, %arg2: i32) -> (i32, i32, i32) {
    %c0_i32 = arith.constant 0 : i32
    %c0_i32_0 = arith.constant 0 : i32
    return %arg0, %arg2, %c0_i32 : i32, i32, i32
  }
  func.func @transform_3(%arg0: i32, %arg1: i32, %arg2: i32) -> (i32, i32, i32) {
    %c0_i32 = arith.constant 0 : i32
    %c0_i32_0 = arith.constant 0 : i32
    return %arg0, %c0_i32, %arg2 : i32, i32, i32
  }
  func.func @transform_4(%arg0: i32, %arg1: i32, %arg2: i32) -> (i32, i32, i32) {
    %c0_i32 = arith.constant 0 : i32
    %c0_i32_0 = arith.constant 0 : i32
    return %arg0, %arg1, %c0_i32 : i32, i32, i32
  }
}

module attributes {stable_mosaic.version = 11 : i64} {
  func.func @_linear_kernel(%arg0: i32, %arg1: i32, %arg2: memref<16x32xf32, #tpu.memory_space<vmem>>, %arg3: memref<32x128xbf16, #tpu.memory_space<vmem>>, %arg4: memref<1x128xf32, #tpu.memory_space<vmem>>, %arg5: memref<16x128xf32, #tpu.memory_space<vmem>>) attributes {dimension_semantics = [#tpu.dimension_semantics<parallel>, #tpu.dimension_semantics<parallel>], iteration_bounds = array<i64: 1, 1>, scalar_prefetch = 0 : i64, scratch_operands = 0 : i64, tpu.core_type = #tpu.core_type<tc>, window_params = [{transform_indices = @transform_0, window_bounds = array<i64: 16, 32>}, {transform_indices = @transform_1, window_bounds = array<i64: 32, 128>}, {transform_indices = @transform_2, window_bounds = array<i64: 1, 128>}, {transform_indices = @transform_3, window_bounds = array<i64: 16, 128>}]} {
    %c0 = arith.constant 0 : index
    %c0_0 = arith.constant 0 : index
    %0 = vector.load %arg2[%c0, %c0_0] : memref<16x32xf32, #tpu.memory_space<vmem>>, vector<16x32xf32>
    %1 = arith.truncf %0 : vector<16x32xf32> to vector<16x32xbf16>
    %c0_1 = arith.constant 0 : index
    %c0_2 = arith.constant 0 : index
    %2 = vector.load %arg3[%c0_1, %c0_2] : memref<32x128xbf16, #tpu.memory_space<vmem>>, vector<32x128xbf16>
    %cst = arith.constant dense<0.000000e+00> : vector<16x128xf32>
    %3 = tpu.matmul %1, %2, %cst {dimension_numbers = #tpu.dot_dimension_numbers<[1], [0], [0], [1], [0, 0, 1, 1], [], []>} : vector<16x32xbf16>, vector<32x128xbf16>, vector<16x128xf32> -> vector<16x128xf32>
    %c0_3 = arith.constant 0 : index
    %c0_4 = arith.constant 0 : index
    %4 = vector.load %arg4[%c0_3, %c0_4] : memref<1x128xf32, #tpu.memory_space<vmem>>, vector<1x128xf32>
    %5 = vector.broadcast %4 : vector<1x128xf32> to vector<16x128xf32>
    %6 = arith.addf %3, %5 : vector<16x128xf32>
    %c0_5 = arith.constant 0 : index
    %c0_6 = arith.constant 0 : index
    %7 = vector.load %arg5[%c0_5, %c0_6] : memref<16x128xf32, #tpu.memory_space<vmem>>, vector<16x128xf32>
    tpu.vector_store %arg5[%c0_5, %c0_6], %6 {strides = array<i32>} : memref<16x128xf32, #tpu.memory_space<vmem>>, vector<16x128xf32>,
    return
  }
  func.func @transform_0(%arg0: i32, %arg1: i32) -> (i32, i32) {
    %c0_i32 = arith.constant 0 : i32
    %c0_i32_0 = arith.constant 0 : i32
    return %arg0, %c0_i32 : i32, i32
  }
  func.func @transform_1(%arg0: i32, %arg1: i32) -> (i32, i32) {
    %c0_i32 = arith.constant 0 : i32
    %c0_i32_0 = arith.constant 0 : i32
    return %c0_i32, %arg1 : i32, i32
  }
  func.func @transform_2(%arg0: i32, %arg1: i32) -> (i32, i32) {
    %c0_i32 = arith.constant 0 : i32
    %c0_i32_0 = arith.constant 0 : i32
    return %c0_i32, %arg1 : i32, i32
  }
  func.func @transform_3(%arg0: i32, %arg1: i32) -> (i32, i32) {
    %c0_i32 = arith.constant 0 : i32
    return %arg0, %arg1 : i32, i32
  }
}

</mosaic_0001>

<llo_original>
// kernel: transformer_forward.27
$region0: #{transformer_forward.27}
  #allocation0 [shape = 'u32[]', space=smem, size = 0x4, offset = 0x4, fixed_abs, tag = 'smem constant byte address 0x4 - core index']
  #allocation1 [shape = 'u32[72,128]{1,0:T(1,128)}', space=vmem, size = 0x9000, scoped, tag = 'internal scratch']
  %s0 = inlined_call_operand.vmem [shape: bf16[16,32], index: 0, kind: input, shape index: {}]
  %s1 = inlined_call_operand.vmem [shape: bf16[32,32], index: 1, kind: input, shape index: {}]
  %s2 = inlined_call_operand.vmem [shape: f32[1,32], index: 2, kind: input, shape index: {}]
  %s3 = inlined_call_operand.vmem [shape: f32[16,32], index: 3, kind: input, shape index: {}]
  %s4 = inlined_call_operand.vmem [shape: f32[1,32], index: 4, kind: input, shape index: {}]
  %s5 = inlined_call_operand.vmem [shape: f32[1,32], index: 5, kind: input, shape index: {}]
  %s6 = inlined_call_operand.vmem [shape: f32[16,32], index: 6, kind: output, shape index: {}]
  %s7 = sld [smem:[#allocation0]]
  $region34: #{transformer_forward.27} parent=0
    _
  %s9 = ssub.s32 1, %s7
  %s10 = scalar_select 0, %s9, %s7
  // Predicated region
  $region2: #{transformer_forward.27} parent=0 // pred_check
    _
  $region3: #{transformer_forward.27} parent=0 // pred_check_branch
    %12 = sbr.rel (0) target = $region5
  $region4: #{transformer_forward.27} parent=0 // pred_region
    _
  $region5: #{transformer_forward.27} parent=0 // pred_fallthru
    _
  // Predicated region
  $region6: #{transformer_forward.27} parent=0 // pred_check
    _
  $region7: #{transformer_forward.27} parent=0 // pred_check_branch
    %14 = sbr.rel (0) target = $region9
  $region8: #{transformer_forward.27} parent=0 // pred_region
    _
  $region9: #{transformer_forward.27} parent=0 // pred_fallthru
    _
  // Predicated region
  $region10: #{transformer_forward.27} parent=0 // pred_check
    _
  $region11: #{transformer_forward.27} parent=0 // pred_check_branch
    %16 = sbr.rel (0) target = $region13
  $region12: #{transformer_forward.27} parent=0 // pred_region
    _
  $region13: #{transformer_forward.27} parent=0 // pred_fallthru
    _
  // Predicated region
  $region14: #{transformer_forward.27} parent=0 // pred_check
    _
  $region15: #{transformer_forward.27} parent=0 // pred_check_branch
    %18 = sbr.rel (0) target = $region17
  $region16: #{transformer_forward.27} parent=0 // pred_region
    _
  $region17: #{transformer_forward.27} parent=0 // pred_fallthru
    _
  // Predicated region
  $region18: #{transformer_forward.27} parent=0 // pred_check
    _
  $region19: #{transformer_forward.27} parent=0 // pred_check_branch
    %20 = sbr.rel (0) target = $region21
  $region20: #{transformer_forward.27} parent=0 // pred_region
    _
  $region21: #{transformer_forward.27} parent=0 // pred_fallthru
    _
  // Predicated region
  $region22: #{transformer_forward.27} parent=0 // pred_check
    _
  $region23: #{transformer_forward.27} parent=0 // pred_check_branch
    %22 = sbr.rel (0) target = $region25
  $region24: #{transformer_forward.27} parent=0 // pred_region
    _
  $region25: #{transformer_forward.27} parent=0 // pred_fallthru
    _
  %v24 = vld [vmem:[%s0] sm:$0xf]
  %v25 = vld [vmem:[%s0 + $0x4] sm:$0xf]
  %v26 = vld [vmem:[%s1] sm:$0xf]
  %v27 = vld [vmem:[%s1 + $0x4] sm:$0xf]
  %v28 = vld [vmem:[%s1 + $0x8] sm:$0xf]
  %v29 = vld [vmem:[%s1 + $0xc] sm:$0xf]
  %v30 = vld [vmem:[%s2] sm:$0x1]
  %v32 = vperm.slane %v30, 0
  %v36 = vunpack.c.l.b16 %v24
  %v37 = vunpack.c.l.b16 %v25
  %v38 = vpack.c.b16 %v37, %v36
  %v43 = vunpack.c.l.b16 %v26
  %v44 = vunpack.c.l.b16 %v27
  %v45 = vunpack.c.l.b16 %v28
  %v46 = vunpack.c.l.b16 %v29
  %v47 = vpack.c.b16 %v44, %v43
  %v48 = vpack.c.b16 %v46, %v45
  %vm51 = vcmask 261120
  %v53 = vsel %vm51, %v38, 0
  %55 = vmatpush.bf16.msra.mxu0 0
  %56 = vmatpush.bf16.msra.mxu0 0
  %57 = vmatpush.bf16.msra.mxu0 0
  %58 = vmatpush.bf16.msra.mxu0 0
  %59 = vmatpush.bf16.msra.mxu0 0
  %60 = vmatpush.bf16.msra.mxu0 0
  %61 = vmatpush.bf16.msra.mxu0 %v48
  %62 = vmatpush.bf16.msra.mxu0 %v47
  %63 = vmatmul.bf16.gmra.mxu0 %v53
  %v64 = vpop.f32.mrf.mxu0
  %v65 = vadd.f32 %v32, %v64
  %v66 = vpop.f32.mrf.mxu0
  %v67 = vadd.f32 %v32, %v66
  %68 = vdwg.mxu0
  %v69 = vld [vmem:[%s3] sm:$0xff]
  %v70 = vld [vmem:[%s3 + $0x8] sm:$0xff]
  %v71 = vadd.f32 %v65, %v69
  %v72 = vadd.f32 %v67, %v70
  %v73 = vsel %vm51, %v71, 0.0
  %74 = vadd.xlane.f32.xlu0 %v73
  %v75 = vpop.xlane.xlu0 %74
  %v76 = vsel %vm51, %v72, 0.0
  %77 = vadd.xlane.f32.xlu0 %v76
  %v78 = vpop.xlane.xlu0 %77
  %v79 = vrcp.pop 32.0
  %v80 = vmul.f32 32.0, %v79
  %v81 = vsub.f32 1.0, %v80
  %v82 = vmul.f32 %v79, %v81
  %v83 = vadd.f32 %v79, %v82
  %vm84 = vweird.f32 %v79
  %v85 = vsel %vm84, %v79, %v83
  %v86 = vmul.f32 %v75, %v85
  %v87 = vmul.f32 %v78, %v85
  %v88 = vsub.f32 %v71, %v86
  %v89 = vsub.f32 %v72, %v87
  %v90 = vmul.f32 %v88, %v88
  %v91 = vmul.f32 %v89, %v89
  %v92 = vsel %vm51, %v90, 0.0
  %93 = vadd.xlane.f32.xlu0 %v92
  %v94 = vpop.xlane.xlu0 %93
  %v95 = vsel %vm51, %v91, 0.0
  %96 = vadd.xlane.f32.xlu0 %v95
  %v97 = vpop.xlane.xlu0 %96
  %v98 = vmul.f32 %v94, %v85
  %v99 = vmul.f32 %v97, %v85
  %v100 = vadd.f32 %v98, 1e-05
  %v101 = vadd.f32 %v99, 1e-05
  %v102 = vrsqrt.pop %v100
  %v103 = vmul.f32 %v102, %v100
  %v104 = vmul.f32 %v103, %v102
  %v105 = vmul.f32 0.5, %v104
  %v106 = vsub.f32 1.5, %v105
  %v107 = vmul.f32 %v102, %v106
  %vm108 = vweird.f32 %v100
  %vm109 = vweird.f32 %v102
  %vm110 = vmor %vm108, %vm109
  %v111 = vsel %vm110, %v102, %v107
  %v112 = vrsqrt.pop %v101
  %v113 = vmul.f32 %v112, %v101
  %v114 = vmul.f32 %v113, %v112
  %v115 = vmul.f32 0.5, %v114
  %v116 = vsub.f32 1.5, %v115
  %v117 = vmul.f32 %v112, %v116
  %vm118 = vweird.f32 %v101
  %vm119 = vweird.f32 %v112
  %vm120 = vmor %vm118, %vm119
  %v121 = vsel %vm120, %v112, %v117
  %v122 = vmul.f32 %v88, %v111
  %v123 = vmul.f32 %v89, %v121
  %v124 = vld [vmem:[%s4] sm:$0x1]
  %v126 = vperm.slane %v124, 0
  %v128 = vmul.f32 %v122, %v126
  %v129 = vmul.f32 %v123, %v126
  %v130 = vld [vmem:[%s5] sm:$0x1]
  %v132 = vperm.slane %v130, 0
  %v134 = vadd.f32 %v128, %v132
  %v135 = vadd.f32 %v129, %v132
  %136 = vst.msk [vmem:[%s6] sm:$0xff] %vm51, %v134
  %137 = vst.msk [vmem:[%s6 + $0x8] sm:$0xff] %vm51, %v135
  // Predicated region
  $region26: #{transformer_forward.27} parent=0 // pred_check
    _
  $region27: #{transformer_forward.27} parent=0 // pred_check_branch
    %139 = sbr.rel (0) target = $region29
  $region28: #{transformer_forward.27} parent=0 // pred_region
    _
  $region29: #{transformer_forward.27} parent=0 // pred_fallthru
    _
  // Predicated region
  $region30: #{transformer_forward.27} parent=0 // pred_check
    _
  $region31: #{transformer_forward.27} parent=0 // pred_check_branch
    %141 = sbr.rel (0) target = $region33
  $region32: #{transformer_forward.27} parent=0 // pred_region
    _
  $region33: #{transformer_forward.27} parent=0 // pred_fallthru
    _

// kernel: transformer_forward.25
$region0: #{transformer_forward.25}
  #allocation0 [shape = 'u32[]', space=smem, size = 0x4, offset = 0x4, fixed_abs, tag = 'smem constant byte address 0x4 - core index']
  #allocation1 [shape = 'u32[72,128]{1,0:T(1,128)}', space=vmem, size = 0x9000, scoped, tag = 'internal scratch']
  %s0 = inlined_call_operand.vmem [shape: f32[16,32], index: 0, kind: input, shape index: {}]
  %s1 = inlined_call_operand.vmem [shape: bf16[32,96], index: 1, kind: input, shape index: {}]
  %s2 = inlined_call_operand.vmem [shape: f32[1,96], index: 2, kind: input, shape index: {}]
  %s3 = inlined_call_operand.vmem [shape: bf16[16,32], index: 3, kind: output, shape index: {0}]
  %s4 = inlined_call_operand.vmem [shape: bf16[16,32], index: 4, kind: output, shape index: {1}]
  %s5 = inlined_call_operand.vmem [shape: bf16[16,32], index: 5, kind: output, shape index: {2}]
  %6 = xla_tuple %s3, %s4, %s5
  %s7 = sld [smem:[#allocation0]]
  $region38: #{transformer_forward.25} parent=0
    _
  %s9 = ssub.s32 1, %s7
  %s10 = scalar_select 0, %s9, %s7
  // Predicated region
  $region2: #{transformer_forward.25} parent=0 // pred_check
    _
  $region3: #{transformer_forward.25} parent=0 // pred_check_branch
    %12 = sbr.rel (0) target = $region5
  $region4: #{transformer_forward.25} parent=0 // pred_region
    _
  $region5: #{transformer_forward.25} parent=0 // pred_fallthru
    _
  // Predicated region
  $region6: #{transformer_forward.25} parent=0 // pred_check
    _
  $region7: #{transformer_forward.25} parent=0 // pred_check_branch
    %14 = sbr.rel (0) target = $region9
  $region8: #{transformer_forward.25} parent=0 // pred_region
    _
  $region9: #{transformer_forward.25} parent=0 // pred_fallthru
    _
  // Predicated region
  $region10: #{transformer_forward.25} parent=0 // pred_check
    _
  $region11: #{transformer_forward.25} parent=0 // pred_check_branch
    %16 = sbr.rel (0) target = $region13
  $region12: #{transformer_forward.25} parent=0 // pred_region
    _
  $region13: #{transformer_forward.25} parent=0 // pred_fallthru
    _
  %v18 = vld [vmem:[%s0] sm:$0xff]
  %v19 = vld [vmem:[%s0 + $0x8] sm:$0xff]
  %v20 = vpack.c.bf16 %v19, %v18
  %v21 = vld [vmem:[%s1] sm:$0xf]
  %v22 = vld [vmem:[%s1 + $0x4] sm:$0xf]
  %v23 = vld [vmem:[%s1 + $0x8] sm:$0xf]
  %v24 = vld [vmem:[%s1 + $0xc] sm:$0xf]
  %v25 = vld [vmem:[%s2] sm:$0x1]
  %v27 = vperm.slane %v25, 0
  %v33 = vunpack.c.l.b16 %v21
  %v34 = vunpack.c.l.b16 %v22
  %v35 = vunpack.c.l.b16 %v23
  %v36 = vunpack.c.l.b16 %v24
  %v37 = vpack.c.b16 %v34, %v33
  %v38 = vpack.c.b16 %v36, %v35
  %vm41 = vcmask 261120
  %v43 = vsel %vm41, %v20, 0
  %45 = vmatpush.bf16.msra.mxu0 0
  %46 = vmatpush.bf16.msra.mxu0 0
  %47 = vmatpush.bf16.msra.mxu0 0
  %48 = vmatpush.bf16.msra.mxu0 0
  %49 = vmatpush.bf16.msra.mxu0 0
  %50 = vmatpush.bf16.msra.mxu0 0
  %51 = vmatpush.bf16.msra.mxu0 %v38
  %52 = vmatpush.bf16.msra.mxu0 %v37
  %53 = vmatmul.bf16.gmra.mxu0 %v43
  %v54 = vpop.f32.mrf.mxu0
  %v55 = vadd.f32 %v27, %v54
  %v56 = vpop.f32.mrf.mxu0
  %v57 = vadd.f32 %v27, %v56
  %58 = vdwg.mxu0
  %v59 = vpack.c.bf16 %v55, %v55
  %v60 = vpack.c.bf16 %v57, %v57
  %vm61 = vcmask 257024
  %62 = vst.msk [vmem:[%s3] sm:$0xf] %vm61, %v59
  %63 = vst.msk [vmem:[%s3 + $0x4] sm:$0xf] %vm61, %v60
  %66 = vrot.lane.b32.xlu0 %v59, 96
  %v67 = vpop.permute.xlu0 %66
  %68 = vrot.lane.b32.xlu0 %v60, 96
  %v69 = vpop.permute.xlu0 %68
  %72 = vst.msk [vmem:[%s4] sm:$0xf] %vm61, %v67
  %73 = vst.msk [vmem:[%s4 + $0x4] sm:$0xf] %vm61, %v69
  %74 = vrot.lane.b32.xlu0 %v59, 64
  %v75 = vpop.permute.xlu0 %74
  %76 = vrot.lane.b32.xlu0 %v60, 64
  %v77 = vpop.permute.xlu0 %76
  %80 = vst.msk [vmem:[%s5] sm:$0xf] %vm61, %v75
  %81 = vst.msk [vmem:[%s5 + $0x4] sm:$0xf] %vm61, %v77
  // Predicated region
  $region14: #{transformer_forward.25} parent=0 // pred_check
    _
  $region15: #{transformer_forward.25} parent=0 // pred_check_branch
    %83 = sbr.rel (0) target = $region17
  $region16: #{transformer_forward.25} parent=0 // pred_region
    _
  $region17: #{transformer_forward.25} parent=0 // pred_fallthru
    _
  // Predicated region
  $region18: #{transformer_forward.25} parent=0 // pred_check
    _
  $region19: #{transformer_forward.25} parent=0 // pred_check_branch
    %85 = sbr.rel (0) target = $region21
  $region20: #{transformer_forward.25} parent=0 // pred_region
    _
  $region21: #{transformer_forward.25} parent=0 // pred_fallthru
    _
  // Predicated region
  $region22: #{transformer_forward.25} parent=0 // pred_check
    _
  $region23: #{transformer_forward.25} parent=0 // pred_check_branch
    %87 = sbr.rel (0) target = $region25
  $region24: #{transformer_forward.25} parent=0 // pred_region
    _
  $region25: #{transformer_forward.25} parent=0 // pred_fallthru
    _
  // Predicated region
  $region26: #{transformer_forward.25} parent=0 // pred_check
    _
  $region27: #{transformer_forward.25} parent=0 // pred_check_branch
    %89 = sbr.rel (0) target = $region29
  $region28: #{transformer_forward.25} parent=0 // pred_region
    _
  $region29: #{transformer_forward.25} parent=0 // pred_fallthru
    _
  // Predicated region
  $region30: #{transformer_forward.25} parent=0 // pred_check
    _
  $region31: #{transformer_forward.25} parent=0 // pred_check_branch
    %91 = sbr.rel (0) target = $region33
  $region32: #{transformer_forward.25} parent=0 // pred_region
    _
  $region33: #{transformer_forward.25} parent=0 // pred_fallthru
    _
  // Predicated region
  $region34: #{transformer_forward.25} parent=0 // pred_check
    _
  $region35: #{transformer_forward.25} parent=0 // pred_check_branch
    %93 = sbr.rel (0) target = $region37
  $region36: #{transformer_forward.25} parent=0 // pred_region
    _
  $region37: #{transformer_forward.25} parent=0 // pred_fallthru
    _

// kernel: transformer_forward.37
$region0: #{transformer_forward.37}
  #allocation0 [shape = 'u32[]', space=smem, size = 0x4, offset = 0x4, fixed_abs, tag = 'smem constant byte address 0x4 - core index']
  #allocation1 [shape = 'u32[72,128]{1,0:T(1,128)}', space=vmem, size = 0x9000, scoped, tag = 'internal scratch']
  %s0 = inlined_call_operand.vmem [shape: f32[16,32], index: 0, kind: input, shape index: {}]
  %s1 = inlined_call_operand.vmem [shape: bf16[32,64], index: 1, kind: input, shape index: {}]
  %s2 = inlined_call_operand.vmem [shape: f32[1,64], index: 2, kind: input, shape index: {}]
  %s3 = inlined_call_operand.vmem [shape: bf16[16,32], index: 3, kind: output, shape index: {0}]
  %s4 = inlined_call_operand.vmem [shape: bf16[16,32], index: 4, kind: output, shape index: {1}]
  %5 = xla_tuple %s3, %s4
  %s6 = sld [smem:[#allocation0]]
  $region30: #{transformer_forward.37} parent=0
    _
  %s8 = ssub.s32 1, %s6
  %s9 = scalar_select 0, %s8, %s6
  // Predicated region
  $region2: #{transformer_forward.37} parent=0 // pred_check
    _
  $region3: #{transformer_forward.37} parent=0 // pred_check_branch
    %11 = sbr.rel (0) target = $region5
  $region4: #{transformer_forward.37} parent=0 // pred_region
    _
  $region5: #{transformer_forward.37} parent=0 // pred_fallthru
    _
  // Predicated region
  $region6: #{transformer_forward.37} parent=0 // pred_check
    _
  $region7: #{transformer_forward.37} parent=0 // pred_check_branch
    %13 = sbr.rel (0) target = $region9
  $region8: #{transformer_forward.37} parent=0 // pred_region
    _
  $region9: #{transformer_forward.37} parent=0 // pred_fallthru
    _
  // Predicated region
  $region10: #{transformer_forward.37} parent=0 // pred_check
    _
  $region11: #{transformer_forward.37} parent=0 // pred_check_branch
    %15 = sbr.rel (0) target = $region13
  $region12: #{transformer_forward.37} parent=0 // pred_region
    _
  $region13: #{transformer_forward.37} parent=0 // pred_fallthru
    _
  %v17 = vld [vmem:[%s0] sm:$0xff]
  %v18 = vld [vmem:[%s0 + $0x8] sm:$0xff]
  %v19 = vpack.c.bf16 %v18, %v17
  %v20 = vld [vmem:[%s1] sm:$0xf]
  %v21 = vld [vmem:[%s1 + $0x4] sm:$0xf]
  %v22 = vld [vmem:[%s1 + $0x8] sm:$0xf]
  %v23 = vld [vmem:[%s1 + $0xc] sm:$0xf]
  %v24 = vld [vmem:[%s2] sm:$0x1]
  %v26 = vperm.slane %v24, 0
  %v32 = vunpack.c.l.b16 %v20
  %v33 = vunpack.c.l.b16 %v21
  %v34 = vunpack.c.l.b16 %v22
  %v35 = vunpack.c.l.b16 %v23
  %v36 = vpack.c.b16 %v33, %v32
  %v37 = vpack.c.b16 %v35, %v34
  %vm40 = vcmask 261120
  %v42 = vsel %vm40, %v19, 0
  %44 = vmatpush.bf16.msra.mxu0 0
  %45 = vmatpush.bf16.msra.mxu0 0
  %46 = vmatpush.bf16.msra.mxu0 0
  %47 = vmatpush.bf16.msra.mxu0 0
  %48 = vmatpush.bf16.msra.mxu0 0
  %49 = vmatpush.bf16.msra.mxu0 0
  %50 = vmatpush.bf16.msra.mxu0 %v37
  %51 = vmatpush.bf16.msra.mxu0 %v36
  %52 = vmatmul.bf16.gmra.mxu0 %v42
  %v53 = vpop.f32.mrf.mxu0
  %v54 = vadd.f32 %v26, %v53
  %v55 = vpop.f32.mrf.mxu0
  %v56 = vadd.f32 %v26, %v55
  %57 = vdwg.mxu0
  %v58 = vpack.c.bf16 %v54, %v54
  %v59 = vpack.c.bf16 %v56, %v56
  %vm60 = vcmask 257024
  %61 = vst.msk [vmem:[%s3] sm:$0xf] %vm60, %v58
  %62 = vst.msk [vmem:[%s3 + $0x4] sm:$0xf] %vm60, %v59
  %65 = vrot.lane.b32.xlu0 %v58, 96
  %v66 = vpop.permute.xlu0 %65
  %67 = vrot.lane.b32.xlu0 %v59, 96
  %v68 = vpop.permute.xlu0 %67
  %71 = vst.msk [vmem:[%s4] sm:$0xf] %vm60, %v66
  %72 = vst.msk [vmem:[%s4 + $0x4] sm:$0xf] %vm60, %v68
  // Predicated region
  $region14: #{transformer_forward.37} parent=0 // pred_check
    _
  $region15: #{transformer_forward.37} parent=0 // pred_check_branch
    %74 = sbr.rel (0) target = $region17
  $region16: #{transformer_forward.37} parent=0 // pred_region
    _
  $region17: #{transformer_forward.37} parent=0 // pred_fallthru
    _
  // Predicated region
  $region18: #{transformer_forward.37} parent=0 // pred_check
    _
  $region19: #{transformer_forward.37} parent=0 // pred_check_branch
    %76 = sbr.rel (0) target = $region21
  $region20: #{transformer_forward.37} parent=0 // pred_region
    _
  $region21: #{transformer_forward.37} parent=0 // pred_fallthru
    _
  // Predicated region
  $region22: #{transformer_forward.37} parent=0 // pred_check
    _
  $region23: #{transformer_forward.37} parent=0 // pred_check_branch
    %78 = sbr.rel (0) target = $region25
  $region24: #{transformer_forward.37} parent=0 // pred_region
    _
  $region25: #{transformer_forward.37} parent=0 // pred_fallthru
    _
  // Predicated region
  $region26: #{transformer_forward.37} parent=0 // pred_check
    _
  $region27: #{transformer_forward.37} parent=0 // pred_check_branch
    %80 = sbr.rel (0) target = $region29
  $region28: #{transformer_forward.37} parent=0 // pred_region
    _
  $region29: #{transformer_forward.37} parent=0 // pred_fallthru
    _

// kernel: transformer_forward.26
$region0: #{transformer_forward.26}
  #allocation0 [shape = 'u32[]', space=smem, size = 0x4, offset = 0x4, fixed_abs, tag = 'smem constant byte address 0x4 - core index']
  #allocation1 [shape = 'u32[72,128]{1,0:T(1,128)}', space=vmem, size = 0x9000, scoped, tag = 'internal scratch']
  #allocation2 [shape = 'f32[4,8,1]{2,1,0:T(8,128)}', space=vmem, size = 0x4000, scoped, tag = 'scratch operand']
  #allocation3 [shape = 'f32[4,8,1]{2,1,0:T(8,128)}', space=vmem, size = 0x4000, scoped, tag = 'scratch operand']
  #allocation4 [shape = 'f32[8,32]{1,0:T(8,128)}', space=vmem, size = 0x1000, scoped, tag = 'scratch operand']
  %s0 = inlined_call_operand.vmem [shape: bf16[2,8,32], index: 0, kind: input, shape index: {}]
  %s1 = inlined_call_operand.vmem [shape: bf16[2,8,32], index: 1, kind: input, shape index: {}]
  %s2 = inlined_call_operand.vmem [shape: bf16[2,8,32], index: 2, kind: input, shape index: {}]
  %s3 = inlined_call_operand.vmem [shape: f32[2,1,8], index: 3, kind: input, shape index: {}]
  %s4 = inlined_call_operand.vmem [shape: bf16[2,8,32], index: 4, kind: output, shape index: {}]
  %s5 = sld [smem:[#allocation0]]
  $region57: #{transformer_forward.26} parent=0
    _
  %s7 = ssub.s32 1, %s5
  %s8 = scalar_select 0, %s7, %s5
  loop: start=0, step=1, limit=4
  $region2: #{transformer_forward.26} parent=0 // loop_pre_header
    _
  $region3: #{transformer_forward.26} parent=0 // loop_header
    %s10 = sphi 0, %s14
    %p11 = scmp.ge.s32.totalorder %s10, 4
    %s17 = sphi 0, %s36
    %s18 = sphi 0, %s32
    %s19 = sphi 0, %s28
    %s20 = sphi 0, %s17
    %s21 = sphi 0, %s18
    %s22 = sphi 0, %s19
    %s23 = sphi 0, %s20
    %s24 = sphi 0, %s21
    %s25 = sphi 0, %s22
    %s41 = sphi 0, %s43
    %s44 = sphi 0, %s41
    %s45 = sphi 0, %s44
    %s61 = sphi 0, %s45
    %s69 = sphi 0, %s71
    %s72 = sphi 0, %s69
    %s73 = sphi 0, %s72
    %s89 = sphi 0, %s73
    %s97 = sphi 0, %s99
    %s100 = sphi 0, %s97
    %s101 = sphi 0, %s100
    %s117 = sphi 0, %s101
    %s125 = sphi 0, %s127
    %s128 = sphi 0, %s125
    %s129 = sphi 0, %s128
    %s145 = sphi 0, %s129
    %s153 = sphi 0, %s155
    %s156 = sphi 0, %s153
    %s157 = sphi 0, %s156
    %s173 = sphi 0, %s157
  $region4: #{transformer_forward.26} parent=0 // loop_header_branch
    %13 = sbr.rel (%p11) target = $region8
  $region5: #{transformer_forward.26} parent=0 // loop_body
    %s15 = ssub.s32 %s10, 1
    %s16 = ssub.s32 %s10, 2
    %s26 = sadd.s32 1, %s19
    %p27 = scmp.ge.s32.totalorder %s26, 1
    %s28 = scalar_select %p27, 0, %s26
    %s29 = sadd.s32 1, %s18
    %s30 = scalar_select %p27, %s29, %s18
    %p31 = scmp.ge.s32.totalorder %s30, 1
    %s32 = scalar_select %p31, 0, %s30
    %s33 = sadd.s32 1, %s17
    %s34 = scalar_select %p31, %s33, %s17
    %p35 = scmp.ge.s32.totalorder %s34, 2
    %s36 = scalar_select %p35, 0, %s34
    %s37 = ssub.s32 %s17, %s36
    %s38 = ssub.s32 %s18, %s32
    %s39 = sor.u32 %s37, %s38
    %p40 = scmp.eq.s32.totalorder %s39, 0
    %s42 = sadd.s32 %s41, 1
    %s43 = scalar_select %p40, %s41, %s42
    %p46 = pneg %p40
    %p47 = scmp.eq.s32.totalorder %s10, 1
    %p48 = por %p46, %p47
    %p49 = scmp.ne.s32.totalorder %s41, %s44
    %p50 = scmp.eq.s32.totalorder %s10, 0
    %p51 = por %p49, %p50
    %p52 = scmp.ne.s32.totalorder %s41, %s44
    %p53 = scmp.eq.s32.totalorder %s15, 1
    %p54 = por %p52, %p53
    %p55 = scmp.ne.s32.totalorder %s44, %s45
    %p56 = scmp.eq.s32.totalorder %s15, 0
    %p57 = por %p55, %p56
    %p58 = scmp.ne.s32.totalorder %s44, %s45
    %p59 = scmp.eq.s32.totalorder %s16, 1
    %p60 = por %p58, %p59
    %p62 = scmp.ne.s32.totalorder %s45, %s61
    %p63 = scmp.eq.s32.totalorder %s16, 0
    %p64 = por %p62, %p63
    %s65 = ssub.s32 %s17, %s36
    %s66 = ssub.s32 %s19, %s28
    %s67 = sor.u32 %s65, %s66
    %p68 = scmp.eq.s32.totalorder %s67, 0
    %s70 = sadd.s32 %s69, 1
    %s71 = scalar_select %p68, %s69, %s70
    %p74 = pneg %p68
    %p75 = scmp.eq.s32.totalorder %s10, 1
    %p76 = por %p74, %p75
    %p77 = scmp.ne.s32.totalorder %s69, %s72
    %p78 = scmp.eq.s32.totalorder %s10, 0
    %p79 = por %p77, %p78
    %p80 = scmp.ne.s32.totalorder %s69, %s72
    %p81 = scmp.eq.s32.totalorder %s15, 1
    %p82 = por %p80, %p81
    %p83 = scmp.ne.s32.totalorder %s72, %s73
    %p84 = scmp.eq.s32.totalorder %s15, 0
    %p85 = por %p83, %p84
    %p86 = scmp.ne.s32.totalorder %s72, %s73
    %p87 = scmp.eq.s32.totalorder %s16, 1
    %p88 = por %p86, %p87
    %p90 = scmp.ne.s32.totalorder %s73, %s89
    %p91 = scmp.eq.s32.totalorder %s16, 0
    %p92 = por %p90, %p91
    %s93 = ssub.s32 %s17, %s36
    %s94 = ssub.s32 %s19, %s28
    %s95 = sor.u32 %s93, %s94
    %p96 = scmp.eq.s32.totalorder %s95, 0
    %s98 = sadd.s32 %s97, 1
    %s99 = scalar_select %p96, %s97, %s98
    %p102 = pneg %p96
    %p103 = scmp.eq.s32.totalorder %s10, 1
    %p104 = por %p102, %p103
    %p105 = scmp.ne.s32.totalorder %s97, %s100
    %p106 = scmp.eq.s32.totalorder %s10, 0
    %p107 = por %p105, %p106
    %p108 = scmp.ne.s32.totalorder %s97, %s100
    %p109 = scmp.eq.s32.totalorder %s15, 1
    %p110 = por %p108, %p109
    %p111 = scmp.ne.s32.totalorder %s100, %s101
    %p112 = scmp.eq.s32.totalorder %s15, 0
    %p113 = por %p111, %p112
    %p114 = scmp.ne.s32.totalorder %s100, %s101
    %p115 = scmp.eq.s32.totalorder %s16, 1
    %p116 = por %p114, %p115
    %p118 = scmp.ne.s32.totalorder %s101, %s117
    %p119 = scmp.eq.s32.totalorder %s16, 0
    %p120 = por %p118, %p119
    %s121 = ssub.s32 %s17, %s36
    %s122 = ssub.s32 %s19, %s28
    %s123 = sor.u32 %s121, %s122
    %p124 = scmp.eq.s32.totalorder %s123, 0
    %s126 = sadd.s32 %s125, 1
    %s127 = scalar_select %p124, %s125, %s126
    %p130 = pneg %p124
    %p131 = scmp.eq.s32.totalorder %s10, 1
    %p132 = por %p130, %p131
    %p133 = scmp.ne.s32.totalorder %s125, %s128
    %p134 = scmp.eq.s32.totalorder %s10, 0
    %p135 = por %p133, %p134
    %p136 = scmp.ne.s32.totalorder %s125, %s128
    %p137 = scmp.eq.s32.totalorder %s15, 1
    %p138 = por %p136, %p137
    %p139 = scmp.ne.s32.totalorder %s128, %s129
    %p140 = scmp.eq.s32.totalorder %s15, 0
    %p141 = por %p139, %p140
    %p142 = scmp.ne.s32.totalorder %s128, %s129
    %p143 = scmp.eq.s32.totalorder %s16, 1
    %p144 = por %p142, %p143
    %p146 = scmp.ne.s32.totalorder %s129, %s145
    %p147 = scmp.eq.s32.totalorder %s16, 0
    %p148 = por %p146, %p147
    %s149 = ssub.s32 %s17, %s36
    %s150 = ssub.s32 %s18, %s32
    %s151 = sor.u32 %s149, %s150
    %p152 = scmp.eq.s32.totalorder %s151, 0
    %s154 = sadd.s32 %s153, 1
    %s155 = scalar_select %p152, %s153, %s154
    %p158 = pneg %p152
    %p159 = scmp.eq.s32.totalorder %s10, 1
    %p160 = por %p158, %p159
    %p161 = scmp.ne.s32.totalorder %s153, %s156
    %p162 = scmp.eq.s32.totalorder %s10, 0
    %p163 = por %p161, %p162
    %p164 = scmp.ne.s32.totalorder %s153, %s156
    %p165 = scmp.eq.s32.totalorder %s15, 1
    %p166 = por %p164, %p165
    %p167 = scmp.ne.s32.totalorder %s156, %s157
    %p168 = scmp.eq.s32.totalorder %s15, 0
    %p169 = por %p167, %p168
    %p170 = scmp.ne.s32.totalorder %s156, %s157
    %p171 = scmp.eq.s32.totalorder %s16, 1
    %p172 = por %p170, %p171
    %p174 = scmp.ne.s32.totalorder %s157, %s173
    %p175 = scmp.eq.s32.totalorder %s16, 0
    %p176 = por %p174, %p175
    %p177 = scmp.le.s32.totalorder 1, %s10
    %p178 = scmp.lt.s32.totalorder %s10, 3
    %p179 = pnand %p177, %p178
    %p180 = pneg %p179
    // Predicated region
    $region9: #{transformer_forward.26} parent=5 // pred_check
      _
    $region10: #{transformer_forward.26} parent=5 // pred_check_branch
      %182 = sbr.rel (%p179) target = $region12
    $region11: #{transformer_forward.26} parent=5 // pred_region
      %s183 = ssub.s32 %s10, 1
    $region12: #{transformer_forward.26} parent=5 // pred_fallthru
      _
    %p184 = scmp.lt.s32.totalorder %s10, 2
    // Predicated region
    $region13: #{transformer_forward.26} parent=5 // pred_check
      %p185 = pneg %p184
    $region14: #{transformer_forward.26} parent=5 // pred_check_branch
      %187 = sbr.rel (%p185) target = $region16
    $region15: #{transformer_forward.26} parent=5 // pred_region
      // Predicated region
      $region17: #{transformer_forward.26} parent=15 // pred_check
        %p188 = pneg %p51
      $region18: #{transformer_forward.26} parent=15 // pred_check_branch
        %190 = sbr.rel (%p188) target = $region20
      $region19: #{transformer_forward.26} parent=15 // pred_region
        %p191 = scmp.lt.s32.totalorder %s17, 1
        %s192 = scalar_select %p191, %s17, 1
        %p193 = scmp.lt.s32.totalorder %s18, 0
        %s194 = scalar_select %p193, %s18, 0
        %s195 = sadd.s32 %s194, %s192
        %s196 = smul.addr %s195, 4
        %s197 = scalar_lea.vmem %s0, %s196
      $region20: #{transformer_forward.26} parent=15 // pred_fallthru
        _
      // Predicated region
      $region21: #{transformer_forward.26} parent=15 // pred_check
        %p198 = pneg %p79
      $region22: #{transformer_forward.26} parent=15 // pred_check_branch
        %200 = sbr.rel (%p198) target = $region24
      $region23: #{transformer_forward.26} parent=15 // pred_region
        %p201 = scmp.lt.s32.totalorder %s17, 1
        %s202 = scalar_select %p201, %s17, 1
        %p203 = scmp.lt.s32.totalorder %s19, 0
        %s204 = scalar_select %p203, %s19, 0
        %s205 = sadd.s32 %s204, %s202
        %s206 = smul.addr %s205, 4
        %s207 = scalar_lea.vmem %s1, %s206
      $region24: #{transformer_forward.26} parent=15 // pred_fallthru
        _
      // Predicated region
      $region25: #{transformer_forward.26} parent=15 // pred_check
        %p208 = pneg %p107
      $region26: #{transformer_forward.26} parent=15 // pred_check_branch
        %210 = sbr.rel (%p208) target = $region28
      $region27: #{transformer_forward.26} parent=15 // pred_region
        %p211 = scmp.lt.s32.totalorder %s17, 1
        %s212 = scalar_select %p211, %s17, 1
        %p213 = scmp.lt.s32.totalorder %s19, 0
        %s214 = scalar_select %p213, %s19, 0
        %s215 = sadd.s32 %s214, %s212
        %s216 = smul.addr %s215, 4
        %s217 = scalar_lea.vmem %s2, %s216
      $region28: #{transformer_forward.26} parent=15 // pred_fallthru
        _
      // Predicated region
      $region29: #{transformer_forward.26} parent=15 // pred_check
        %p218 = pneg %p135
      $region30: #{transformer_forward.26} parent=15 // pred_check_branch
        %220 = sbr.rel (%p218) target = $region32
      $region31: #{transformer_forward.26} parent=15 // pred_region
        %p221 = scmp.lt.s32.totalorder %s17, 1
        %s222 = scalar_select %p221, %s17, 1
        %p223 = scmp.lt.s32.totalorder %s19, 0
        %s224 = scalar_select %p223, %s19, 0
        %s225 = sadd.s32 %s224, %s222
        %s226 = scalar_lea.vmem %s3, %s225
      $region32: #{transformer_forward.26} parent=15 // pred_fallthru
        _
    $region16: #{transformer_forward.26} parent=5 // pred_fallthru
      _
    %p227 = scmp.le.s32.totalorder 1, %s10
    %p228 = scmp.lt.s32.totalorder %s10, 3
    %p229 = pnand %p227, %p228
    %p230 = pneg %p229
    // Predicated region
    $region33: #{transformer_forward.26} parent=5 // pred_check
      _
    $region34: #{transformer_forward.26} parent=5 // pred_check_branch
      %232 = sbr.rel (%p229) target = $region36
    $region35: #{transformer_forward.26} parent=5 // pred_region
      %s233 = ssub.s32 %s10, 1
      %p234 = scmp.lt.s32.totalorder %s20, 1
      %s235 = scalar_select %p234, %s20, 1
      %p236 = scmp.lt.s32.totalorder %s21, 0
      %s237 = scalar_select %p236, %s21, 0
      %s238 = sadd.s32 %s237, %s235
      %s239 = smul.addr %s238, 4
      %s240 = scalar_lea.vmem %s0, %s239
      %p241 = pneg %p57
      %p242 = pneg %p54
      %p243 = scmp.lt.s32.totalorder %s20, 1
      %s244 = scalar_select %p243, %s20, 1
      %p245 = scmp.lt.s32.totalorder %s22, 0
      %s246 = scalar_select %p245, %s22, 0
      %s247 = sadd.s32 %s246, %s244
      %s248 = smul.addr %s247, 4
      %s249 = scalar_lea.vmem %s1, %s248
      %p250 = pneg %p85
      %p251 = pneg %p82
      %p252 = scmp.lt.s32.totalorder %s20, 1
      %s253 = scalar_select %p252, %s20, 1
      %p254 = scmp.lt.s32.totalorder %s22, 0
      %s255 = scalar_select %p254, %s22, 0
      %s256 = sadd.s32 %s255, %s253
      %s257 = smul.addr %s256, 4
      %s258 = scalar_lea.vmem %s2, %s257
      %p259 = pneg %p113
      %p260 = pneg %p110
      %p261 = scmp.lt.s32.totalorder %s20, 1
      %s262 = scalar_select %p261, %s20, 1
      %p263 = scmp.lt.s32.totalorder %s22, 0
      %s264 = scalar_select %p263, %s22, 0
      %s265 = sadd.s32 %s264, %s262
      %s266 = scalar_lea.vmem %s3, %s265
      %p267 = pneg %p141
      %p268 = pneg %p138
      %p269 = pneg %p169
      %p270 = pneg %p166
      %p271 = scmp.lt.s32.totalorder %s20, 1
      %s272 = scalar_select %p271, %s20, 1
      %p273 = scmp.lt.s32.totalorder %s21, 0
      %s274 = scalar_select %p273, %s21, 0
      %s275 = sadd.s32 %s274, %s272
      %s276 = smul.addr %s275, 4
      %s277 = scalar_lea.vmem %s4, %s276
      %p278 = scmp.lt.s32.totalorder %s20, 1
      %s279 = scalar_select %p278, %s20, 1
      %p280 = scmp.lt.s32.totalorder %s21, 0
      %s281 = scalar_select %p280, %s21, 0
      %s282 = sadd.s32 %s281, %s279
      %s283 = smul.addr %s282, 4
      %s284 = scalar_lea.vmem %s0, %s283
      %p285 = scmp.lt.s32.totalorder %s20, 1
      %s286 = scalar_select %p285, %s20, 1
      %p287 = scmp.lt.s32.totalorder %s22, 0
      %s288 = scalar_select %p287, %s22, 0
      %s289 = sadd.s32 %s288, %s286
      %s290 = smul.addr %s289, 4
      %s291 = scalar_lea.vmem %s1, %s290
      %p292 = scmp.lt.s32.totalorder %s20, 1
      %s293 = scalar_select %p292, %s20, 1
      %p294 = scmp.lt.s32.totalorder %s22, 0
      %s295 = scalar_select %p294, %s22, 0
      %s296 = sadd.s32 %s295, %s293
      %s297 = smul.addr %s296, 4
      %s298 = scalar_lea.vmem %s2, %s297
      %p299 = scmp.lt.s32.totalorder %s20, 1
      %s300 = scalar_select %p299, %s20, 1
      %p301 = scmp.lt.s32.totalorder %s22, 0
      %s302 = scalar_select %p301, %s22, 0
      %s303 = sadd.s32 %s302, %s300
      %s304 = scalar_lea.vmem %s3, %s303
      %p305 = scmp.lt.s32.totalorder %s20, 1
      %s306 = scalar_select %p305, %s20, 1
      %p307 = scmp.lt.s32.totalorder %s21, 0
      %s308 = scalar_select %p307, %s21, 0
      %s309 = sadd.s32 %s308, %s306
      %s310 = smul.addr %s309, 4
      %s311 = scalar_lea.vmem %s4, %s310
      %p313 = scmp.eq.s32.totalorder %s22, 0
      // Predicated region
      $region37: #{transformer_forward.26} parent=35 // pred_check
        %p314 = pneg %p313
      $region38: #{transformer_forward.26} parent=35 // pred_check_branch
        %316 = sbr.rel (%p314) target = $region40
      $region39: #{transformer_forward.26} parent=35 // pred_region
        %vm317 = vcmask 7168
        %318 = vst.msk [vmem:[#allocation2] sm:$0xff] %vm317, -1e+30
        %319 = vst.msk [vmem:[#allocation2 + $0x8] sm:$0xff] %vm317, -1e+30
        %320 = vst.msk [vmem:[#allocation2 + $0x10] sm:$0xff] %vm317, -1e+30
        %321 = vst.msk [vmem:[#allocation2 + $0x18] sm:$0xff] %vm317, -1e+30
        %322 = vst.msk [vmem:[#allocation3] sm:$0xff] %vm317, 0.0
        %323 = vst.msk [vmem:[#allocation3 + $0x8] sm:$0xff] %vm317, 0.0
        %324 = vst.msk [vmem:[#allocation3 + $0x10] sm:$0xff] %vm317, 0.0
        %325 = vst.msk [vmem:[#allocation3 + $0x18] sm:$0xff] %vm317, 0.0
        %vm326 = vcmask 261120
        %327 = vst.msk [vmem:[#allocation4] sm:$0xff] %vm326, 0.0
      $region40: #{transformer_forward.26} parent=35 // pred_fallthru
        _
      %v328 = vld [vmem:[%s284] sm:$0xf]
      %v329 = vld [vmem:[%s291] sm:$0xf]
      %v330 = vld [vmem:[%s298] sm:$0xf]
      %v331 = vld [vmem:[%s304] sm:$0x1]
      %v333 = vperm.slane %v331, 0
      %vm335 = vcmask 64512
      %v337 = vsel %vm335, %v328, 0
      %v340 = vsel %vm335, %v329, 0
      %342 = vmatpush.bf16.xpose.msra.mxu0 0
      %343 = vmatpush.bf16.xpose.msra.mxu0 0
      %344 = vmatpush.bf16.xpose.msra.mxu0 0
      %345 = vmatpush.bf16.xpose.msra.mxu0 0
      %346 = vmatpush.bf16.xpose.msra.mxu0 0
      %347 = vmatpush.bf16.xpose.msra.mxu0 0
      %348 = vmatpush.bf16.xpose.msra.mxu0 0
      %349 = vmatpush.bf16.xpose.msra.mxu0 %v340
      %350 = vmatmul.bf16.gmra.mxu0 %v337
      %v351 = vpop.f32.mrf.mxu0
      %v352 = vadd.f32 0.0, %v351
      %v353 = vpop.f32.mrf.mxu0
      %354 = vdwg.mxu0
      %v355 = vmul.f32 %v352, 0.35355338
      %v356 = vadd.f32 %v355, %v333
      %v357 = vld [vmem:[#allocation2] sm:$0xff]
      %v358 = vsel %vm335, %v356, -inf
      %359 = vmax.xlane.f32.xlu0 %v358
      %v360 = vpop.xlane.xlu0 %359
      %v361 = vmax.f32 %v357, %v360
      %v362 = vsub.f32 %v357, %v361
      %v363 = vmul.f32 %v362, 1.442695
      %v364 = vpow.pop %v363
      %366 = vset.pattern.permute.xlu0 0
      %367 = vperm.xlu0 %366, %v361
      %v368 = vpop.permute.xlu0 %367
      %v370 = vsub.f32 %v356, %v368
      %v371 = vmul.f32 %v370, 1.442695
      %v372 = vpow.pop %v371
      %v373 = vld [vmem:[#allocation3] sm:$0xff]
      %v374 = vmul.f32 %v364, %v373
      %v375 = vsel %vm335, %v372, 0.0
      %376 = vadd.xlane.f32.xlu0 %v375
      %v377 = vpop.xlane.xlu0 %376
      %v378 = vadd.f32 %v374, %v377
      %vm379 = vcmask 7168
      %380 = vst.msk [vmem:[#allocation3] sm:$0xff] %vm379, %v378
      %v381 = vld [vmem:[#allocation4] sm:$0xff]
      %383 = vset.pattern.permute.xlu0 0
      %384 = vperm.xlu0 %383, %v364
      %v385 = vpop.permute.xlu0 %384
      %v387 = vmul.f32 %v385, %v381
      %v388 = vpack.c.bf16 %v372, %v372
      %v390 = vsel %vm335, %v388, 0
      %vm392 = vcmask 1043456
      %v394 = vsel %vm392, %v330, 0
      %396 = vmatpush.bf16.msra.mxu0 0
      %397 = vmatpush.bf16.msra.mxu0 0
      %398 = vmatpush.bf16.msra.mxu0 0
      %399 = vmatpush.bf16.msra.mxu0 0
      %400 = vmatpush.bf16.msra.mxu0 0
      %401 = vmatpush.bf16.msra.mxu0 0
      %402 = vmatpush.bf16.msra.mxu0 0
      %403 = vmatpush.bf16.msra.mxu0 %v394
      %404 = vmatmul.bf16.gmra.mxu0 %v390
      %v405 = vpop.f32.mrf.mxu0
      %v406 = vadd.f32 0.0, %v405
      %v407 = vpop.f32.mrf.mxu0
      %408 = vdwg.mxu0
      %v409 = vadd.f32 %v387, %v406
      %410 = vst.msk [vmem:[#allocation4] sm:$0xff] %vm335, %v409
      %411 = vst.msk [vmem:[#allocation2] sm:$0xff] %vm379, %v361
      %v413 = vunpack.c.l.b16 %v328
      %v414 = vpack.c.b16 %v413, %v413
      %415 = vrot.lane.b32.xlu0 %v414, 120
      %v416 = vpop.permute.xlu0 %415
      %v418 = vunpack.c.l.b16 %v329
      %v419 = vpack.c.b16 %v418, %v418
      %420 = vrot.lane.b32.xlu0 %v419, 120
      %v421 = vpop.permute.xlu0 %420
      %v423 = vsel %vm335, %v416, 0
      %v426 = vsel %vm335, %v421, 0
      %428 = vmatpush.bf16.xpose.msra.mxu0 0
      %429 = vmatpush.bf16.xpose.msra.mxu0 0
      %430 = vmatpush.bf16.xpose.msra.mxu0 0
      %431 = vmatpush.bf16.xpose.msra.mxu0 0
      %432 = vmatpush.bf16.xpose.msra.mxu0 0
      %433 = vmatpush.bf16.xpose.msra.mxu0 0
      %434 = vmatpush.bf16.xpose.msra.mxu0 0
      %435 = vmatpush.bf16.xpose.msra.mxu0 %v426
      %436 = vmatmul.bf16.gmra.mxu0 %v423
      %v437 = vpop.f32.mrf.mxu0
      %v438 = vadd.f32 0.0, %v437
      %v439 = vpop.f32.mrf.mxu0
      %440 = vdwg.mxu0
      %v441 = vmul.f32 %v438, 0.35355338
      %v442 = vadd.f32 %v441, %v333
      %s443 = scalar_lea.vmem [#allocation2], 8
      %v444 = vld [vmem:[%s443] sm:$0xff]
      %v445 = vsel %vm335, %v442, -inf
      %446 = vmax.xlane.f32.xlu0 %v445
      %v447 = vpop.xlane.xlu0 %446
      %v448 = vmax.f32 %v444, %v447
      %v449 = vsub.f32 %v444, %v448
      %v450 = vmul.f32 %v449, 1.442695
      %v451 = vpow.pop %v450
      %453 = vset.pattern.permute.xlu0 0
      %454 = vperm.xlu0 %453, %v448
      %v455 = vpop.permute.xlu0 %454
      %v457 = vsub.f32 %v442, %v455
      %v458 = vmul.f32 %v457, 1.442695
      %v459 = vpow.pop %v458
      %s460 = scalar_lea.vmem [#allocation3], 8
      %v461 = vld [vmem:[%s460] sm:$0xff]
      %v462 = vmul.f32 %v451, %v461
      %v463 = vsel %vm335, %v459, 0.0
      %464 = vadd.xlane.f32.xlu0 %v463
      %v465 = vpop.xlane.xlu0 %464
      %v466 = vadd.f32 %v462, %v465
      %467 = vst.msk [vmem:[%s460] sm:$0xff] %vm379, %v466
      %v468 = vld [vmem:[#allocation4] sm:$0xff]
      %470 = vset.pattern.permute.xlu0 0
      %471 = vperm.xlu0 %470, %v451
      %v472 = vpop.permute.xlu0 %471
      %v474 = vmul.f32 %v472, %v468
      %v475 = vpack.c.bf16 %v459, %v459
      %v477 = vunpack.c.l.b16 %v330
      %v478 = vpack.c.b16 %v477, %v477
      %479 = vrot.lane.b32.xlu0 %v478, 120
      %v480 = vpop.permute.xlu0 %479
      %v482 = vsel %vm335, %v475, 0
      %v485 = vsel %vm392, %v480, 0
      %487 = vmatpush.bf16.msra.mxu0 0
      %488 = vmatpush.bf16.msra.mxu0 0
      %489 = vmatpush.bf16.msra.mxu0 0
      %490 = vmatpush.bf16.msra.mxu0 0
      %491 = vmatpush.bf16.msra.mxu0 0
      %492 = vmatpush.bf16.msra.mxu0 0
      %493 = vmatpush.bf16.msra.mxu0 0
      %494 = vmatpush.bf16.msra.mxu0 %v485
      %495 = vmatmul.bf16.gmra.mxu0 %v482
      %v496 = vpop.f32.mrf.mxu0
      %v497 = vadd.f32 0.0, %v496
      %v498 = vpop.f32.mrf.mxu0
      %499 = vdwg.mxu0
      %501 = vrot.lane.b32.xlu0 %v497, 8
      %v502 = vpop.permute.xlu0 %501
      %v504 = vadd.f32 %v474, %v502
      %vm505 = vcmask 130112
      %506 = vst.msk [vmem:[#allocation4] sm:$0xff] %vm505, %v504
      %507 = vst.msk [vmem:[%s443] sm:$0xff] %vm379, %v448
      %508 = vrot.lane.b32.xlu0 %v414, 112
      %v509 = vpop.permute.xlu0 %508
      %510 = vrot.lane.b32.xlu0 %v419, 112
      %v511 = vpop.permute.xlu0 %510
      %v513 = vsel %vm335, %v509, 0
      %v516 = vsel %vm335, %v511, 0
      %518 = vmatpush.bf16.xpose.msra.mxu0 0
      %519 = vmatpush.bf16.xpose.msra.mxu0 0
      %520 = vmatpush.bf16.xpose.msra.mxu0 0
      %521 = vmatpush.bf16.xpose.msra.mxu0 0
      %522 = vmatpush.bf16.xpose.msra.mxu0 0
      %523 = vmatpush.bf16.xpose.msra.mxu0 0
      %524 = vmatpush.bf16.xpose.msra.mxu0 0
      %525 = vmatpush.bf16.xpose.msra.mxu0 %v516
      %526 = vmatmul.bf16.gmra.mxu0 %v513
      %v527 = vpop.f32.mrf.mxu0
      %v528 = vadd.f32 0.0, %v527
      %v529 = vpop.f32.mrf.mxu0
      %530 = vdwg.mxu0
      %v531 = vmul.f32 %v528, 0.35355338
      %v532 = vadd.f32 %v531, %v333
      %s533 = scalar_lea.vmem [#allocation2], 16
      %v534 = vld [vmem:[%s533] sm:$0xff]
      %v535 = vsel %vm335, %v532, -inf
      %536 = vmax.xlane.f32.xlu0 %v535
      %v537 = vpop.xlane.xlu0 %536
      %v538 = vmax.f32 %v534, %v537
      %v539 = vsub.f32 %v534, %v538
      %v540 = vmul.f32 %v539, 1.442695
      %v541 = vpow.pop %v540
      %543 = vset.pattern.permute.xlu0 0
      %544 = vperm.xlu0 %543, %v538
      %v545 = vpop.permute.xlu0 %544
      %v547 = vsub.f32 %v532, %v545
      %v548 = vmul.f32 %v547, 1.442695
      %v549 = vpow.pop %v548
      %s550 = scalar_lea.vmem [#allocation3], 16
      %v551 = vld [vmem:[%s550] sm:$0xff]
      %v552 = vmul.f32 %v541, %v551
      %v553 = vsel %vm335, %v549, 0.0
      %554 = vadd.xlane.f32.xlu0 %v553
      %v555 = vpop.xlane.xlu0 %554
      %v556 = vadd.f32 %v552, %v555
      %557 = vst.msk [vmem:[%s550] sm:$0xff] %vm379, %v556
      %v558 = vld [vmem:[#allocation4] sm:$0xff]
      %560 = vset.pattern.permute.xlu0 0
      %561 = vperm.xlu0 %560, %v541
      %v562 = vpop.permute.xlu0 %561
      %v564 = vmul.f32 %v562, %v558
      %v565 = vpack.c.bf16 %v549, %v549
      %566 = vrot.lane.b32.xlu0 %v478, 112
      %v567 = vpop.permute.xlu0 %566
      %v569 = vsel %vm335, %v565, 0
      %v572 = vsel %vm392, %v567, 0
      %574 = vmatpush.bf16.msra.mxu0 0
      %575 = vmatpush.bf16.msra.mxu0 0
      %576 = vmatpush.bf16.msra.mxu0 0
      %577 = vmatpush.bf16.msra.mxu0 0
      %578 = vmatpush.bf16.msra.mxu0 0
      %579 = vmatpush.bf16.msra.mxu0 0
      %580 = vmatpush.bf16.msra.mxu0 0
      %581 = vmatpush.bf16.msra.mxu0 %v572
      %582 = vmatmul.bf16.gmra.mxu0 %v569
      %v583 = vpop.f32.mrf.mxu0
      %v584 = vadd.f32 0.0, %v583
      %v585 = vpop.f32.mrf.mxu0
      %586 = vdwg.mxu0
      %588 = vrot.lane.b32.xlu0 %v584, 16
      %v589 = vpop.permute.xlu0 %588
      %v591 = vadd.f32 %v564, %v589
      %vm592 = vcmask 195712
      %593 = vst.msk [vmem:[#allocation4] sm:$0xff] %vm592, %v591
      %594 = vst.msk [vmem:[%s533] sm:$0xff] %vm379, %v538
      %595 = vrot.lane.b32.xlu0 %v414, 104
      %v596 = vpop.permute.xlu0 %595
      %597 = vrot.lane.b32.xlu0 %v419, 104
      %v598 = vpop.permute.xlu0 %597
      %v600 = vsel %vm335, %v596, 0
      %v603 = vsel %vm335, %v598, 0
      %605 = vmatpush.bf16.xpose.msra.mxu0 0
      %606 = vmatpush.bf16.xpose.msra.mxu0 0
      %607 = vmatpush.bf16.xpose.msra.mxu0 0
      %608 = vmatpush.bf16.xpose.msra.mxu0 0
      %609 = vmatpush.bf16.xpose.msra.mxu0 0
      %610 = vmatpush.bf16.xpose.msra.mxu0 0
      %611 = vmatpush.bf16.xpose.msra.mxu0 0
      %612 = vmatpush.bf16.xpose.msra.mxu0 %v603
      %613 = vmatmul.bf16.gmra.mxu0 %v600
      %v614 = vpop.f32.mrf.mxu0
      %v615 = vadd.f32 0.0, %v614
      %v616 = vpop.f32.mrf.mxu0
      %617 = vdwg.mxu0
      %v618 = vmul.f32 %v615, 0.35355338
      %v619 = vadd.f32 %v618, %v333
      %s620 = scalar_lea.vmem [#allocation2], 24
      %v621 = vld [vmem:[%s620] sm:$0xff]
      %v622 = vsel %vm335, %v619, -inf
      %623 = vmax.xlane.f32.xlu0 %v622
      %v624 = vpop.xlane.xlu0 %623
      %v625 = vmax.f32 %v621, %v624
      %v626 = vsub.f32 %v621, %v625
      %v627 = vmul.f32 %v626, 1.442695
      %v628 = vpow.pop %v627
      %630 = vset.pattern.permute.xlu0 0
      %631 = vperm.xlu0 %630, %v625
      %v632 = vpop.permute.xlu0 %631
      %v634 = vsub.f32 %v619, %v632
      %v635 = vmul.f32 %v634, 1.442695
      %v636 = vpow.pop %v635
      %s637 = scalar_lea.vmem [#allocation3], 24
      %v638 = vld [vmem:[%s637] sm:$0xff]
      %v639 = vmul.f32 %v628, %v638
      %v640 = vsel %vm335, %v636, 0.0
      %641 = vadd.xlane.f32.xlu0 %v640
      %v642 = vpop.xlane.xlu0 %641
      %v643 = vadd.f32 %v639, %v642
      %644 = vst.msk [vmem:[%s637] sm:$0xff] %vm379, %v643
      %v645 = vld [vmem:[#allocation4] sm:$0xff]
      %647 = vset.pattern.permute.xlu0 0
      %648 = vperm.xlu0 %647, %v628
      %v649 = vpop.permute.xlu0 %648
      %v651 = vmul.f32 %v649, %v645
      %v652 = vpack.c.bf16 %v636, %v636
      %653 = vrot.lane.b32.xlu0 %v478, 104
      %v654 = vpop.permute.xlu0 %653
      %v656 = vsel %vm335, %v652, 0
      %v659 = vsel %vm392, %v654, 0
      %661 = vmatpush.bf16.msra.mxu0 0
      %662 = vmatpush.bf16.msra.mxu0 0
      %663 = vmatpush.bf16.msra.mxu0 0
      %664 = vmatpush.bf16.msra.mxu0 0
      %665 = vmatpush.bf16.msra.mxu0 0
      %666 = vmatpush.bf16.msra.mxu0 0
      %667 = vmatpush.bf16.msra.mxu0 0
      %668 = vmatpush.bf16.msra.mxu0 %v659
      %669 = vmatmul.bf16.gmra.mxu0 %v656
      %v670 = vpop.f32.mrf.mxu0
      %v671 = vadd.f32 0.0, %v670
      %v672 = vpop.f32.mrf.mxu0
      %673 = vdwg.mxu0
      %675 = vrot.lane.b32.xlu0 %v671, 24
      %v676 = vpop.permute.xlu0 %675
      %v678 = vadd.f32 %v651, %v676
      %vm679 = vcmask 261312
      %680 = vst.msk [vmem:[#allocation4] sm:$0xff] %vm679, %v678
      %681 = vst.msk [vmem:[%s620] sm:$0xff] %vm379, %v625
      // Predicated region
      $region41: #{transformer_forward.26} parent=35 // pred_check
        %p682 = pneg %p313
      $region42: #{transformer_forward.26} parent=35 // pred_check_branch
        %684 = sbr.rel (%p682) target = $region44
      $region43: #{transformer_forward.26} parent=35 // pred_region
        %v685 = vld [vmem:[#allocation4] sm:$0xff]
        %v686 = vld [vmem:[#allocation3] sm:$0xff]
        %v687 = vrcp.pop %v686
        %689 = vset.pattern.permute.xlu0 0
        %690 = vperm.xlu0 %689, %v687
        %v691 = vpop.permute.xlu0 %690
        %v693 = vmul.f32 %v685, %v691
        %694 = vst.msk [vmem:[#allocation4] sm:$0xff] %vm335, %v693
        %v695 = vld [vmem:[#allocation4] sm:$0xff]
        %v696 = vld [vmem:[%s460] sm:$0xff]
        %v697 = vrcp.pop %v696
        %699 = vset.pattern.permute.xlu0 0
        %700 = vperm.xlu0 %699, %v697
        %v701 = vpop.permute.xlu0 %700
        %v703 = vmul.f32 %v695, %v701
        %704 = vst.msk [vmem:[#allocation4] sm:$0xff] %vm505, %v703
        %v705 = vld [vmem:[#allocation4] sm:$0xff]
        %v706 = vld [vmem:[%s550] sm:$0xff]
        %v707 = vrcp.pop %v706
        %709 = vset.pattern.permute.xlu0 0
        %710 = vperm.xlu0 %709, %v707
        %v711 = vpop.permute.xlu0 %710
        %v713 = vmul.f32 %v705, %v711
        %714 = vst.msk [vmem:[#allocation4] sm:$0xff] %vm592, %v713
        %v715 = vld [vmem:[#allocation4] sm:$0xff]
        %v716 = vld [vmem:[%s637] sm:$0xff]
        %v717 = vrcp.pop %v716
        %719 = vset.pattern.permute.xlu0 0
        %720 = vperm.xlu0 %719, %v717
        %v721 = vpop.permute.xlu0 %720
        %v723 = vmul.f32 %v715, %v721
        %724 = vst.msk [vmem:[#allocation4] sm:$0xff] %vm679, %v723
        %v725 = vld [vmem:[#allocation4] sm:$0xff]
        %v726 = vpack.c.bf16 %v725, %v725
        %vm727 = vcmask 257024
        %728 = vst.msk [vmem:[%s311] sm:$0xf] %vm727, %v726
      $region44: #{transformer_forward.26} parent=35 // pred_fallthru
        _
      %p729 = scmp.lt.s32.totalorder %s20, 1
      %s730 = scalar_select %p729, %s20, 1
      %p731 = scmp.lt.s32.totalorder %s21, 0
      %s732 = scalar_select %p731, %s21, 0
      %s733 = sadd.s32 %s732, %s730
      %s734 = smul.addr %s733, 4
      %s735 = scalar_lea.vmem %s4, %s734
      // Predicated region
      $region45: #{transformer_forward.26} parent=35 // pred_check
        %p736 = pneg %p166
      $region46: #{transformer_forward.26} parent=35 // pred_check_branch
        %738 = sbr.rel (%p736) target = $region48
      $region47: #{transformer_forward.26} parent=35 // pred_region
        _
      $region48: #{transformer_forward.26} parent=35 // pred_fallthru
        _
    $region36: #{transformer_forward.26} parent=5 // pred_fallthru
      _
    %p739 = scmp.le.s32.totalorder 2, %s10
    // Predicated region
    $region49: #{transformer_forward.26} parent=5 // pred_check
      %p740 = pneg %p739
    $region50: #{transformer_forward.26} parent=5 // pred_check_branch
      %742 = sbr.rel (%p740) target = $region52
    $region51: #{transformer_forward.26} parent=5 // pred_region
      %s743 = ssub.s32 %s10, 2
      // Predicated region
      $region53: #{transformer_forward.26} parent=51 // pred_check
        %p744 = pneg %p172
      $region54: #{transformer_forward.26} parent=51 // pred_check_branch
        %746 = sbr.rel (%p744) target = $region56
      $region55: #{transformer_forward.26} parent=51 // pred_region
        %p747 = scmp.lt.s32.totalorder %s23, 1
        %s748 = scalar_select %p747, %s23, 1
        %p749 = scmp.lt.s32.totalorder %s24, 0
        %s750 = scalar_select %p749, %s24, 0
        %s751 = sadd.s32 %s750, %s748
        %s752 = smul.addr %s751, 4
        %s753 = scalar_lea.vmem %s4, %s752
      $region56: #{transformer_forward.26} parent=51 // pred_fallthru
        _
    $region52: #{transformer_forward.26} parent=5 // pred_fallthru
      _
  $region6: #{transformer_forward.26} parent=0 // loop_footer
    %s14 = sadd.s32 1, %s10
  $region7: #{transformer_forward.26} parent=0 // loop_footer_branch
    %9 = sbr.rel target = $region3
  $region8: #{transformer_forward.26} parent=0 // loop_exit
    _

// kernel: transformer_forward.28
$region0: #{transformer_forward.28}
  #allocation0 [shape = 'u32[]', space=smem, size = 0x4, offset = 0x4, fixed_abs, tag = 'smem constant byte address 0x4 - core index']
  #allocation1 [shape = 'u32[72,128]{1,0:T(1,128)}', space=vmem, size = 0x9000, scoped, tag = 'internal scratch']
  #allocation2 [shape = 'f32[16,32]{1,0:T(8,128)}', space=vmem, size = 0x2000, scoped, tag = 'scratch operand']
  %s0 = inlined_call_operand.vmem [shape: f32[16,32], index: 0, kind: input, shape index: {}]
  %s1 = inlined_call_operand.vmem [shape: bf16[32,2048], index: 1, kind: input, shape index: {}]
  %s2 = inlined_call_operand.vmem [shape: f32[1,2048], index: 2, kind: input, shape index: {}]
  %s3 = inlined_call_operand.vmem [shape: bf16[2048,32], index: 3, kind: input, shape index: {}]
  %s4 = inlined_call_operand.vmem [shape: f32[1,32], index: 4, kind: input, shape index: {}]
  %s5 = inlined_call_operand.vmem [shape: f32[1,32], index: 5, kind: input, shape index: {}]
  %s6 = inlined_call_operand.vmem [shape: f32[1,32], index: 6, kind: input, shape index: {}]
  %s7 = inlined_call_operand.vmem [shape: f32[16,32], index: 7, kind: output, shape index: {}]
  %s8 = sld [smem:[#allocation0]]
  $region92: #{transformer_forward.28} parent=0
    _
  %s10 = ssub.s32 1, %s8
  %s11 = scalar_select 0, %s10, %s8
  $region1: #{transformer_forward.28} parent=0
    #allocation3 [shape = 'u8[65536]{0}', space=vmem, size = 0x10000, scoped, tag = 'input window, operand 1']
    loop: start=0, step=1, limit=6
    $region2: #{transformer_forward.28} parent=1 // loop_pre_header
      _
    $region3: #{transformer_forward.28} parent=1 // loop_header
      %s13 = sphi 0, %s17
      %p14 = scmp.ge.s32.totalorder %s13, 6
      %s20 = sphi 0, %s32
      %s21 = sphi 0, %s28
      %s22 = sphi 0, %s20
      %s23 = sphi 0, %s21
      %s24 = sphi 0, %s22
      %s25 = sphi 0, %s23
      %s35 = sphi 0, %s37
      %s38 = sphi 0, %s35
      %s39 = sphi 0, %s38
      %s55 = sphi 0, %s39
      %s61 = sphi 0, %s63
      %s64 = sphi 0, %s61
      %s65 = sphi 0, %s64
      %s81 = sphi 0, %s65
      %s87 = sphi 0, %s89
      %s90 = sphi 0, %s87
      %s91 = sphi 0, %s90
      %s107 = sphi 0, %s91
      %s113 = sphi 0, %s115
      %s116 = sphi 0, %s113
      %s117 = sphi 0, %s116
      %s133 = sphi 0, %s117
      %s137 = sphi 0, %s137
      %s139 = sphi 0, %s137
      %s140 = sphi 0, %s139
      %s154 = sphi 0, %s140
      %s158 = sphi 0, %s158
      %s160 = sphi 0, %s158
      %s161 = sphi 0, %s160
      %s175 = sphi 0, %s161
      %s179 = sphi 0, %s179
      %s181 = sphi 0, %s179
      %s182 = sphi 0, %s181
      %s196 = sphi 0, %s182
      %s202 = sphi 0, %s204
      %s205 = sphi 0, %s202
      %s206 = sphi 0, %s205
      %s222 = sphi 0, %s206
    $region4: #{transformer_forward.28} parent=1 // loop_header_branch
      %16 = sbr.rel (%p14) target = $region8
    $region5: #{transformer_forward.28} parent=1 // loop_body
      %s18 = ssub.s32 %s13, 1
      %s19 = ssub.s32 %s13, 2
      %s26 = sadd.s32 1, %s21
      %p27 = scmp.ge.s32.totalorder %s26, 4
      %s28 = scalar_select %p27, 0, %s26
      %s29 = sadd.s32 1, %s20
      %s30 = scalar_select %p27, %s29, %s20
      %p31 = scmp.ge.s32.totalorder %s30, 1
      %s32 = scalar_select %p31, 0, %s30
      %s33 = ssub.s32 %s20, %s32
      %p34 = scmp.eq.s32.totalorder %s33, 0
      %s36 = sadd.s32 %s35, 1
      %s37 = scalar_select %p34, %s35, %s36
      %p40 = pneg %p34
      %p41 = scmp.eq.s32.totalorder %s13, 3
      %p42 = por %p40, %p41
      %p43 = scmp.ne.s32.totalorder %s35, %s38
      %p44 = scmp.eq.s32.totalorder %s13, 0
      %p45 = por %p43, %p44
      %p46 = scmp.ne.s32.totalorder %s35, %s38
      %p47 = scmp.eq.s32.totalorder %s18, 3
      %p48 = por %p46, %p47
      %p49 = scmp.ne.s32.totalorder %s38, %s39
      %p50 = scmp.eq.s32.totalorder %s18, 0
      %p51 = por %p49, %p50
      %p52 = scmp.ne.s32.totalorder %s38, %s39
      %p53 = scmp.eq.s32.totalorder %s19, 3
      %p54 = por %p52, %p53
      %p56 = scmp.ne.s32.totalorder %s39, %s55
      %p57 = scmp.eq.s32.totalorder %s19, 0
      %p58 = por %p56, %p57
      %s59 = ssub.s32 %s21, %s28
      %p60 = scmp.eq.s32.totalorder %s59, 0
      %s62 = sadd.s32 %s61, 1
      %s63 = scalar_select %p60, %s61, %s62
      %p66 = pneg %p60
      %p67 = scmp.eq.s32.totalorder %s13, 3
      %p68 = por %p66, %p67
      %p69 = scmp.ne.s32.totalorder %s61, %s64
      %p70 = scmp.eq.s32.totalorder %s13, 0
      %p71 = por %p69, %p70
      %p72 = scmp.ne.s32.totalorder %s61, %s64
      %p73 = scmp.eq.s32.totalorder %s18, 3
      %p74 = por %p72, %p73
      %p75 = scmp.ne.s32.totalorder %s64, %s65
      %p76 = scmp.eq.s32.totalorder %s18, 0
      %p77 = por %p75, %p76
      %p78 = scmp.ne.s32.totalorder %s64, %s65
      %p79 = scmp.eq.s32.totalorder %s19, 3
      %p80 = por %p78, %p79
      %p82 = scmp.ne.s32.totalorder %s65, %s81
      %p83 = scmp.eq.s32.totalorder %s19, 0
      %p84 = por %p82, %p83
      %s85 = ssub.s32 %s21, %s28
      %p86 = scmp.eq.s32.totalorder %s85, 0
      %s88 = sadd.s32 %s87, 1
      %s89 = scalar_select %p86, %s87, %s88
      %p92 = pneg %p86
      %p93 = scmp.eq.s32.totalorder %s13, 3
      %p94 = por %p92, %p93
      %p95 = scmp.ne.s32.totalorder %s87, %s90
      %p96 = scmp.eq.s32.totalorder %s13, 0
      %p97 = por %p95, %p96
      %p98 = scmp.ne.s32.totalorder %s87, %s90
      %p99 = scmp.eq.s32.totalorder %s18, 3
      %p100 = por %p98, %p99
      %p101 = scmp.ne.s32.totalorder %s90, %s91
      %p102 = scmp.eq.s32.totalorder %s18, 0
      %p103 = por %p101, %p102
      %p104 = scmp.ne.s32.totalorder %s90, %s91
      %p105 = scmp.eq.s32.totalorder %s19, 3
      %p106 = por %p104, %p105
      %p108 = scmp.ne.s32.totalorder %s91, %s107
      %p109 = scmp.eq.s32.totalorder %s19, 0
      %p110 = por %p108, %p109
      %s111 = ssub.s32 %s21, %s28
      %p112 = scmp.eq.s32.totalorder %s111, 0
      %s114 = sadd.s32 %s113, 1
      %s115 = scalar_select %p112, %s113, %s114
      %p118 = pneg %p112
      %p119 = scmp.eq.s32.totalorder %s13, 3
      %p120 = por %p118, %p119
      %p121 = scmp.ne.s32.totalorder %s113, %s116
      %p122 = scmp.eq.s32.totalorder %s13, 0
      %p123 = por %p121, %p122
      %p124 = scmp.ne.s32.totalorder %s113, %s116
      %p125 = scmp.eq.s32.totalorder %s18, 3
      %p126 = por %p124, %p125
      %p127 = scmp.ne.s32.totalorder %s116, %s117
      %p128 = scmp.eq.s32.totalorder %s18, 0
      %p129 = por %p127, %p128
      %p130 = scmp.ne.s32.totalorder %s116, %s117
      %p131 = scmp.eq.s32.totalorder %s19, 3
      %p132 = por %p130, %p131
      %p134 = scmp.ne.s32.totalorder %s117, %s133
      %p135 = scmp.eq.s32.totalorder %s19, 0
      %p136 = por %p134, %p135
      %s138 = sadd.s32 %s137, 1
      %p141 = scmp.eq.s32.totalorder %s13, 3
      %p142 = scmp.ne.s32.totalorder %s137, %s139
      %p143 = scmp.eq.s32.totalorder %s13, 0
      %p144 = por %p142, %p143
      %p145 = scmp.ne.s32.totalorder %s137, %s139
      %p146 = scmp.eq.s32.totalorder %s18, 3
      %p147 = por %p145, %p146
      %p148 = scmp.ne.s32.totalorder %s139, %s140
      %p149 = scmp.eq.s32.totalorder %s18, 0
      %p150 = por %p148, %p149
      %p151 = scmp.ne.s32.totalorder %s139, %s140
      %p152 = scmp.eq.s32.totalorder %s19, 3
      %p153 = por %p151, %p152
      %p155 = scmp.ne.s32.totalorder %s140, %s154
      %p156 = scmp.eq.s32.totalorder %s19, 0
      %p157 = por %p155, %p156
      %s159 = sadd.s32 %s158, 1
      %p162 = scmp.eq.s32.totalorder %s13, 3
      %p163 = scmp.ne.s32.totalorder %s158, %s160
      %p164 = scmp.eq.s32.totalorder %s13, 0
      %p165 = por %p163, %p164
      %p166 = scmp.ne.s32.totalorder %s158, %s160
      %p167 = scmp.eq.s32.totalorder %s18, 3
      %p168 = por %p166, %p167
      %p169 = scmp.ne.s32.totalorder %s160, %s161
      %p170 = scmp.eq.s32.totalorder %s18, 0
      %p171 = por %p169, %p170
      %p172 = scmp.ne.s32.totalorder %s160, %s161
      %p173 = scmp.eq.s32.totalorder %s19, 3
      %p174 = por %p172, %p173
      %p176 = scmp.ne.s32.totalorder %s161, %s175
      %p177 = scmp.eq.s32.totalorder %s19, 0
      %p178 = por %p176, %p177
      %s180 = sadd.s32 %s179, 1
      %p183 = scmp.eq.s32.totalorder %s13, 3
      %p184 = scmp.ne.s32.totalorder %s179, %s181
      %p185 = scmp.eq.s32.totalorder %s13, 0
      %p186 = por %p184, %p185
      %p187 = scmp.ne.s32.totalorder %s179, %s181
      %p188 = scmp.eq.s32.totalorder %s18, 3
      %p189 = por %p187, %p188
      %p190 = scmp.ne.s32.totalorder %s181, %s182
      %p191 = scmp.eq.s32.totalorder %s18, 0
      %p192 = por %p190, %p191
      %p193 = scmp.ne.s32.totalorder %s181, %s182
      %p194 = scmp.eq.s32.totalorder %s19, 3
      %p195 = por %p193, %p194
      %p197 = scmp.ne.s32.totalorder %s182, %s196
      %p198 = scmp.eq.s32.totalorder %s19, 0
      %p199 = por %p197, %p198
      %s200 = ssub.s32 %s20, %s32
      %p201 = scmp.eq.s32.totalorder %s200, 0
      %s203 = sadd.s32 %s202, 1
      %s204 = scalar_select %p201, %s202, %s203
      %p207 = pneg %p201
      %p208 = scmp.eq.s32.totalorder %s13, 3
      %p209 = por %p207, %p208
      %p210 = scmp.ne.s32.totalorder %s202, %s205
      %p211 = scmp.eq.s32.totalorder %s13, 0
      %p212 = por %p210, %p211
      %p213 = scmp.ne.s32.totalorder %s202, %s205
      %p214 = scmp.eq.s32.totalorder %s18, 3
      %p215 = por %p213, %p214
      %p216 = scmp.ne.s32.totalorder %s205, %s206
      %p217 = scmp.eq.s32.totalorder %s18, 0
      %p218 = por %p216, %p217
      %p219 = scmp.ne.s32.totalorder %s205, %s206
      %p220 = scmp.eq.s32.totalorder %s19, 3
      %p221 = por %p219, %p220
      %p223 = scmp.ne.s32.totalorder %s206, %s222
      %p224 = scmp.eq.s32.totalorder %s19, 0
      %p225 = por %p223, %p224
      %p226 = scmp.le.s32.totalorder 1, %s13
      %p227 = scmp.lt.s32.totalorder %s13, 5
      %p228 = pnand %p226, %p227
      %p229 = pneg %p228
      // Predicated region
      $region9: #{transformer_forward.28} parent=5 // pred_check
        _
      $region10: #{transformer_forward.28} parent=5 // pred_check_branch
        %231 = sbr.rel (%p228) target = $region12
      $region11: #{transformer_forward.28} parent=5 // pred_region
        %s232 = ssub.s32 %s13, 1
        // Predicated region
        $region13: #{transformer_forward.28} parent=11 // pred_check
          %p233 = pneg %p51
        $region14: #{transformer_forward.28} parent=11 // pred_check_branch
          %235 = sbr.rel (%p233) target = $region16
        $region15: #{transformer_forward.28} parent=11 // pred_region
          %s236 = smul.u32 2, %s22
          %p237 = scmp.lt.s32.totalorder %s236, 1
          %s238 = scalar_select %p237, %s236, 1
          %s239 = smul.addr %s238, 8
          %s240 = scalar_lea.vmem %s0, %s239
          %s241 = smul.u32 2, %s22
        $region16: #{transformer_forward.28} parent=11 // pred_fallthru
          _
        // Predicated region
        $region17: #{transformer_forward.28} parent=11 // pred_check
          %p242 = pneg %p150
        $region18: #{transformer_forward.28} parent=11 // pred_check_branch
          %244 = sbr.rel (%p242) target = $region20
        $region19: #{transformer_forward.28} parent=11 // pred_region
          _
        $region20: #{transformer_forward.28} parent=11 // pred_fallthru
          _
        // Predicated region
        $region21: #{transformer_forward.28} parent=11 // pred_check
          %p245 = pneg %p171
        $region22: #{transformer_forward.28} parent=11 // pred_check_branch
          %247 = sbr.rel (%p245) target = $region24
        $region23: #{transformer_forward.28} parent=11 // pred_region
          _
        $region24: #{transformer_forward.28} parent=11 // pred_fallthru
          _
        // Predicated region
        $region25: #{transformer_forward.28} parent=11 // pred_check
          %p248 = pneg %p192
        $region26: #{transformer_forward.28} parent=11 // pred_check_branch
          %250 = sbr.rel (%p248) target = $region28
        $region27: #{transformer_forward.28} parent=11 // pred_region
          _
        $region28: #{transformer_forward.28} parent=11 // pred_fallthru
          _
      $region12: #{transformer_forward.28} parent=5 // pred_fallthru
        _
      %p251 = scmp.lt.s32.totalorder %s13, 4
      // Predicated region
      $region29: #{transformer_forward.28} parent=5 // pred_check
        %p252 = pneg %p251
      $region30: #{transformer_forward.28} parent=5 // pred_check_branch
        %254 = sbr.rel (%p252) target = $region32
      $region31: #{transformer_forward.28} parent=5 // pred_region
        // Predicated region
        $region33: #{transformer_forward.28} parent=31 // pred_check
          %p255 = pneg %p71
        $region34: #{transformer_forward.28} parent=31 // pred_check_branch
          %257 = sbr.rel (%p255) target = $region36
        $region35: #{transformer_forward.28} parent=31 // pred_region
          %s258 = sand.u32 %s61, 1
          %s259 = sand.u32 %s61, 1
          %s260 = smul.addr %s259, 64
          %s261 = scalar_lea.vmem [#allocation3], %s260
          %s262 = smul.u32 4, %s21
          %s263 = smul.addr %s262, 4
          %s264 = scalar_lea.vmem %s1, %s263
          // Predicated region
          $region37: #{transformer_forward.28} parent=35 // pred_check
            _
          $region38: #{transformer_forward.28} parent=35 // pred_check_branch
            %266 = sbr.rel (0) target = $region40
          $region39: #{transformer_forward.28} parent=35 // pred_region
            // Predicated region
            $region41: #{transformer_forward.28} parent=39 // pred_check
              _
            $region42: #{transformer_forward.28} parent=39 // pred_check_branch
              %268 = sbr.rel (0) target = $region44
            $region43: #{transformer_forward.28} parent=39 // pred_region
              loop: start=0, step=1, limit=1
              $region45: #{transformer_forward.28} parent=43 // loop_pre_header
                _
              $region46: #{transformer_forward.28} parent=43 // loop_header
                %s270 = sphi 0, %s274
                %p271 = scmp.ge.s32.totalorder %s270, 1
                %s275 = sphi %s264, %s264
                %s276 = sphi %s261, %s261
              $region47: #{transformer_forward.28} parent=43 // loop_header_branch
                %273 = sbr.rel (%p271) target = $region51
              $region48: #{transformer_forward.28} parent=43 // loop_body
                %v277 = vld [vmem:[%s275] sm:$0xff]
                %278 = vst [vmem:[%s276] sm:$0xff] %v277
                %v279 = vld [vmem:[%s275 + $0x8] sm:$0xff]
                %280 = vst [vmem:[%s276 + $0x8] sm:$0xff] %v279
                %v281 = vld [vmem:[%s275 + $0x40] sm:$0xff]
                %282 = vst [vmem:[%s276 + $0x10] sm:$0xff] %v281
                %v283 = vld [vmem:[%s275 + $0x48] sm:$0xff]
                %284 = vst [vmem:[%s276 + $0x18] sm:$0xff] %v283
                %v285 = vld [vmem:[%s275 + $0x80] sm:$0xff]
                %286 = vst [vmem:[%s276 + $0x20] sm:$0xff] %v285
                %v287 = vld [vmem:[%s275 + $0x88] sm:$0xff]
                %288 = vst [vmem:[%s276 + $0x28] sm:$0xff] %v287
                %v289 = vld [vmem:[%s275 + $0xc0] sm:$0xff]
                %290 = vst [vmem:[%s276 + $0x30] sm:$0xff] %v289
                %v291 = vld [vmem:[%s275 + $0xc8] sm:$0xff]
                %292 = vst [vmem:[%s276 + $0x38] sm:$0xff] %v291
              $region49: #{transformer_forward.28} parent=43 // loop_footer
                %s274 = sadd.s32 1, %s270
              $region50: #{transformer_forward.28} parent=43 // loop_footer_branch
                %269 = sbr.rel target = $region46
              $region51: #{transformer_forward.28} parent=43 // loop_exit
                _
            $region44: #{transformer_forward.28} parent=39 // pred_fallthru
              _
            // Predicated region
            $region52: #{transformer_forward.28} parent=39 // pred_check
              _
            $region53: #{transformer_forward.28} parent=39 // pred_check_branch
              %294 = sbr.rel target = $region55
            $region54: #{transformer_forward.28} parent=39 // pred_region
              _
            $region55: #{transformer_forward.28} parent=39 // pred_fallthru
              _
          $region40: #{transformer_forward.28} parent=35 // pred_fallthru
            _
          %295 = vnop
        $region36: #{transformer_forward.28} parent=31 // pred_fallthru
          _
        // Predicated region
        $region56: #{transformer_forward.28} parent=31 // pred_check
          %p296 = pneg %p97
        $region57: #{transformer_forward.28} parent=31 // pred_check_branch
          %298 = sbr.rel (%p296) target = $region59
        $region58: #{transformer_forward.28} parent=31 // pred_region
          %s299 = smul.u32 4, %s21
          %p300 = scmp.lt.s32.totalorder %s299, 15
          %s301 = scalar_select %p300, %s299, 15
          %s302 = scalar_lea.vmem %s2, %s301
          %s303 = smul.u32 4, %s21
        $region59: #{transformer_forward.28} parent=31 // pred_fallthru
          _
        // Predicated region
        $region60: #{transformer_forward.28} parent=31 // pred_check
          %p304 = pneg %p123
        $region61: #{transformer_forward.28} parent=31 // pred_check_branch
          %306 = sbr.rel (%p304) target = $region63
        $region62: #{transformer_forward.28} parent=31 // pred_region
          %s307 = smul.u32 64, %s21
          %p308 = scmp.lt.s32.totalorder %s307, 255
          %s309 = scalar_select %p308, %s307, 255
          %s310 = smul.addr %s309, 4
          %s311 = scalar_lea.vmem %s3, %s310
          %s312 = smul.u32 64, %s21
        $region63: #{transformer_forward.28} parent=31 // pred_fallthru
          _
      $region32: #{transformer_forward.28} parent=5 // pred_fallthru
        _
      %p313 = scmp.le.s32.totalorder 1, %s13
      %p314 = scmp.lt.s32.totalorder %s13, 5
      %p315 = pnand %p313, %p314
      %p316 = pneg %p315
      // Predicated region
      $region64: #{transformer_forward.28} parent=5 // pred_check
        _
      $region65: #{transformer_forward.28} parent=5 // pred_check_branch
        %318 = sbr.rel (%p315) target = $region67
      $region66: #{transformer_forward.28} parent=5 // pred_region
        %s319 = ssub.s32 %s13, 1
        %s320 = sand.u32 %s64, 1
        %s321 = sand.u32 %s64, 1
        %s322 = smul.addr %s321, 64
        %s323 = scalar_lea.vmem [#allocation3], %s322
        // Predicated region
        $region68: #{transformer_forward.28} parent=66 // pred_check
          %p324 = pneg %p77
        $region69: #{transformer_forward.28} parent=66 // pred_check_branch
          %326 = sbr.rel (%p324) target = $region71
        $region70: #{transformer_forward.28} parent=66 // pred_region
          _
        $region71: #{transformer_forward.28} parent=66 // pred_fallthru
          _
        %s327 = smul.u32 2, %s22
        %p328 = scmp.lt.s32.totalorder %s327, 1
        %s329 = scalar_select %p328, %s327, 1
        %s330 = smul.addr %s329, 8
        %s331 = scalar_lea.vmem %s0, %s330
        %p332 = pneg %p51
        %p333 = pneg %p48
        %s334 = sand.u32 %s64, 1
        %s335 = sand.u32 %s64, 1
        %s336 = smul.addr %s335, 64
        %s337 = scalar_lea.vmem [#allocation3], %s336
        %p338 = pneg %p77
        %p339 = pneg %p74
        %s340 = smul.u32 4, %s23
        %p341 = scmp.lt.s32.totalorder %s340, 15
        %s342 = scalar_select %p341, %s340, 15
        %s343 = scalar_lea.vmem %s2, %s342
        %p344 = pneg %p103
        %p345 = pneg %p100
        %s346 = smul.u32 64, %s23
        %p347 = scmp.lt.s32.totalorder %s346, 255
        %s348 = scalar_select %p347, %s346, 255
        %s349 = smul.addr %s348, 4
        %s350 = scalar_lea.vmem %s3, %s349
        %p351 = pneg %p129
        %p352 = pneg %p126
        %p353 = pneg %p150
        %p354 = pneg %p147
        %p355 = pneg %p171
        %p356 = pneg %p168
        %p357 = pneg %p192
        %p358 = pneg %p189
        %p359 = pneg %p218
        %p360 = pneg %p215
        %s361 = smul.u32 2, %s22
        %p362 = scmp.lt.s32.totalorder %s361, 1
        %s363 = scalar_select %p362, %s361, 1
        %s364 = smul.addr %s363, 8
        %s365 = scalar_lea.vmem %s7, %s364
        %s366 = smul.u32 2, %s22
        %p367 = scmp.lt.s32.totalorder %s366, 1
        %s368 = scalar_select %p367, %s366, 1
        %s369 = smul.addr %s368, 8
        %s370 = scalar_lea.vmem %s0, %s369
        %s371 = smul.u32 2, %s22
        %s372 = smul.u32 4, %s23
        %s373 = smul.u32 4, %s23
        %p374 = scmp.lt.s32.totalorder %s373, 15
        %s375 = scalar_select %p374, %s373, 15
        %s376 = scalar_lea.vmem %s2, %s375
        %s377 = smul.u32 4, %s23
        %s378 = smul.u32 64, %s23
        %p379 = scmp.lt.s32.totalorder %s378, 255
        %s380 = scalar_select %p379, %s378, 255
        %s381 = smul.addr %s380, 4
        %s382 = scalar_lea.vmem %s3, %s381
        %s383 = smul.u32 64, %s23
        %s384 = smul.u32 2, %s22
        %p385 = scmp.lt.s32.totalorder %s384, 1
        %s386 = scalar_select %p385, %s384, 1
        %s387 = smul.addr %s386, 8
        %s388 = scalar_lea.vmem %s7, %s387
        %s389 = smul.u32 2, %s22
        %p391 = scmp.eq.s32.totalorder %s23, 0
        // Predicated region
        $region72: #{transformer_forward.28} parent=66 // pred_check
          %p392 = pneg %p391
        $region73: #{transformer_forward.28} parent=66 // pred_check_branch
          %394 = sbr.rel (%p392) target = $region75
        $region74: #{transformer_forward.28} parent=66 // pred_region
          %vm395 = vcmask 261120
          %396 = vst.msk [vmem:[#allocation2] sm:$0xff] %vm395, 0.0
          %397 = vst.msk [vmem:[#allocation2 + $0x8] sm:$0xff] %vm395, 0.0
        $region75: #{transformer_forward.28} parent=66 // pred_fallthru
          _
        %v398 = vld [vmem:[%s370] sm:$0xff]
        %v399 = vld [vmem:[%s370 + $0x8] sm:$0xff]
        %v400 = vpack.c.bf16 %v399, %v398
        %v401 = vld [vmem:[%s323] sm:$0xff]
        %v402 = vld [vmem:[%s323 + $0x8] sm:$0xff]
        %v403 = vld [vmem:[%s323 + $0x10] sm:$0xff]
        %v404 = vld [vmem:[%s323 + $0x18] sm:$0xff]
        %v405 = vld [vmem:[%s323 + $0x20] sm:$0xff]
        %v406 = vld [vmem:[%s323 + $0x28] sm:$0xff]
        %v407 = vld [vmem:[%s323 + $0x30] sm:$0xff]
        %v408 = vld [vmem:[%s323 + $0x38] sm:$0xff]
        %v409 = vld [vmem:[%s376] sm:$0xf]
        %v411 = vperm.slane %v409, 0
        %v412 = vperm.slane %v409, 1
        %v413 = vperm.slane %v409, 2
        %v414 = vperm.slane %v409, 3
        %v427 = vunpack.c.l.b16 %v401
        %v428 = vunpack.c.h.b16 %v401
        %v429 = vunpack.c.l.b16 %v402
        %v430 = vunpack.c.h.b16 %v402
        %v431 = vunpack.c.l.b16 %v403
        %v432 = vunpack.c.h.b16 %v403
        %v433 = vunpack.c.l.b16 %v404
        %v434 = vunpack.c.h.b16 %v404
        %v435 = vunpack.c.l.b16 %v405
        %v436 = vunpack.c.h.b16 %v405
        %v437 = vunpack.c.l.b16 %v406
        %v438 = vunpack.c.h.b16 %v406
        %v439 = vunpack.c.l.b16 %v407
        %v440 = vunpack.c.h.b16 %v407
        %v441 = vunpack.c.l.b16 %v408
        %v442 = vunpack.c.h.b16 %v408
        %v443 = vpack.c.b16 %v431, %v427
        %v444 = vpack.c.b16 %v432, %v428
        %v445 = vpack.c.b16 %v433, %v429
        %v446 = vpack.c.b16 %v434, %v430
        %v447 = vpack.c.b16 %v439, %v435
        %v448 = vpack.c.b16 %v440, %v436
        %v449 = vpack.c.b16 %v441, %v437
        %v450 = vpack.c.b16 %v442, %v438
        %vm459 = vcmask 261120
        %v461 = vsel %vm459, %v400, 0
        %463 = vmatpush.bf16.msra.mxu0 0
        %464 = vmatpush.bf16.msra.mxu0 0
        %465 = vmatpush.bf16.msra.mxu0 0
        %466 = vmatpush.bf16.msra.mxu0 0
        %467 = vmatpush.bf16.msra.mxu0 0
        %468 = vmatpush.bf16.msra.mxu0 0
        %469 = vmatpush.bf16.msra.mxu0 %v447
        %470 = vmatpush.bf16.msra.mxu0 %v443
        %471 = vmatmul.bf16.gmra.mxu0 %v461
        %v472 = vpop.f32.mrf.mxu0
        %v473 = vadd.f32 %v411, %v472
        %v474 = vpop.f32.mrf.mxu0
        %v475 = vadd.f32 %v411, %v474
        %476 = vdwg.mxu0
        %477 = vmatpush.bf16.msra.mxu0 0
        %478 = vmatpush.bf16.msra.mxu0 0
        %479 = vmatpush.bf16.msra.mxu0 0
        %480 = vmatpush.bf16.msra.mxu0 0
        %481 = vmatpush.bf16.msra.mxu0 0
        %482 = vmatpush.bf16.msra.mxu0 0
        %483 = vmatpush.bf16.msra.mxu0 %v448
        %484 = vmatpush.bf16.msra.mxu0 %v444
        %485 = vmatmul.bf16.gmra.mxu0 %v461
        %v486 = vpop.f32.mrf.mxu0
        %v487 = vadd.f32 %v412, %v486
        %v488 = vpop.f32.mrf.mxu0
        %v489 = vadd.f32 %v412, %v488
        %490 = vdwg.mxu0
        %491 = vmatpush.bf16.msra.mxu0 0
        %492 = vmatpush.bf16.msra.mxu0 0
        %493 = vmatpush.bf16.msra.mxu0 0
        %494 = vmatpush.bf16.msra.mxu0 0
        %495 = vmatpush.bf16.msra.mxu0 0
        %496 = vmatpush.bf16.msra.mxu0 0
        %497 = vmatpush.bf16.msra.mxu0 %v449
        %498 = vmatpush.bf16.msra.mxu0 %v445
        %499 = vmatmul.bf16.gmra.mxu0 %v461
        %v500 = vpop.f32.mrf.mxu0
        %v501 = vadd.f32 %v413, %v500
        %v502 = vpop.f32.mrf.mxu0
        %v503 = vadd.f32 %v413, %v502
        %504 = vdwg.mxu0
        %505 = vmatpush.bf16.msra.mxu0 0
        %506 = vmatpush.bf16.msra.mxu0 0
        %507 = vmatpush.bf16.msra.mxu0 0
        %508 = vmatpush.bf16.msra.mxu0 0
        %509 = vmatpush.bf16.msra.mxu0 0
        %510 = vmatpush.bf16.msra.mxu0 0
        %511 = vmatpush.bf16.msra.mxu0 %v450
        %512 = vmatpush.bf16.msra.mxu0 %v446
        %513 = vmatmul.bf16.gmra.mxu0 %v461
        %v514 = vpop.f32.mrf.mxu0
        %v515 = vadd.f32 %v414, %v514
        %v516 = vpop.f32.mrf.mxu0
        %v517 = vadd.f32 %v414, %v516
        %518 = vdwg.mxu0
        %v519 = vmax.f32 %v473, 0.0
        %v520 = vmax.f32 %v487, 0.0
        %v521 = vmax.f32 %v501, 0.0
        %v522 = vmax.f32 %v515, 0.0
        %v523 = vmax.f32 %v475, 0.0
        %v524 = vmax.f32 %v489, 0.0
        %v525 = vmax.f32 %v503, 0.0
        %v526 = vmax.f32 %v517, 0.0
        %v527 = vld [vmem:[#allocation2] sm:$0xff]
        %v528 = vld [vmem:[#allocation2 + $0x8] sm:$0xff]
        %v529 = vpack.c.bf16 %v523, %v519
        %v530 = vpack.c.bf16 %v524, %v520
        %v531 = vpack.c.bf16 %v525, %v521
        %v532 = vpack.c.bf16 %v526, %v522
        %v533 = vld [vmem:[%s382] sm:$0xf]
        %v534 = vld [vmem:[%s382 + $0x4] sm:$0xf]
        %v535 = vld [vmem:[%s382 + $0x8] sm:$0xf]
        %v536 = vld [vmem:[%s382 + $0xc] sm:$0xf]
        %v537 = vld [vmem:[%s382 + $0x10] sm:$0xf]
        %v538 = vld [vmem:[%s382 + $0x14] sm:$0xf]
        %v539 = vld [vmem:[%s382 + $0x18] sm:$0xf]
        %v540 = vld [vmem:[%s382 + $0x1c] sm:$0xf]
        %v541 = vld [vmem:[%s382 + $0x20] sm:$0xf]
        %v542 = vld [vmem:[%s382 + $0x24] sm:$0xf]
        %v543 = vld [vmem:[%s382 + $0x28] sm:$0xf]
        %v544 = vld [vmem:[%s382 + $0x2c] sm:$0xf]
        %v545 = vld [vmem:[%s382 + $0x30] sm:$0xf]
        %v546 = vld [vmem:[%s382 + $0x34] sm:$0xf]
        %v547 = vld [vmem:[%s382 + $0x38] sm:$0xf]
        %v548 = vld [vmem:[%s382 + $0x3c] sm:$0xf]
        %v549 = vld [vmem:[%s382 + $0x40] sm:$0xf]
        %v550 = vld [vmem:[%s382 + $0x44] sm:$0xf]
        %v551 = vld [vmem:[%s382 + $0x48] sm:$0xf]
        %v552 = vld [vmem:[%s382 + $0x4c] sm:$0xf]
        %v553 = vld [vmem:[%s382 + $0x50] sm:$0xf]
        %v554 = vld [vmem:[%s382 + $0x54] sm:$0xf]
        %v555 = vld [vmem:[%s382 + $0x58] sm:$0xf]
        %v556 = vld [vmem:[%s382 + $0x5c] sm:$0xf]
        %v557 = vld [vmem:[%s382 + $0x60] sm:$0xf]
        %v558 = vld [vmem:[%s382 + $0x64] sm:$0xf]
        %v559 = vld [vmem:[%s382 + $0x68] sm:$0xf]
        %v560 = vld [vmem:[%s382 + $0x6c] sm:$0xf]
        %v561 = vld [vmem:[%s382 + $0x70] sm:$0xf]
        %v562 = vld [vmem:[%s382 + $0x74] sm:$0xf]
        %v563 = vld [vmem:[%s382 + $0x78] sm:$0xf]
        %v564 = vld [vmem:[%s382 + $0x7c] sm:$0xf]
        %v565 = vld [vmem:[%s382 + $0x80] sm:$0xf]
        %v566 = vld [vmem:[%s382 + $0x84] sm:$0xf]
        %v567 = vld [vmem:[%s382 + $0x88] sm:$0xf]
        %v568 = vld [vmem:[%s382 + $0x8c] sm:$0xf]
        %v569 = vld [vmem:[%s382 + $0x90] sm:$0xf]
        %v570 = vld [vmem:[%s382 + $0x94] sm:$0xf]
        %v571 = vld [vmem:[%s382 + $0x98] sm:$0xf]
        %v572 = vld [vmem:[%s382 + $0x9c] sm:$0xf]
        %v573 = vld [vmem:[%s382 + $0xa0] sm:$0xf]
        %v574 = vld [vmem:[%s382 + $0xa4] sm:$0xf]
        %v575 = vld [vmem:[%s382 + $0xa8] sm:$0xf]
        %v576 = vld [vmem:[%s382 + $0xac] sm:$0xf]
        %v577 = vld [vmem:[%s382 + $0xb0] sm:$0xf]
        %v578 = vld [vmem:[%s382 + $0xb4] sm:$0xf]
        %v579 = vld [vmem:[%s382 + $0xb8] sm:$0xf]
        %v580 = vld [vmem:[%s382 + $0xbc] sm:$0xf]
        %v581 = vld [vmem:[%s382 + $0xc0] sm:$0xf]
        %v582 = vld [vmem:[%s382 + $0xc4] sm:$0xf]
        %v583 = vld [vmem:[%s382 + $0xc8] sm:$0xf]
        %v584 = vld [vmem:[%s382 + $0xcc] sm:$0xf]
        %v585 = vld [vmem:[%s382 + $0xd0] sm:$0xf]
        %v586 = vld [vmem:[%s382 + $0xd4] sm:$0xf]
        %v587 = vld [vmem:[%s382 + $0xd8] sm:$0xf]
        %v588 = vld [vmem:[%s382 + $0xdc] sm:$0xf]
        %v589 = vld [vmem:[%s382 + $0xe0] sm:$0xf]
        %v590 = vld [vmem:[%s382 + $0xe4] sm:$0xf]
        %v591 = vld [vmem:[%s382 + $0xe8] sm:$0xf]
        %v592 = vld [vmem:[%s382 + $0xec] sm:$0xf]
        %v593 = vld [vmem:[%s382 + $0xf0] sm:$0xf]
        %v594 = vld [vmem:[%s382 + $0xf4] sm:$0xf]
        %v595 = vld [vmem:[%s382 + $0xf8] sm:$0xf]
        %v596 = vld [vmem:[%s382 + $0xfc] sm:$0xf]
        %v661 = vunpack.c.l.b16 %v533
        %v662 = vunpack.c.l.b16 %v534
        %v663 = vunpack.c.l.b16 %v535
        %v664 = vunpack.c.l.b16 %v536
        %v665 = vunpack.c.l.b16 %v537
        %v666 = vunpack.c.l.b16 %v538
        %v667 = vunpack.c.l.b16 %v539
        %v668 = vunpack.c.l.b16 %v540
        %v669 = vunpack.c.l.b16 %v541
        %v670 = vunpack.c.l.b16 %v542
        %v671 = vunpack.c.l.b16 %v543
        %v672 = vunpack.c.l.b16 %v544
        %v673 = vunpack.c.l.b16 %v545
        %v674 = vunpack.c.l.b16 %v546
        %v675 = vunpack.c.l.b16 %v547
        %v676 = vunpack.c.l.b16 %v548
        %v677 = vunpack.c.l.b16 %v549
        %v678 = vunpack.c.l.b16 %v550
        %v679 = vunpack.c.l.b16 %v551
        %v680 = vunpack.c.l.b16 %v552
        %v681 = vunpack.c.l.b16 %v553
        %v682 = vunpack.c.l.b16 %v554
        %v683 = vunpack.c.l.b16 %v555
        %v684 = vunpack.c.l.b16 %v556
        %v685 = vunpack.c.l.b16 %v557
        %v686 = vunpack.c.l.b16 %v558
        %v687 = vunpack.c.l.b16 %v559
        %v688 = vunpack.c.l.b16 %v560
        %v689 = vunpack.c.l.b16 %v561
        %v690 = vunpack.c.l.b16 %v562
        %v691 = vunpack.c.l.b16 %v563
        %v692 = vunpack.c.l.b16 %v564
        %v693 = vunpack.c.l.b16 %v565
        %v694 = vunpack.c.l.b16 %v566
        %v695 = vunpack.c.l.b16 %v567
        %v696 = vunpack.c.l.b16 %v568
        %v697 = vunpack.c.l.b16 %v569
        %v698 = vunpack.c.l.b16 %v570
        %v699 = vunpack.c.l.b16 %v571
        %v700 = vunpack.c.l.b16 %v572
        %v701 = vunpack.c.l.b16 %v573
        %v702 = vunpack.c.l.b16 %v574
        %v703 = vunpack.c.l.b16 %v575
        %v704 = vunpack.c.l.b16 %v576
        %v705 = vunpack.c.l.b16 %v577
        %v706 = vunpack.c.l.b16 %v578
        %v707 = vunpack.c.l.b16 %v579
        %v708 = vunpack.c.l.b16 %v580
        %v709 = vunpack.c.l.b16 %v581
        %v710 = vunpack.c.l.b16 %v582
        %v711 = vunpack.c.l.b16 %v583
        %v712 = vunpack.c.l.b16 %v584
        %v713 = vunpack.c.l.b16 %v585
        %v714 = vunpack.c.l.b16 %v586
        %v715 = vunpack.c.l.b16 %v587
        %v716 = vunpack.c.l.b16 %v588
        %v717 = vunpack.c.l.b16 %v589
        %v718 = vunpack.c.l.b16 %v590
        %v719 = vunpack.c.l.b16 %v591
        %v720 = vunpack.c.l.b16 %v592
        %v721 = vunpack.c.l.b16 %v593
        %v722 = vunpack.c.l.b16 %v594
        %v723 = vunpack.c.l.b16 %v595
        %v724 = vunpack.c.l.b16 %v596
        %v725 = vpack.c.b16 %v662, %v661
        %v726 = vpack.c.b16 %v664, %v663
        %v727 = vpack.c.b16 %v666, %v665
        %v728 = vpack.c.b16 %v668, %v667
        %v729 = vpack.c.b16 %v670, %v669
        %v730 = vpack.c.b16 %v672, %v671
        %v731 = vpack.c.b16 %v674, %v673
        %v732 = vpack.c.b16 %v676, %v675
        %v733 = vpack.c.b16 %v678, %v677
        %v734 = vpack.c.b16 %v680, %v679
        %v735 = vpack.c.b16 %v682, %v681
        %v736 = vpack.c.b16 %v684, %v683
        %v737 = vpack.c.b16 %v686, %v685
        %v738 = vpack.c.b16 %v688, %v687
        %v739 = vpack.c.b16 %v690, %v689
        %v740 = vpack.c.b16 %v692, %v691
        %v741 = vpack.c.b16 %v694, %v693
        %v742 = vpack.c.b16 %v696, %v695
        %v743 = vpack.c.b16 %v698, %v697
        %v744 = vpack.c.b16 %v700, %v699
        %v745 = vpack.c.b16 %v702, %v701
        %v746 = vpack.c.b16 %v704, %v703
        %v747 = vpack.c.b16 %v706, %v705
        %v748 = vpack.c.b16 %v708, %v707
        %v749 = vpack.c.b16 %v710, %v709
        %v750 = vpack.c.b16 %v712, %v711
        %v751 = vpack.c.b16 %v714, %v713
        %v752 = vpack.c.b16 %v716, %v715
        %v753 = vpack.c.b16 %v718, %v717
        %v754 = vpack.c.b16 %v720, %v719
        %v755 = vpack.c.b16 %v722, %v721
        %v756 = vpack.c.b16 %v724, %v723
        %789 = vmatpush.bf16.msra.mxu0 %v732
        %790 = vmatpush.bf16.msra.mxu0 %v731
        %791 = vmatpush.bf16.msra.mxu0 %v730
        %792 = vmatpush.bf16.msra.mxu0 %v729
        %793 = vmatpush.bf16.msra.mxu0 %v728
        %794 = vmatpush.bf16.msra.mxu0 %v727
        %795 = vmatpush.bf16.msra.mxu0 %v726
        %796 = vmatpush.bf16.msra.mxu0 %v725
        %797 = vmatmul.bf16.gmra.mxu0 %v529
        %v798 = vpop.f32.mrf.mxu0
        %v799 = vadd.f32 0.0, %v798
        %v800 = vpop.f32.mrf.mxu0
        %v801 = vadd.f32 0.0, %v800
        %802 = vdwg.mxu0
        %803 = vmatpush.bf16.msra.mxu0 %v740
        %804 = vmatpush.bf16.msra.mxu0 %v739
        %805 = vmatpush.bf16.msra.mxu0 %v738
        %806 = vmatpush.bf16.msra.mxu0 %v737
        %807 = vmatpush.bf16.msra.mxu0 %v736
        %808 = vmatpush.bf16.msra.mxu0 %v735
        %809 = vmatpush.bf16.msra.mxu0 %v734
        %810 = vmatpush.bf16.msra.mxu0 %v733
        %811 = vmatmul.bf16.gmra.mxu0 %v530
        %v812 = vpop.f32.mrf.mxu0
        %v813 = vadd.f32 %v799, %v812
        %v814 = vpop.f32.mrf.mxu0
        %v815 = vadd.f32 %v801, %v814
        %816 = vdwg.mxu0
        %817 = vmatpush.bf16.msra.mxu0 %v748
        %818 = vmatpush.bf16.msra.mxu0 %v747
        %819 = vmatpush.bf16.msra.mxu0 %v746
        %820 = vmatpush.bf16.msra.mxu0 %v745
        %821 = vmatpush.bf16.msra.mxu0 %v744
        %822 = vmatpush.bf16.msra.mxu0 %v743
        %823 = vmatpush.bf16.msra.mxu0 %v742
        %824 = vmatpush.bf16.msra.mxu0 %v741
        %825 = vmatmul.bf16.gmra.mxu0 %v531
        %v826 = vpop.f32.mrf.mxu0
        %v827 = vadd.f32 %v813, %v826
        %v828 = vpop.f32.mrf.mxu0
        %v829 = vadd.f32 %v815, %v828
        %830 = vdwg.mxu0
        %831 = vmatpush.bf16.msra.mxu0 %v756
        %832 = vmatpush.bf16.msra.mxu0 %v755
        %833 = vmatpush.bf16.msra.mxu0 %v754
        %834 = vmatpush.bf16.msra.mxu0 %v753
        %835 = vmatpush.bf16.msra.mxu0 %v752
        %836 = vmatpush.bf16.msra.mxu0 %v751
        %837 = vmatpush.bf16.msra.mxu0 %v750
        %838 = vmatpush.bf16.msra.mxu0 %v749
        %839 = vmatmul.bf16.gmra.mxu0 %v532
        %v840 = vpop.f32.mrf.mxu0
        %v841 = vadd.f32 %v827, %v840
        %v842 = vpop.f32.mrf.mxu0
        %v843 = vadd.f32 %v829, %v842
        %844 = vdwg.mxu0
        %v845 = vadd.f32 %v527, %v841
        %v846 = vadd.f32 %v528, %v843
        %847 = vst.msk [vmem:[#allocation2] sm:$0xff] %vm459, %v845
        %848 = vst.msk [vmem:[#allocation2 + $0x8] sm:$0xff] %vm459, %v846
        %p849 = scmp.eq.s32.totalorder %s23, 3
        // Predicated region
        $region76: #{transformer_forward.28} parent=66 // pred_check
          %p850 = pneg %p849
        $region77: #{transformer_forward.28} parent=66 // pred_check_branch
          %852 = sbr.rel (%p850) target = $region79
        $region78: #{transformer_forward.28} parent=66 // pred_region
          %v853 = vld [vmem:[#allocation2] sm:$0xff]
          %v854 = vld [vmem:[#allocation2 + $0x8] sm:$0xff]
          %v855 = vadd.f32 %v398, %v853
          %v856 = vadd.f32 %v399, %v854
          %v857 = vld [vmem:[%s4] sm:$0x1]
          %v859 = vperm.slane %v857, 0
          %v861 = vadd.f32 %v855, %v859
          %v862 = vadd.f32 %v856, %v859
          %v863 = vsel %vm459, %v861, 0.0
          %864 = vadd.xlane.f32.xlu0 %v863
          %v865 = vpop.xlane.xlu0 %864
          %v866 = vsel %vm459, %v862, 0.0
          %867 = vadd.xlane.f32.xlu0 %v866
          %v868 = vpop.xlane.xlu0 %867
          %v869 = vrcp.pop 32.0
          %v870 = vmul.f32 32.0, %v869
          %v871 = vsub.f32 1.0, %v870
          %v872 = vmul.f32 %v869, %v871
          %v873 = vadd.f32 %v869, %v872
          %vm874 = vweird.f32 %v869
          %v875 = vsel %vm874, %v869, %v873
          %v876 = vmul.f32 %v865, %v875
          %v877 = vmul.f32 %v868, %v875
          %v878 = vsub.f32 %v861, %v876
          %v879 = vsub.f32 %v862, %v877
          %v880 = vmul.f32 %v878, %v878
          %v881 = vmul.f32 %v879, %v879
          %v882 = vsel %vm459, %v880, 0.0
          %883 = vadd.xlane.f32.xlu0 %v882
          %v884 = vpop.xlane.xlu0 %883
          %v885 = vsel %vm459, %v881, 0.0
          %886 = vadd.xlane.f32.xlu0 %v885
          %v887 = vpop.xlane.xlu0 %886
          %v888 = vmul.f32 %v884, %v875
          %v889 = vmul.f32 %v887, %v875
          %v890 = vadd.f32 %v888, 1e-05
          %v891 = vadd.f32 %v889, 1e-05
          %v892 = vrsqrt.pop %v890
          %v893 = vmul.f32 %v892, %v890
          %v894 = vmul.f32 %v893, %v892
          %v895 = vmul.f32 0.5, %v894
          %v896 = vsub.f32 1.5, %v895
          %v897 = vmul.f32 %v892, %v896
          %vm898 = vweird.f32 %v890
          %vm899 = vweird.f32 %v892
          %vm900 = vmor %vm898, %vm899
          %v901 = vsel %vm900, %v892, %v897
          %v902 = vrsqrt.pop %v891
          %v903 = vmul.f32 %v902, %v891
          %v904 = vmul.f32 %v903, %v902
          %v905 = vmul.f32 0.5, %v904
          %v906 = vsub.f32 1.5, %v905
          %v907 = vmul.f32 %v902, %v906
          %vm908 = vweird.f32 %v891
          %vm909 = vweird.f32 %v902
          %vm910 = vmor %vm908, %vm909
          %v911 = vsel %vm910, %v902, %v907
          %v912 = vmul.f32 %v878, %v901
          %v913 = vmul.f32 %v879, %v911
          %v914 = vld [vmem:[%s5] sm:$0x1]
          %v916 = vperm.slane %v914, 0
          %v918 = vmul.f32 %v912, %v916
          %v919 = vmul.f32 %v913, %v916
          %v920 = vld [vmem:[%s6] sm:$0x1]
          %v922 = vperm.slane %v920, 0
          %v924 = vadd.f32 %v918, %v922
          %v925 = vadd.f32 %v919, %v922
          %926 = vst.msk [vmem:[%s388] sm:$0xff] %vm459, %v924
          %927 = vst.msk [vmem:[%s388 + $0x8] sm:$0xff] %vm459, %v925
        $region79: #{transformer_forward.28} parent=66 // pred_fallthru
          _
        %s928 = smul.u32 2, %s22
        %p929 = scmp.lt.s32.totalorder %s928, 1
        %s930 = scalar_select %p929, %s928, 1
        %s931 = smul.addr %s930, 8
        %s932 = scalar_lea.vmem %s7, %s931
        // Predicated region
        $region80: #{transformer_forward.28} parent=66 // pred_check
          %p933 = pneg %p215
        $region81: #{transformer_forward.28} parent=66 // pred_check_branch
          %935 = sbr.rel (%p933) target = $region83
        $region82: #{transformer_forward.28} parent=66 // pred_region
          %s936 = smul.u32 2, %s22
        $region83: #{transformer_forward.28} parent=66 // pred_fallthru
          _
        // Predicated region
        $region84: #{transformer_forward.28} parent=66 // pred_check
          %p937 = pneg %p215
        $region85: #{transformer_forward.28} parent=66 // pred_check_branch
          %939 = sbr.rel (%p937) target = $region87
        $region86: #{transformer_forward.28} parent=66 // pred_region
          %s940 = smul.u32 2, %s22
          %p941 = scmp.lt.s32.totalorder %s940, 1
          %s942 = scalar_select %p941, %s940, 1
          %s943 = smul.addr %s942, 8
          %s944 = scalar_lea.vmem %s7, %s943
        $region87: #{transformer_forward.28} parent=66 // pred_fallthru
          _
      $region67: #{transformer_forward.28} parent=5 // pred_fallthru
        _
      %p945 = scmp.le.s32.totalorder 2, %s13
      // Predicated region
      $region88: #{transformer_forward.28} parent=5 // pred_check
        %p946 = pneg %p945
      $region89: #{transformer_forward.28} parent=5 // pred_check_branch
        %948 = sbr.rel (%p946) target = $region91
      $region90: #{transformer_forward.28} parent=5 // pred_region
        %s949 = ssub.s32 %s13, 2
      $region91: #{transformer_forward.28} parent=5 // pred_fallthru
        _
    $region6: #{transformer_forward.28} parent=1 // loop_footer
      %s17 = sadd.s32 1, %s13
    $region7: #{transformer_forward.28} parent=1 // loop_footer_branch
      %12 = sbr.rel target = $region3
    $region8: #{transformer_forward.28} parent=1 // loop_exit
      _

// kernel: transformer_forward.36
$region0: #{transformer_forward.36}
  #allocation0 [shape = 'u32[]', space=smem, size = 0x4, offset = 0x4, fixed_abs, tag = 'smem constant byte address 0x4 - core index']
  #allocation1 [shape = 'u32[72,128]{1,0:T(1,128)}', space=vmem, size = 0x9000, scoped, tag = 'internal scratch']
  %s0 = inlined_call_operand.vmem [shape: f32[16,32], index: 0, kind: input, shape index: {}]
  %s1 = inlined_call_operand.vmem [shape: bf16[32,32], index: 1, kind: input, shape index: {}]
  %s2 = inlined_call_operand.vmem [shape: f32[1,32], index: 2, kind: input, shape index: {}]
  %s3 = inlined_call_operand.vmem [shape: bf16[16,32], index: 3, kind: output, shape index: {}]
  %s4 = sld [smem:[#allocation0]]
  $region22: #{transformer_forward.36} parent=0
    _
  %s6 = ssub.s32 1, %s4
  %s7 = scalar_select 0, %s6, %s4
  // Predicated region
  $region2: #{transformer_forward.36} parent=0 // pred_check
    _
  $region3: #{transformer_forward.36} parent=0 // pred_check_branch
    %9 = sbr.rel (0) target = $region5
  $region4: #{transformer_forward.36} parent=0 // pred_region
    _
  $region5: #{transformer_forward.36} parent=0 // pred_fallthru
    _
  // Predicated region
  $region6: #{transformer_forward.36} parent=0 // pred_check
    _
  $region7: #{transformer_forward.36} parent=0 // pred_check_branch
    %11 = sbr.rel (0) target = $region9
  $region8: #{transformer_forward.36} parent=0 // pred_region
    _
  $region9: #{transformer_forward.36} parent=0 // pred_fallthru
    _
  // Predicated region
  $region10: #{transformer_forward.36} parent=0 // pred_check
    _
  $region11: #{transformer_forward.36} parent=0 // pred_check_branch
    %13 = sbr.rel (0) target = $region13
  $region12: #{transformer_forward.36} parent=0 // pred_region
    _
  $region13: #{transformer_forward.36} parent=0 // pred_fallthru
    _
  %v15 = vld [vmem:[%s0] sm:$0xff]
  %v16 = vld [vmem:[%s0 + $0x8] sm:$0xff]
  %v17 = vpack.c.bf16 %v16, %v15
  %v18 = vld [vmem:[%s1] sm:$0xf]
  %v19 = vld [vmem:[%s1 + $0x4] sm:$0xf]
  %v20 = vld [vmem:[%s1 + $0x8] sm:$0xf]
  %v21 = vld [vmem:[%s1 + $0xc] sm:$0xf]
  %v22 = vld [vmem:[%s2] sm:$0x1]
  %v24 = vperm.slane %v22, 0
  %v30 = vunpack.c.l.b16 %v18
  %v31 = vunpack.c.l.b16 %v19
  %v32 = vunpack.c.l.b16 %v20
  %v33 = vunpack.c.l.b16 %v21
  %v34 = vpack.c.b16 %v31, %v30
  %v35 = vpack.c.b16 %v33, %v32
  %vm38 = vcmask 261120
  %v40 = vsel %vm38, %v17, 0
  %42 = vmatpush.bf16.msra.mxu0 0
  %43 = vmatpush.bf16.msra.mxu0 0
  %44 = vmatpush.bf16.msra.mxu0 0
  %45 = vmatpush.bf16.msra.mxu0 0
  %46 = vmatpush.bf16.msra.mxu0 0
  %47 = vmatpush.bf16.msra.mxu0 0
  %48 = vmatpush.bf16.msra.mxu0 %v35
  %49 = vmatpush.bf16.msra.mxu0 %v34
  %50 = vmatmul.bf16.gmra.mxu0 %v40
  %v51 = vpop.f32.mrf.mxu0
  %v52 = vadd.f32 %v24, %v51
  %v53 = vpop.f32.mrf.mxu0
  %v54 = vadd.f32 %v24, %v53
  %55 = vdwg.mxu0
  %v56 = vpack.c.bf16 %v52, %v52
  %v57 = vpack.c.bf16 %v54, %v54
  %vm58 = vcmask 257024
  %59 = vst.msk [vmem:[%s3] sm:$0xf] %vm58, %v56
  %60 = vst.msk [vmem:[%s3 + $0x4] sm:$0xf] %vm58, %v57
  // Predicated region
  $region14: #{transformer_forward.36} parent=0 // pred_check
    _
  $region15: #{transformer_forward.36} parent=0 // pred_check_branch
    %62 = sbr.rel (0) target = $region17
  $region16: #{transformer_forward.36} parent=0 // pred_region
    _
  $region17: #{transformer_forward.36} parent=0 // pred_fallthru
    _
  // Predicated region
  $region18: #{transformer_forward.36} parent=0 // pred_check
    _
  $region19: #{transformer_forward.36} parent=0 // pred_check_branch
    %64 = sbr.rel (0) target = $region21
  $region20: #{transformer_forward.36} parent=0 // pred_region
    _
  $region21: #{transformer_forward.36} parent=0 // pred_fallthru
    _

// kernel: transformer_forward.49
$region0: #{transformer_forward.49}
  #allocation0 [shape = 'u32[]', space=smem, size = 0x4, offset = 0x4, fixed_abs, tag = 'smem constant byte address 0x4 - core index']
  #allocation1 [shape = 'u32[72,128]{1,0:T(1,128)}', space=vmem, size = 0x9000, scoped, tag = 'internal scratch']
  %s0 = inlined_call_operand.vmem [shape: f32[16,32], index: 0, kind: input, shape index: {}]
  %s1 = inlined_call_operand.vmem [shape: bf16[32,128], index: 1, kind: input, shape index: {}]
  %s2 = inlined_call_operand.vmem [shape: f32[1,128], index: 2, kind: input, shape index: {}]
  %s3 = inlined_call_operand.vmem [shape: f32[16,128], index: 3, kind: output, shape index: {}]
  %s4 = sld [smem:[#allocation0]]
  $region22: #{transformer_forward.49} parent=0
    _
  %s6 = ssub.s32 1, %s4
  %s7 = scalar_select 0, %s6, %s4
  // Predicated region
  $region2: #{transformer_forward.49} parent=0 // pred_check
    _
  $region3: #{transformer_forward.49} parent=0 // pred_check_branch
    %9 = sbr.rel (0) target = $region5
  $region4: #{transformer_forward.49} parent=0 // pred_region
    _
  $region5: #{transformer_forward.49} parent=0 // pred_fallthru
    _
  // Predicated region
  $region6: #{transformer_forward.49} parent=0 // pred_check
    _
  $region7: #{transformer_forward.49} parent=0 // pred_check_branch
    %11 = sbr.rel (0) target = $region9
  $region8: #{transformer_forward.49} parent=0 // pred_region
    _
  $region9: #{transformer_forward.49} parent=0 // pred_fallthru
    _
  // Predicated region
  $region10: #{transformer_forward.49} parent=0 // pred_check
    _
  $region11: #{transformer_forward.49} parent=0 // pred_check_branch
    %13 = sbr.rel (0) target = $region13
  $region12: #{transformer_forward.49} parent=0 // pred_region
    _
  $region13: #{transformer_forward.49} parent=0 // pred_fallthru
    _
  %v15 = vld [vmem:[%s0] sm:$0xff]
  %v16 = vld [vmem:[%s0 + $0x8] sm:$0xff]
  %v17 = vpack.c.bf16 %v16, %v15
  %v18 = vld [vmem:[%s1] sm:$0xf]
  %v19 = vld [vmem:[%s1 + $0x4] sm:$0xf]
  %v20 = vld [vmem:[%s1 + $0x8] sm:$0xf]
  %v21 = vld [vmem:[%s1 + $0xc] sm:$0xf]
  %v22 = vld [vmem:[%s2] sm:$0x1]
  %v24 = vperm.slane %v22, 0
  %v30 = vunpack.c.l.b16 %v18
  %v31 = vunpack.c.l.b16 %v19
  %v32 = vunpack.c.l.b16 %v20
  %v33 = vunpack.c.l.b16 %v21
  %v34 = vpack.c.b16 %v31, %v30
  %v35 = vpack.c.b16 %v33, %v32
  %vm38 = vcmask 261120
  %v40 = vsel %vm38, %v17, 0
  %42 = vmatpush.bf16.msra.mxu0 0
  %43 = vmatpush.bf16.msra.mxu0 0
  %44 = vmatpush.bf16.msra.mxu0 0
  %45 = vmatpush.bf16.msra.mxu0 0
  %46 = vmatpush.bf16.msra.mxu0 0
  %47 = vmatpush.bf16.msra.mxu0 0
  %48 = vmatpush.bf16.msra.mxu0 %v35
  %49 = vmatpush.bf16.msra.mxu0 %v34
  %50 = vmatmul.bf16.gmra.mxu0 %v40
  %v51 = vpop.f32.mrf.mxu0
  %v52 = vadd.f32 %v24, %v51
  %v53 = vpop.f32.mrf.mxu0
  %v54 = vadd.f32 %v24, %v53
  %55 = vdwg.mxu0
  %56 = vst [vmem:[%s3] sm:$0xff] %v52
  %57 = vst [vmem:[%s3 + $0x8] sm:$0xff] %v54
  // Predicated region
  $region14: #{transformer_forward.49} parent=0 // pred_check
    _
  $region15: #{transformer_forward.49} parent=0 // pred_check_branch
    %59 = sbr.rel (0) target = $region17
  $region16: #{transformer_forward.49} parent=0 // pred_region
    _
  $region17: #{transformer_forward.49} parent=0 // pred_fallthru
    _
  // Predicated region
  $region18: #{transformer_forward.49} parent=0 // pred_check
    _
  $region19: #{transformer_forward.49} parent=0 // pred_check_branch
    %61 = sbr.rel (0) target = $region21
  $region20: #{transformer_forward.49} parent=0 // pred_region
    _
  $region21: #{transformer_forward.49} parent=0 // pred_fallthru
    _

// kernel: transformer_forward.34
$region0: #{transformer_forward.34}
  #allocation0 [shape = 'u32[]', space=smem, size = 0x4, offset = 0x4, fixed_abs, tag = 'smem constant byte address 0x4 - core index']
  #allocation1 [shape = 'u32[72,128]{1,0:T(1,128)}', space=vmem, size = 0x9000, scoped, tag = 'internal scratch']
  #allocation2 [shape = 'f32[4,8,1]{2,1,0:T(8,128)}', space=vmem, size = 0x4000, scoped, tag = 'scratch operand']
  #allocation3 [shape = 'f32[4,8,1]{2,1,0:T(8,128)}', space=vmem, size = 0x4000, scoped, tag = 'scratch operand']
  #allocation4 [shape = 'f32[8,32]{1,0:T(8,128)}', space=vmem, size = 0x1000, scoped, tag = 'scratch operand']
  %s0 = inlined_call_operand.vmem [shape: bf16[2,8,32], index: 0, kind: input, shape index: {}]
  %s1 = inlined_call_operand.vmem [shape: bf16[2,8,32], index: 1, kind: input, shape index: {}]
  %s2 = inlined_call_operand.vmem [shape: bf16[2,8,32], index: 2, kind: input, shape index: {}]
  %s3 = inlined_call_operand.vmem [shape: f32[2,1,8], index: 3, kind: input, shape index: {}]
  %s4 = inlined_call_operand.vmem [shape: bf16[2,8,32], index: 4, kind: output, shape index: {}]
  %s5 = sld [smem:[#allocation0]]
  $region61: #{transformer_forward.34} parent=0
    _
  %s7 = ssub.s32 1, %s5
  %s8 = scalar_select 0, %s7, %s5
  loop: start=0, step=1, limit=4
  $region2: #{transformer_forward.34} parent=0 // loop_pre_header
    _
  $region3: #{transformer_forward.34} parent=0 // loop_header
    %s10 = sphi 0, %s14
    %p11 = scmp.ge.s32.totalorder %s10, 4
    %s17 = sphi 0, %s36
    %s18 = sphi 0, %s32
    %s19 = sphi 0, %s28
    %s20 = sphi 0, %s17
    %s21 = sphi 0, %s18
    %s22 = sphi 0, %s19
    %s23 = sphi 0, %s20
    %s24 = sphi 0, %s21
    %s25 = sphi 0, %s22
    %s41 = sphi 0, %s43
    %s44 = sphi 0, %s41
    %s45 = sphi 0, %s44
    %s61 = sphi 0, %s45
    %s69 = sphi 0, %s71
    %s72 = sphi 0, %s69
    %s73 = sphi 0, %s72
    %s89 = sphi 0, %s73
    %s97 = sphi 0, %s99
    %s100 = sphi 0, %s97
    %s101 = sphi 0, %s100
    %s117 = sphi 0, %s101
    %s125 = sphi 0, %s127
    %s128 = sphi 0, %s125
    %s129 = sphi 0, %s128
    %s145 = sphi 0, %s129
    %s153 = sphi 0, %s155
    %s156 = sphi 0, %s153
    %s157 = sphi 0, %s156
    %s173 = sphi 0, %s157
  $region4: #{transformer_forward.34} parent=0 // loop_header_branch
    %13 = sbr.rel (%p11) target = $region8
  $region5: #{transformer_forward.34} parent=0 // loop_body
    %s15 = ssub.s32 %s10, 1
    %s16 = ssub.s32 %s10, 2
    %s26 = sadd.s32 1, %s19
    %p27 = scmp.ge.s32.totalorder %s26, 1
    %s28 = scalar_select %p27, 0, %s26
    %s29 = sadd.s32 1, %s18
    %s30 = scalar_select %p27, %s29, %s18
    %p31 = scmp.ge.s32.totalorder %s30, 1
    %s32 = scalar_select %p31, 0, %s30
    %s33 = sadd.s32 1, %s17
    %s34 = scalar_select %p31, %s33, %s17
    %p35 = scmp.ge.s32.totalorder %s34, 2
    %s36 = scalar_select %p35, 0, %s34
    %s37 = ssub.s32 %s17, %s36
    %s38 = ssub.s32 %s18, %s32
    %s39 = sor.u32 %s37, %s38
    %p40 = scmp.eq.s32.totalorder %s39, 0
    %s42 = sadd.s32 %s41, 1
    %s43 = scalar_select %p40, %s41, %s42
    %p46 = pneg %p40
    %p47 = scmp.eq.s32.totalorder %s10, 1
    %p48 = por %p46, %p47
    %p49 = scmp.ne.s32.totalorder %s41, %s44
    %p50 = scmp.eq.s32.totalorder %s10, 0
    %p51 = por %p49, %p50
    %p52 = scmp.ne.s32.totalorder %s41, %s44
    %p53 = scmp.eq.s32.totalorder %s15, 1
    %p54 = por %p52, %p53
    %p55 = scmp.ne.s32.totalorder %s44, %s45
    %p56 = scmp.eq.s32.totalorder %s15, 0
    %p57 = por %p55, %p56
    %p58 = scmp.ne.s32.totalorder %s44, %s45
    %p59 = scmp.eq.s32.totalorder %s16, 1
    %p60 = por %p58, %p59
    %p62 = scmp.ne.s32.totalorder %s45, %s61
    %p63 = scmp.eq.s32.totalorder %s16, 0
    %p64 = por %p62, %p63
    %s65 = ssub.s32 %s17, %s36
    %s66 = ssub.s32 %s19, %s28
    %s67 = sor.u32 %s65, %s66
    %p68 = scmp.eq.s32.totalorder %s67, 0
    %s70 = sadd.s32 %s69, 1
    %s71 = scalar_select %p68, %s69, %s70
    %p74 = pneg %p68
    %p75 = scmp.eq.s32.totalorder %s10, 1
    %p76 = por %p74, %p75
    %p77 = scmp.ne.s32.totalorder %s69, %s72
    %p78 = scmp.eq.s32.totalorder %s10, 0
    %p79 = por %p77, %p78
    %p80 = scmp.ne.s32.totalorder %s69, %s72
    %p81 = scmp.eq.s32.totalorder %s15, 1
    %p82 = por %p80, %p81
    %p83 = scmp.ne.s32.totalorder %s72, %s73
    %p84 = scmp.eq.s32.totalorder %s15, 0
    %p85 = por %p83, %p84
    %p86 = scmp.ne.s32.totalorder %s72, %s73
    %p87 = scmp.eq.s32.totalorder %s16, 1
    %p88 = por %p86, %p87
    %p90 = scmp.ne.s32.totalorder %s73, %s89
    %p91 = scmp.eq.s32.totalorder %s16, 0
    %p92 = por %p90, %p91
    %s93 = ssub.s32 %s17, %s36
    %s94 = ssub.s32 %s19, %s28
    %s95 = sor.u32 %s93, %s94
    %p96 = scmp.eq.s32.totalorder %s95, 0
    %s98 = sadd.s32 %s97, 1
    %s99 = scalar_select %p96, %s97, %s98
    %p102 = pneg %p96
    %p103 = scmp.eq.s32.totalorder %s10, 1
    %p104 = por %p102, %p103
    %p105 = scmp.ne.s32.totalorder %s97, %s100
    %p106 = scmp.eq.s32.totalorder %s10, 0
    %p107 = por %p105, %p106
    %p108 = scmp.ne.s32.totalorder %s97, %s100
    %p109 = scmp.eq.s32.totalorder %s15, 1
    %p110 = por %p108, %p109
    %p111 = scmp.ne.s32.totalorder %s100, %s101
    %p112 = scmp.eq.s32.totalorder %s15, 0
    %p113 = por %p111, %p112
    %p114 = scmp.ne.s32.totalorder %s100, %s101
    %p115 = scmp.eq.s32.totalorder %s16, 1
    %p116 = por %p114, %p115
    %p118 = scmp.ne.s32.totalorder %s101, %s117
    %p119 = scmp.eq.s32.totalorder %s16, 0
    %p120 = por %p118, %p119
    %s121 = ssub.s32 %s17, %s36
    %s122 = ssub.s32 %s19, %s28
    %s123 = sor.u32 %s121, %s122
    %p124 = scmp.eq.s32.totalorder %s123, 0
    %s126 = sadd.s32 %s125, 1
    %s127 = scalar_select %p124, %s125, %s126
    %p130 = pneg %p124
    %p131 = scmp.eq.s32.totalorder %s10, 1
    %p132 = por %p130, %p131
    %p133 = scmp.ne.s32.totalorder %s125, %s128
    %p134 = scmp.eq.s32.totalorder %s10, 0
    %p135 = por %p133, %p134
    %p136 = scmp.ne.s32.totalorder %s125, %s128
    %p137 = scmp.eq.s32.totalorder %s15, 1
    %p138 = por %p136, %p137
    %p139 = scmp.ne.s32.totalorder %s128, %s129
    %p140 = scmp.eq.s32.totalorder %s15, 0
    %p141 = por %p139, %p140
    %p142 = scmp.ne.s32.totalorder %s128, %s129
    %p143 = scmp.eq.s32.totalorder %s16, 1
    %p144 = por %p142, %p143
    %p146 = scmp.ne.s32.totalorder %s129, %s145
    %p147 = scmp.eq.s32.totalorder %s16, 0
    %p148 = por %p146, %p147
    %s149 = ssub.s32 %s17, %s36
    %s150 = ssub.s32 %s18, %s32
    %s151 = sor.u32 %s149, %s150
    %p152 = scmp.eq.s32.totalorder %s151, 0
    %s154 = sadd.s32 %s153, 1
    %s155 = scalar_select %p152, %s153, %s154
    %p158 = pneg %p152
    %p159 = scmp.eq.s32.totalorder %s10, 1
    %p160 = por %p158, %p159
    %p161 = scmp.ne.s32.totalorder %s153, %s156
    %p162 = scmp.eq.s32.totalorder %s10, 0
    %p163 = por %p161, %p162
    %p164 = scmp.ne.s32.totalorder %s153, %s156
    %p165 = scmp.eq.s32.totalorder %s15, 1
    %p166 = por %p164, %p165
    %p167 = scmp.ne.s32.totalorder %s156, %s157
    %p168 = scmp.eq.s32.totalorder %s15, 0
    %p169 = por %p167, %p168
    %p170 = scmp.ne.s32.totalorder %s156, %s157
    %p171 = scmp.eq.s32.totalorder %s16, 1
    %p172 = por %p170, %p171
    %p174 = scmp.ne.s32.totalorder %s157, %s173
    %p175 = scmp.eq.s32.totalorder %s16, 0
    %p176 = por %p174, %p175
    %p177 = scmp.le.s32.totalorder 1, %s10
    %p178 = scmp.lt.s32.totalorder %s10, 3
    %p179 = pnand %p177, %p178
    %p180 = pneg %p179
    // Predicated region
    $region9: #{transformer_forward.34} parent=5 // pred_check
      _
    $region10: #{transformer_forward.34} parent=5 // pred_check_branch
      %182 = sbr.rel (%p179) target = $region12
    $region11: #{transformer_forward.34} parent=5 // pred_region
      %s183 = ssub.s32 %s10, 1
    $region12: #{transformer_forward.34} parent=5 // pred_fallthru
      _
    %p184 = scmp.lt.s32.totalorder %s10, 2
    // Predicated region
    $region13: #{transformer_forward.34} parent=5 // pred_check
      %p185 = pneg %p184
    $region14: #{transformer_forward.34} parent=5 // pred_check_branch
      %187 = sbr.rel (%p185) target = $region16
    $region15: #{transformer_forward.34} parent=5 // pred_region
      // Predicated region
      $region17: #{transformer_forward.34} parent=15 // pred_check
        %p188 = pneg %p51
      $region18: #{transformer_forward.34} parent=15 // pred_check_branch
        %190 = sbr.rel (%p188) target = $region20
      $region19: #{transformer_forward.34} parent=15 // pred_region
        %p191 = scmp.lt.s32.totalorder %s17, 1
        %s192 = scalar_select %p191, %s17, 1
        %p193 = scmp.lt.s32.totalorder %s18, 0
        %s194 = scalar_select %p193, %s18, 0
        %s195 = sadd.s32 %s194, %s192
        %s196 = smul.addr %s195, 4
        %s197 = scalar_lea.vmem %s0, %s196
      $region20: #{transformer_forward.34} parent=15 // pred_fallthru
        _
      // Predicated region
      $region21: #{transformer_forward.34} parent=15 // pred_check
        %p198 = pneg %p79
      $region22: #{transformer_forward.34} parent=15 // pred_check_branch
        %200 = sbr.rel (%p198) target = $region24
      $region23: #{transformer_forward.34} parent=15 // pred_region
        %p201 = scmp.lt.s32.totalorder %s17, 1
        %s202 = scalar_select %p201, %s17, 1
        %p203 = scmp.lt.s32.totalorder %s19, 0
        %s204 = scalar_select %p203, %s19, 0
        %s205 = sadd.s32 %s204, %s202
        %s206 = smul.addr %s205, 4
        %s207 = scalar_lea.vmem %s1, %s206
      $region24: #{transformer_forward.34} parent=15 // pred_fallthru
        _
      // Predicated region
      $region25: #{transformer_forward.34} parent=15 // pred_check
        %p208 = pneg %p107
      $region26: #{transformer_forward.34} parent=15 // pred_check_branch
        %210 = sbr.rel (%p208) target = $region28
      $region27: #{transformer_forward.34} parent=15 // pred_region
        %p211 = scmp.lt.s32.totalorder %s17, 1
        %s212 = scalar_select %p211, %s17, 1
        %p213 = scmp.lt.s32.totalorder %s19, 0
        %s214 = scalar_select %p213, %s19, 0
        %s215 = sadd.s32 %s214, %s212
        %s216 = smul.addr %s215, 4
        %s217 = scalar_lea.vmem %s2, %s216
      $region28: #{transformer_forward.34} parent=15 // pred_fallthru
        _
      // Predicated region
      $region29: #{transformer_forward.34} parent=15 // pred_check
        %p218 = pneg %p135
      $region30: #{transformer_forward.34} parent=15 // pred_check_branch
        %220 = sbr.rel (%p218) target = $region32
      $region31: #{transformer_forward.34} parent=15 // pred_region
        %p221 = scmp.lt.s32.totalorder %s17, 1
        %s222 = scalar_select %p221, %s17, 1
        %p223 = scmp.lt.s32.totalorder %s19, 0
        %s224 = scalar_select %p223, %s19, 0
        %s225 = sadd.s32 %s224, %s222
        %s226 = scalar_lea.vmem %s3, %s225
      $region32: #{transformer_forward.34} parent=15 // pred_fallthru
        _
    $region16: #{transformer_forward.34} parent=5 // pred_fallthru
      _
    %p227 = scmp.le.s32.totalorder 1, %s10
    %p228 = scmp.lt.s32.totalorder %s10, 3
    %p229 = pnand %p227, %p228
    %p230 = pneg %p229
    // Predicated region
    $region33: #{transformer_forward.34} parent=5 // pred_check
      _
    $region34: #{transformer_forward.34} parent=5 // pred_check_branch
      %232 = sbr.rel (%p229) target = $region36
    $region35: #{transformer_forward.34} parent=5 // pred_region
      %s233 = ssub.s32 %s10, 1
      %p234 = scmp.lt.s32.totalorder %s20, 1
      %s235 = scalar_select %p234, %s20, 1
      %p236 = scmp.lt.s32.totalorder %s21, 0
      %s237 = scalar_select %p236, %s21, 0
      %s238 = sadd.s32 %s237, %s235
      %s239 = smul.addr %s238, 4
      %s240 = scalar_lea.vmem %s0, %s239
      %p241 = pneg %p57
      %p242 = pneg %p54
      %p243 = scmp.lt.s32.totalorder %s20, 1
      %s244 = scalar_select %p243, %s20, 1
      %p245 = scmp.lt.s32.totalorder %s22, 0
      %s246 = scalar_select %p245, %s22, 0
      %s247 = sadd.s32 %s246, %s244
      %s248 = smul.addr %s247, 4
      %s249 = scalar_lea.vmem %s1, %s248
      %p250 = pneg %p85
      %p251 = pneg %p82
      %p252 = scmp.lt.s32.totalorder %s20, 1
      %s253 = scalar_select %p252, %s20, 1
      %p254 = scmp.lt.s32.totalorder %s22, 0
      %s255 = scalar_select %p254, %s22, 0
      %s256 = sadd.s32 %s255, %s253
      %s257 = smul.addr %s256, 4
      %s258 = scalar_lea.vmem %s2, %s257
      %p259 = pneg %p113
      %p260 = pneg %p110
      %p261 = scmp.lt.s32.totalorder %s20, 1
      %s262 = scalar_select %p261, %s20, 1
      %p263 = scmp.lt.s32.totalorder %s22, 0
      %s264 = scalar_select %p263, %s22, 0
      %s265 = sadd.s32 %s264, %s262
      %s266 = scalar_lea.vmem %s3, %s265
      %p267 = pneg %p141
      %p268 = pneg %p138
      %p269 = pneg %p169
      %p270 = pneg %p166
      %p271 = scmp.lt.s32.totalorder %s20, 1
      %s272 = scalar_select %p271, %s20, 1
      %p273 = scmp.lt.s32.totalorder %s21, 0
      %s274 = scalar_select %p273, %s21, 0
      %s275 = sadd.s32 %s274, %s272
      %s276 = smul.addr %s275, 4
      %s277 = scalar_lea.vmem %s4, %s276
      %p278 = scmp.lt.s32.totalorder %s20, 1
      %s279 = scalar_select %p278, %s20, 1
      %p280 = scmp.lt.s32.totalorder %s21, 0
      %s281 = scalar_select %p280, %s21, 0
      %s282 = sadd.s32 %s281, %s279
      %s283 = smul.addr %s282, 4
      %s284 = scalar_lea.vmem %s0, %s283
      %p285 = scmp.lt.s32.totalorder %s20, 1
      %s286 = scalar_select %p285, %s20, 1
      %p287 = scmp.lt.s32.totalorder %s22, 0
      %s288 = scalar_select %p287, %s22, 0
      %s289 = sadd.s32 %s288, %s286
      %s290 = smul.addr %s289, 4
      %s291 = scalar_lea.vmem %s1, %s290
      %p292 = scmp.lt.s32.totalorder %s20, 1
      %s293 = scalar_select %p292, %s20, 1
      %p294 = scmp.lt.s32.totalorder %s22, 0
      %s295 = scalar_select %p294, %s22, 0
      %s296 = sadd.s32 %s295, %s293
      %s297 = smul.addr %s296, 4
      %s298 = scalar_lea.vmem %s2, %s297
      %p299 = scmp.lt.s32.totalorder %s20, 1
      %s300 = scalar_select %p299, %s20, 1
      %p301 = scmp.lt.s32.totalorder %s22, 0
      %s302 = scalar_select %p301, %s22, 0
      %s303 = sadd.s32 %s302, %s300
      %s304 = scalar_lea.vmem %s3, %s303
      %p305 = scmp.lt.s32.totalorder %s20, 1
      %s306 = scalar_select %p305, %s20, 1
      %p307 = scmp.lt.s32.totalorder %s21, 0
      %s308 = scalar_select %p307, %s21, 0
      %s309 = sadd.s32 %s308, %s306
      %s310 = smul.addr %s309, 4
      %s311 = scalar_lea.vmem %s4, %s310
      %p313 = scmp.eq.s32.totalorder %s22, 0
      // Predicated region
      $region37: #{transformer_forward.34} parent=35 // pred_check
        %p314 = pneg %p313
      $region38: #{transformer_forward.34} parent=35 // pred_check_branch
        %316 = sbr.rel (%p314) target = $region40
      $region39: #{transformer_forward.34} parent=35 // pred_region
        %vm317 = vcmask 7168
        %318 = vst.msk [vmem:[#allocation2] sm:$0xff] %vm317, -1e+30
        %319 = vst.msk [vmem:[#allocation2 + $0x8] sm:$0xff] %vm317, -1e+30
        %320 = vst.msk [vmem:[#allocation2 + $0x10] sm:$0xff] %vm317, -1e+30
        %321 = vst.msk [vmem:[#allocation2 + $0x18] sm:$0xff] %vm317, -1e+30
        %322 = vst.msk [vmem:[#allocation3] sm:$0xff] %vm317, 0.0
        %323 = vst.msk [vmem:[#allocation3 + $0x8] sm:$0xff] %vm317, 0.0
        %324 = vst.msk [vmem:[#allocation3 + $0x10] sm:$0xff] %vm317, 0.0
        %325 = vst.msk [vmem:[#allocation3 + $0x18] sm:$0xff] %vm317, 0.0
        %vm326 = vcmask 261120
        %327 = vst.msk [vmem:[#allocation4] sm:$0xff] %vm326, 0.0
      $region40: #{transformer_forward.34} parent=35 // pred_fallthru
        _
      %s328 = smul.u32 %s22, 8
      %s329 = smul.u32 %s21, 8
      %s330 = sadd.s32 %s329, 7
      %p331 = scmp.le.s32.totalorder %s328, %s330
      // Predicated region
      $region41: #{transformer_forward.34} parent=35 // pred_check
        %p332 = pneg %p331
      $region42: #{transformer_forward.34} parent=35 // pred_check_branch
        %334 = sbr.rel (%p332) target = $region44
      $region43: #{transformer_forward.34} parent=35 // pred_region
        %v335 = vld [vmem:[%s284] sm:$0xf]
        %v336 = vld [vmem:[%s291] sm:$0xf]
        %v337 = vld [vmem:[%s298] sm:$0xf]
        %v338 = vld [vmem:[%s304] sm:$0x1]
        %v340 = vperm.slane %v338, 0
        %v342 = vlaneseq
        %v343 = vshrl.u32 %v342, 7
        %v344 = vstv %s329
        %v345 = vadd.s32 %v344, %v343
        %v346 = vlaneseq
        %v347 = vand.u32 %v346, 127
        %v348 = vstv %s328
        %v349 = vadd.s32 %v348, %v347
        %vm350 = vcmp.gt.s32.totalorder %v349, %v345
        %v351 = vsel %vm350, -1e+30, %v340
        %vm352 = vcmask 64512
        %v354 = vsel %vm352, %v335, 0
        %v357 = vsel %vm352, %v336, 0
        %359 = vmatpush.bf16.xpose.msra.mxu0 0
        %360 = vmatpush.bf16.xpose.msra.mxu0 0
        %361 = vmatpush.bf16.xpose.msra.mxu0 0
        %362 = vmatpush.bf16.xpose.msra.mxu0 0
        %363 = vmatpush.bf16.xpose.msra.mxu0 0
        %364 = vmatpush.bf16.xpose.msra.mxu0 0
        %365 = vmatpush.bf16.xpose.msra.mxu0 0
        %366 = vmatpush.bf16.xpose.msra.mxu0 %v357
        %367 = vmatmul.bf16.gmra.mxu0 %v354
        %v368 = vpop.f32.mrf.mxu0
        %v369 = vadd.f32 0.0, %v368
        %v370 = vpop.f32.mrf.mxu0
        %371 = vdwg.mxu0
        %v372 = vmul.f32 %v369, 0.35355338
        %v373 = vadd.f32 %v372, %v351
        %v374 = vld [vmem:[#allocation2] sm:$0xff]
        %v375 = vsel %vm352, %v373, -inf
        %376 = vmax.xlane.f32.xlu0 %v375
        %v377 = vpop.xlane.xlu0 %376
        %v378 = vmax.f32 %v374, %v377
        %v379 = vsub.f32 %v374, %v378
        %v380 = vmul.f32 %v379, 1.442695
        %v381 = vpow.pop %v380
        %383 = vset.pattern.permute.xlu0 0
        %384 = vperm.xlu0 %383, %v378
        %v385 = vpop.permute.xlu0 %384
        %v387 = vsub.f32 %v373, %v385
        %v388 = vmul.f32 %v387, 1.442695
        %v389 = vpow.pop %v388
        %v390 = vld [vmem:[#allocation3] sm:$0xff]
        %v391 = vmul.f32 %v381, %v390
        %v392 = vsel %vm352, %v389, 0.0
        %393 = vadd.xlane.f32.xlu0 %v392
        %v394 = vpop.xlane.xlu0 %393
        %v395 = vadd.f32 %v391, %v394
        %vm396 = vcmask 7168
        %397 = vst.msk [vmem:[#allocation3] sm:$0xff] %vm396, %v395
        %v398 = vld [vmem:[#allocation4] sm:$0xff]
        %400 = vset.pattern.permute.xlu0 0
        %401 = vperm.xlu0 %400, %v381
        %v402 = vpop.permute.xlu0 %401
        %v404 = vmul.f32 %v402, %v398
        %v405 = vpack.c.bf16 %v389, %v389
        %v407 = vsel %vm352, %v405, 0
        %vm409 = vcmask 1043456
        %v411 = vsel %vm409, %v337, 0
        %413 = vmatpush.bf16.msra.mxu0 0
        %414 = vmatpush.bf16.msra.mxu0 0
        %415 = vmatpush.bf16.msra.mxu0 0
        %416 = vmatpush.bf16.msra.mxu0 0
        %417 = vmatpush.bf16.msra.mxu0 0
        %418 = vmatpush.bf16.msra.mxu0 0
        %419 = vmatpush.bf16.msra.mxu0 0
        %420 = vmatpush.bf16.msra.mxu0 %v411
        %421 = vmatmul.bf16.gmra.mxu0 %v407
        %v422 = vpop.f32.mrf.mxu0
        %v423 = vadd.f32 0.0, %v422
        %v424 = vpop.f32.mrf.mxu0
        %425 = vdwg.mxu0
        %v426 = vadd.f32 %v404, %v423
        %427 = vst.msk [vmem:[#allocation4] sm:$0xff] %vm352, %v426
        %428 = vst.msk [vmem:[#allocation2] sm:$0xff] %vm396, %v378
        %v430 = vunpack.c.l.b16 %v335
        %v431 = vpack.c.b16 %v430, %v430
        %432 = vrot.lane.b32.xlu0 %v431, 120
        %v433 = vpop.permute.xlu0 %432
        %v435 = vunpack.c.l.b16 %v336
        %v436 = vpack.c.b16 %v435, %v435
        %437 = vrot.lane.b32.xlu0 %v436, 120
        %v438 = vpop.permute.xlu0 %437
        %v440 = vsel %vm352, %v433, 0
        %v443 = vsel %vm352, %v438, 0
        %445 = vmatpush.bf16.xpose.msra.mxu0 0
        %446 = vmatpush.bf16.xpose.msra.mxu0 0
        %447 = vmatpush.bf16.xpose.msra.mxu0 0
        %448 = vmatpush.bf16.xpose.msra.mxu0 0
        %449 = vmatpush.bf16.xpose.msra.mxu0 0
        %450 = vmatpush.bf16.xpose.msra.mxu0 0
        %451 = vmatpush.bf16.xpose.msra.mxu0 0
        %452 = vmatpush.bf16.xpose.msra.mxu0 %v443
        %453 = vmatmul.bf16.gmra.mxu0 %v440
        %v454 = vpop.f32.mrf.mxu0
        %v455 = vadd.f32 0.0, %v454
        %v456 = vpop.f32.mrf.mxu0
        %457 = vdwg.mxu0
        %v458 = vmul.f32 %v455, 0.35355338
        %v459 = vadd.f32 %v458, %v351
        %s460 = scalar_lea.vmem [#allocation2], 8
        %v461 = vld [vmem:[%s460] sm:$0xff]
        %v462 = vsel %vm352, %v459, -inf
        %463 = vmax.xlane.f32.xlu0 %v462
        %v464 = vpop.xlane.xlu0 %463
        %v465 = vmax.f32 %v461, %v464
        %v466 = vsub.f32 %v461, %v465
        %v467 = vmul.f32 %v466, 1.442695
        %v468 = vpow.pop %v467
        %470 = vset.pattern.permute.xlu0 0
        %471 = vperm.xlu0 %470, %v465
        %v472 = vpop.permute.xlu0 %471
        %v474 = vsub.f32 %v459, %v472
        %v475 = vmul.f32 %v474, 1.442695
        %v476 = vpow.pop %v475
        %s477 = scalar_lea.vmem [#allocation3], 8
        %v478 = vld [vmem:[%s477] sm:$0xff]
        %v479 = vmul.f32 %v468, %v478
        %v480 = vsel %vm352, %v476, 0.0
        %481 = vadd.xlane.f32.xlu0 %v480
        %v482 = vpop.xlane.xlu0 %481
        %v483 = vadd.f32 %v479, %v482
        %484 = vst.msk [vmem:[%s477] sm:$0xff] %vm396, %v483
        %v485 = vld [vmem:[#allocation4] sm:$0xff]
        %487 = vset.pattern.permute.xlu0 0
        %488 = vperm.xlu0 %487, %v468
        %v489 = vpop.permute.xlu0 %488
        %v491 = vmul.f32 %v489, %v485
        %v492 = vpack.c.bf16 %v476, %v476
        %v494 = vunpack.c.l.b16 %v337
        %v495 = vpack.c.b16 %v494, %v494
        %496 = vrot.lane.b32.xlu0 %v495, 120
        %v497 = vpop.permute.xlu0 %496
        %v499 = vsel %vm352, %v492, 0
        %v502 = vsel %vm409, %v497, 0
        %504 = vmatpush.bf16.msra.mxu0 0
        %505 = vmatpush.bf16.msra.mxu0 0
        %506 = vmatpush.bf16.msra.mxu0 0
        %507 = vmatpush.bf16.msra.mxu0 0
        %508 = vmatpush.bf16.msra.mxu0 0
        %509 = vmatpush.bf16.msra.mxu0 0
        %510 = vmatpush.bf16.msra.mxu0 0
        %511 = vmatpush.bf16.msra.mxu0 %v502
        %512 = vmatmul.bf16.gmra.mxu0 %v499
        %v513 = vpop.f32.mrf.mxu0
        %v514 = vadd.f32 0.0, %v513
        %v515 = vpop.f32.mrf.mxu0
        %516 = vdwg.mxu0
        %518 = vrot.lane.b32.xlu0 %v514, 8
        %v519 = vpop.permute.xlu0 %518
        %v521 = vadd.f32 %v491, %v519
        %vm522 = vcmask 130112
        %523 = vst.msk [vmem:[#allocation4] sm:$0xff] %vm522, %v521
        %524 = vst.msk [vmem:[%s460] sm:$0xff] %vm396, %v465
        %525 = vrot.lane.b32.xlu0 %v431, 112
        %v526 = vpop.permute.xlu0 %525
        %527 = vrot.lane.b32.xlu0 %v436, 112
        %v528 = vpop.permute.xlu0 %527
        %v530 = vsel %vm352, %v526, 0
        %v533 = vsel %vm352, %v528, 0
        %535 = vmatpush.bf16.xpose.msra.mxu0 0
        %536 = vmatpush.bf16.xpose.msra.mxu0 0
        %537 = vmatpush.bf16.xpose.msra.mxu0 0
        %538 = vmatpush.bf16.xpose.msra.mxu0 0
        %539 = vmatpush.bf16.xpose.msra.mxu0 0
        %540 = vmatpush.bf16.xpose.msra.mxu0 0
        %541 = vmatpush.bf16.xpose.msra.mxu0 0
        %542 = vmatpush.bf16.xpose.msra.mxu0 %v533
        %543 = vmatmul.bf16.gmra.mxu0 %v530
        %v544 = vpop.f32.mrf.mxu0
        %v545 = vadd.f32 0.0, %v544
        %v546 = vpop.f32.mrf.mxu0
        %547 = vdwg.mxu0
        %v548 = vmul.f32 %v545, 0.35355338
        %v549 = vadd.f32 %v548, %v351
        %s550 = scalar_lea.vmem [#allocation2], 16
        %v551 = vld [vmem:[%s550] sm:$0xff]
        %v552 = vsel %vm352, %v549, -inf
        %553 = vmax.xlane.f32.xlu0 %v552
        %v554 = vpop.xlane.xlu0 %553
        %v555 = vmax.f32 %v551, %v554
        %v556 = vsub.f32 %v551, %v555
        %v557 = vmul.f32 %v556, 1.442695
        %v558 = vpow.pop %v557
        %560 = vset.pattern.permute.xlu0 0
        %561 = vperm.xlu0 %560, %v555
        %v562 = vpop.permute.xlu0 %561
        %v564 = vsub.f32 %v549, %v562
        %v565 = vmul.f32 %v564, 1.442695
        %v566 = vpow.pop %v565
        %s567 = scalar_lea.vmem [#allocation3], 16
        %v568 = vld [vmem:[%s567] sm:$0xff]
        %v569 = vmul.f32 %v558, %v568
        %v570 = vsel %vm352, %v566, 0.0
        %571 = vadd.xlane.f32.xlu0 %v570
        %v572 = vpop.xlane.xlu0 %571
        %v573 = vadd.f32 %v569, %v572
        %574 = vst.msk [vmem:[%s567] sm:$0xff] %vm396, %v573
        %v575 = vld [vmem:[#allocation4] sm:$0xff]
        %577 = vset.pattern.permute.xlu0 0
        %578 = vperm.xlu0 %577, %v558
        %v579 = vpop.permute.xlu0 %578
        %v581 = vmul.f32 %v579, %v575
        %v582 = vpack.c.bf16 %v566, %v566
        %583 = vrot.lane.b32.xlu0 %v495, 112
        %v584 = vpop.permute.xlu0 %583
        %v586 = vsel %vm352, %v582, 0
        %v589 = vsel %vm409, %v584, 0
        %591 = vmatpush.bf16.msra.mxu0 0
        %592 = vmatpush.bf16.msra.mxu0 0
        %593 = vmatpush.bf16.msra.mxu0 0
        %594 = vmatpush.bf16.msra.mxu0 0
        %595 = vmatpush.bf16.msra.mxu0 0
        %596 = vmatpush.bf16.msra.mxu0 0
        %597 = vmatpush.bf16.msra.mxu0 0
        %598 = vmatpush.bf16.msra.mxu0 %v589
        %599 = vmatmul.bf16.gmra.mxu0 %v586
        %v600 = vpop.f32.mrf.mxu0
        %v601 = vadd.f32 0.0, %v600
        %v602 = vpop.f32.mrf.mxu0
        %603 = vdwg.mxu0
        %605 = vrot.lane.b32.xlu0 %v601, 16
        %v606 = vpop.permute.xlu0 %605
        %v608 = vadd.f32 %v581, %v606
        %vm609 = vcmask 195712
        %610 = vst.msk [vmem:[#allocation4] sm:$0xff] %vm609, %v608
        %611 = vst.msk [vmem:[%s550] sm:$0xff] %vm396, %v555
        %612 = vrot.lane.b32.xlu0 %v431, 104
        %v613 = vpop.permute.xlu0 %612
        %614 = vrot.lane.b32.xlu0 %v436, 104
        %v615 = vpop.permute.xlu0 %614
        %v617 = vsel %vm352, %v613, 0
        %v620 = vsel %vm352, %v615, 0
        %622 = vmatpush.bf16.xpose.msra.mxu0 0
        %623 = vmatpush.bf16.xpose.msra.mxu0 0
        %624 = vmatpush.bf16.xpose.msra.mxu0 0
        %625 = vmatpush.bf16.xpose.msra.mxu0 0
        %626 = vmatpush.bf16.xpose.msra.mxu0 0
        %627 = vmatpush.bf16.xpose.msra.mxu0 0
        %628 = vmatpush.bf16.xpose.msra.mxu0 0
        %629 = vmatpush.bf16.xpose.msra.mxu0 %v620
        %630 = vmatmul.bf16.gmra.mxu0 %v617
        %v631 = vpop.f32.mrf.mxu0
        %v632 = vadd.f32 0.0, %v631
        %v633 = vpop.f32.mrf.mxu0
        %634 = vdwg.mxu0
        %v635 = vmul.f32 %v632, 0.35355338
        %v636 = vadd.f32 %v635, %v351
        %s637 = scalar_lea.vmem [#allocation2], 24
        %v638 = vld [vmem:[%s637] sm:$0xff]
        %v639 = vsel %vm352, %v636, -inf
        %640 = vmax.xlane.f32.xlu0 %v639
        %v641 = vpop.xlane.xlu0 %640
        %v642 = vmax.f32 %v638, %v641
        %v643 = vsub.f32 %v638, %v642
        %v644 = vmul.f32 %v643, 1.442695
        %v645 = vpow.pop %v644
        %647 = vset.pattern.permute.xlu0 0
        %648 = vperm.xlu0 %647, %v642
        %v649 = vpop.permute.xlu0 %648
        %v651 = vsub.f32 %v636, %v649
        %v652 = vmul.f32 %v651, 1.442695
        %v653 = vpow.pop %v652
        %s654 = scalar_lea.vmem [#allocation3], 24
        %v655 = vld [vmem:[%s654] sm:$0xff]
        %v656 = vmul.f32 %v645, %v655
        %v657 = vsel %vm352, %v653, 0.0
        %658 = vadd.xlane.f32.xlu0 %v657
        %v659 = vpop.xlane.xlu0 %658
        %v660 = vadd.f32 %v656, %v659
        %661 = vst.msk [vmem:[%s654] sm:$0xff] %vm396, %v660
        %v662 = vld [vmem:[#allocation4] sm:$0xff]
        %664 = vset.pattern.permute.xlu0 0
        %665 = vperm.xlu0 %664, %v645
        %v666 = vpop.permute.xlu0 %665
        %v668 = vmul.f32 %v666, %v662
        %v669 = vpack.c.bf16 %v653, %v653
        %670 = vrot.lane.b32.xlu0 %v495, 104
        %v671 = vpop.permute.xlu0 %670
        %v673 = vsel %vm352, %v669, 0
        %v676 = vsel %vm409, %v671, 0
        %678 = vmatpush.bf16.msra.mxu0 0
        %679 = vmatpush.bf16.msra.mxu0 0
        %680 = vmatpush.bf16.msra.mxu0 0
        %681 = vmatpush.bf16.msra.mxu0 0
        %682 = vmatpush.bf16.msra.mxu0 0
        %683 = vmatpush.bf16.msra.mxu0 0
        %684 = vmatpush.bf16.msra.mxu0 0
        %685 = vmatpush.bf16.msra.mxu0 %v676
        %686 = vmatmul.bf16.gmra.mxu0 %v673
        %v687 = vpop.f32.mrf.mxu0
        %v688 = vadd.f32 0.0, %v687
        %v689 = vpop.f32.mrf.mxu0
        %690 = vdwg.mxu0
        %692 = vrot.lane.b32.xlu0 %v688, 24
        %v693 = vpop.permute.xlu0 %692
        %v695 = vadd.f32 %v668, %v693
        %vm696 = vcmask 261312
        %697 = vst.msk [vmem:[#allocation4] sm:$0xff] %vm696, %v695
        %698 = vst.msk [vmem:[%s637] sm:$0xff] %vm396, %v642
      $region44: #{transformer_forward.34} parent=35 // pred_fallthru
        _
      // Predicated region
      $region45: #{transformer_forward.34} parent=35 // pred_check
        %p699 = pneg %p313
      $region46: #{transformer_forward.34} parent=35 // pred_check_branch
        %701 = sbr.rel (%p699) target = $region48
      $region47: #{transformer_forward.34} parent=35 // pred_region
        %v702 = vld [vmem:[#allocation4] sm:$0xff]
        %v703 = vld [vmem:[#allocation3] sm:$0xff]
        %v704 = vrcp.pop %v703
        %706 = vset.pattern.permute.xlu0 0
        %707 = vperm.xlu0 %706, %v704
        %v708 = vpop.permute.xlu0 %707
        %v710 = vmul.f32 %v702, %v708
        %vm711 = vcmask 64512
        %712 = vst.msk [vmem:[#allocation4] sm:$0xff] %vm711, %v710
        %v713 = vld [vmem:[#allocation4] sm:$0xff]
        %s714 = scalar_lea.vmem [#allocation3], 8
        %v715 = vld [vmem:[%s714] sm:$0xff]
        %v716 = vrcp.pop %v715
        %718 = vset.pattern.permute.xlu0 0
        %719 = vperm.xlu0 %718, %v716
        %v720 = vpop.permute.xlu0 %719
        %v722 = vmul.f32 %v713, %v720
        %vm723 = vcmask 130112
        %724 = vst.msk [vmem:[#allocation4] sm:$0xff] %vm723, %v722
        %v725 = vld [vmem:[#allocation4] sm:$0xff]
        %s726 = scalar_lea.vmem [#allocation3], 16
        %v727 = vld [vmem:[%s726] sm:$0xff]
        %v728 = vrcp.pop %v727
        %730 = vset.pattern.permute.xlu0 0
        %731 = vperm.xlu0 %730, %v728
        %v732 = vpop.permute.xlu0 %731
        %v734 = vmul.f32 %v725, %v732
        %vm735 = vcmask 195712
        %736 = vst.msk [vmem:[#allocation4] sm:$0xff] %vm735, %v734
        %v737 = vld [vmem:[#allocation4] sm:$0xff]
        %s738 = scalar_lea.vmem [#allocation3], 24
        %v739 = vld [vmem:[%s738] sm:$0xff]
        %v740 = vrcp.pop %v739
        %742 = vset.pattern.permute.xlu0 0
        %743 = vperm.xlu0 %742, %v740
        %v744 = vpop.permute.xlu0 %743
        %v746 = vmul.f32 %v737, %v744
        %vm747 = vcmask 261312
        %748 = vst.msk [vmem:[#allocation4] sm:$0xff] %vm747, %v746
        %v749 = vld [vmem:[#allocation4] sm:$0xff]
        %v750 = vpack.c.bf16 %v749, %v749
        %vm751 = vcmask 257024
        %752 = vst.msk [vmem:[%s311] sm:$0xf] %vm751, %v750
      $region48: #{transformer_forward.34} parent=35 // pred_fallthru
        _
      %p753 = scmp.lt.s32.totalorder %s20, 1
      %s754 = scalar_select %p753, %s20, 1
      %p755 = scmp.lt.s32.totalorder %s21, 0
      %s756 = scalar_select %p755, %s21, 0
      %s757 = sadd.s32 %s756, %s754
      %s758 = smul.addr %s757, 4
      %s759 = scalar_lea.vmem %s4, %s758
      // Predicated region
      $region49: #{transformer_forward.34} parent=35 // pred_check
        %p760 = pneg %p166
      $region50: #{transformer_forward.34} parent=35 // pred_check_branch
        %762 = sbr.rel (%p760) target = $region52
      $region51: #{transformer_forward.34} parent=35 // pred_region
        _
      $region52: #{transformer_forward.34} parent=35 // pred_fallthru
        _
    $region36: #{transformer_forward.34} parent=5 // pred_fallthru
      _
    %p763 = scmp.le.s32.totalorder 2, %s10
    // Predicated region
    $region53: #{transformer_forward.34} parent=5 // pred_check
      %p764 = pneg %p763
    $region54: #{transformer_forward.34} parent=5 // pred_check_branch
      %766 = sbr.rel (%p764) target = $region56
    $region55: #{transformer_forward.34} parent=5 // pred_region
      %s767 = ssub.s32 %s10, 2
      // Predicated region
      $region57: #{transformer_forward.34} parent=55 // pred_check
        %p768 = pneg %p172
      $region58: #{transformer_forward.34} parent=55 // pred_check_branch
        %770 = sbr.rel (%p768) target = $region60
      $region59: #{transformer_forward.34} parent=55 // pred_region
        %p771 = scmp.lt.s32.totalorder %s23, 1
        %s772 = scalar_select %p771, %s23, 1
        %p773 = scmp.lt.s32.totalorder %s24, 0
        %s774 = scalar_select %p773, %s24, 0
        %s775 = sadd.s32 %s774, %s772
        %s776 = smul.addr %s775, 4
        %s777 = scalar_lea.vmem %s4, %s776
      $region60: #{transformer_forward.34} parent=55 // pred_fallthru
        _
    $region56: #{transformer_forward.34} parent=5 // pred_fallthru
      _
  $region6: #{transformer_forward.34} parent=0 // loop_footer
    %s14 = sadd.s32 1, %s10
  $region7: #{transformer_forward.34} parent=0 // loop_footer_branch
    %9 = sbr.rel target = $region3
  $region8: #{transformer_forward.34} parent=0 // loop_exit
    _

</llo_original>
